<compile_context>
chip_gen: v5e
topology: v5e:2x2
jax: 0.10.0
libtpu: 0.0.40
codegen_flags: <defaults>
</compile_context>

<pallas_src>
import math
from functools import partial

import numpy as np
import jax
import jax.numpy as jnp
from jax.experimental import pallas as pl
from jax.experimental.pallas import tpu as pltpu

F32 = jnp.float32
BF16 = jnp.bfloat16
_LANES = 128
_PAD_OFF = 8          # sublane-aligned row offset of the real data in the conv staging scratch
VMEM_SPEC = pl.BlockSpec(memory_space=pltpu.MemorySpace.VMEM)


# ------------------------------ host-side parameter packing ------------------------------

def _round_up(n, m):
    return ((n + m - 1) // m) * m


class _Packer:
    """Packs many small 2-D parameters into one (rows, 128) slab -> a single DMA."""

    def __init__(self, dtype, row_align):
        self._dtype = dtype
        self._align = row_align
        self._items = []
        self.offsets = {}          # name -> (row_offset, rows, cols); static Python ints
        self._rows = 0

    def add(self, name, arr):
        arr = np.asarray(arr, dtype=np.float32)
        if arr.ndim == 1:
            arr = arr[None, :]
        assert arr.ndim == 2 and arr.shape[1] <= _LANES, (name, arr.shape)
        self.offsets[name] = (self._rows, int(arr.shape[0]), int(arr.shape[1]))
        self._items.append((self._rows, arr))
        self._rows += _round_up(arr.shape[0], self._align)

    def finalize(self):
        total = max(_round_up(self._rows, 8), 8)
        slab = np.zeros((total, _LANES), np.float32)
        for off, arr in self._items:
            slab[off:off + arr.shape[0], :arr.shape[1]] = arr
        return jnp.asarray(slab, dtype=self._dtype)


def pack_params(params, nhead=4):
    """Fuse / fold params host-side and pack them into two slabs + static metadata."""
    mm = _Packer(BF16, row_align=16)   # MXU weights (bf16)
    ew = _Packer(F32, row_align=1)     # elementwise params (f32), densely packed

    d = int(params["attn"]["q_w"].shape[0])
    assert d % nhead == 0, "adjust_dim branch (input_dim % nhead != 0) not implemented"
    dh = d // nhead

    # SelfAttention: fused QKV, 1/sqrt(input_dim) folded into Q weights/bias.
    a = params["attn"]
    s = 1.0 / math.sqrt(d)
    mm.add("attn_wqkv", np.concatenate([np.asarray(a["q_w"]) * s, a["k_w"], a["v_w"]], axis=1))
    ew.add("attn_bqkv", np.concatenate([np.asarray(a["q_b"]) * s, a["k_b"], a["v_b"]], axis=1))

    # TransformerEncoder layers: fused QKV (1/sqrt(dh) folded into Q) + full-width Wo.
    hs = 1.0 / math.sqrt(dh)
    for l, lp in enumerate(params["transformer"]):
        mm.add(f"enc{l}_wqkv", np.concatenate([np.asarray(lp["q_w"]) * hs, lp["k_w"], lp["v_w"]], axis=1))
        ew.add(f"enc{l}_bqkv", np.concatenate([np.asarray(lp["q_b"]) * hs, lp["k_b"], lp["v_b"]], axis=1))
        mm.add(f"enc{l}_wo", lp["wo"]);       ew.add(f"enc{l}_bo", lp["out_b"])
        ew.add(f"enc{l}_ln1g", lp["ln1_g"]);  ew.add(f"enc{l}_ln1b", lp["ln1_b"])
        mm.add(f"enc{l}_ff1w", lp["ff1_w"]);  ew.add(f"enc{l}_ff1b", lp["ff1_b"])
        mm.add(f"enc{l}_ff2w", lp["ff2_w"]);  ew.add(f"enc{l}_ff2b", lp["ff2_b"])
        ew.add(f"enc{l}_ln2g", lp["ln2_g"]);  ew.add(f"enc{l}_ln2b", lp["ln2_b"])

    mm.add("proj_w", params["proj_w"]);  ew.add("proj_b", params["proj_b"])

    pad_widths, max_pad = set(), 1

    def add_conv(prefix, w, b, scale, shift):
        nonlocal max_pad
        ks, cin, cout = (int(v) for v in w.shape)
        mm.add(prefix + "_w", np.asarray(w, np.float32).reshape(ks * cin, cout))  # im2col weight
        ew.add(prefix + "_s", scale)
        ew.add(prefix + "_h", np.asarray(b) * np.asarray(scale) + np.asarray(shift))  # conv bias folded
        if ks > 1:
            pad_widths.add(cin)
            max_pad = max(max_pad, (ks - 1) // 2)
        return cin, cout

    st = params["stem"]
    add_conv("stem", st["w"], st["b"], st["scale"], st["shift"])

    blocks_meta = []
    for bi, bp in enumerate(params["blocks"]):
        pre = f"blk{bi}"
        cin, cout = add_conv(pre + "_c1", bp["c1_w"], bp["c1_b"], bp["c1_scale"], bp["c1_shift"])
        add_conv(pre + "_c2", bp["c2_w"], bp["c2_b"], bp["c2_scale"], bp["c2_shift"])
        add_conv(pre + "_c3", bp["c3_w"], bp["c3_b"], bp["c3_scale"], bp["c3_shift"])
        has_sc = "sc_w" in bp
        if has_sc:
            add_conv(pre + "_sc", bp["sc_w"], bp["sc_b"], bp["sc_scale"], bp["sc_shift"])
        mm.add(pre + "_sew1", bp["se_w1"]);  ew.add(pre + "_seb1", bp["se_b1"])
        mm.add(pre + "_sew2", bp["se_w2"]);  ew.add(pre + "_seb2", bp["se_b2"])
        blocks_meta.append({"cin": cin, "cout": cout, "has_sc": has_sc})

    hd = params["head"]
    for nm in ("fc1", "fc2", "fc3", "skip1", "skip2"):
        mm.add(nm + "_w", hd[nm + "_w"]);  ew.add(nm + "_b", hd[nm + "_b"])
    ew.add("out_w_t", np.asarray(hd["out_w"]).T)   # (1, 32): final projection via VPU lane-reduce
    ew.add("out_b", hd["out_b"])

    meta = {
        "num_layers": len(params["transformer"]),
        "blocks": blocks_meta,
        "pad_widths": tuple(sorted(pad_widths)),
        "max_pad": max_pad,
        "offs_mm": mm.offsets,
        "offs_ew": ew.offsets,
    }
    return mm.finalize(), ew.finalize(), meta


# ----------------------------------- in-kernel helpers -----------------------------------

def _lrelu(y):                                   # LeakyReLU(0.1) as a single max
    return jnp.maximum(y, 0.1 * y)


def _mm3(x, w):                                  # (B,S,K) @ (K,N) on the MXU, bf16 in / f32 acc
    return jnp.einsum("bsk,kn->bsn", x.astype(BF16), w.astype(BF16),
                      preferred_element_type=F32)


def _mm2(x, w):                                  # (B,K) @ (K,N)
    return jnp.dot(x.astype(BF16), w.astype(BF16), preferred_element_type=F32)


def _softmax_last(e):
    e = e - jnp.max(e, axis=-1, keepdims=True)
    p = jnp.exp(e)
    return p * pl.reciprocal(jnp.sum(p, axis=-1, keepdims=True), approx=True)   # EUP reciprocal


def _add_layernorm(x, r, g, b, eps=1e-5):
    y = x + r
    mu = jnp.mean(y, axis=-1, keepdims=True)
    var = jnp.mean((y - mu) ** 2, axis=-1, keepdims=True)
    return (y - mu) * jax.lax.rsqrt(var + eps) * g + b


def _attention_core(q, k, v):                    # scale already folded into the Q weights
    e = jnp.einsum("bqd,bkd->bqk", q.astype(BF16), k.astype(BF16), preferred_element_type=F32)
    p = _softmax_last(e)
    return jnp.einsum("bqk,bkd->bqd", p.astype(BF16), v.astype(BF16), preferred_element_type=F32)


def _transformer_layer(x, l, nhead, get_mm, get_ew):
    # PyTorch TransformerEncoderLayer: post-norm, relu FF, dropout=identity (eval).
    d = x.shape[-1]
    dh = d // nhead
    qkv = _mm3(x, get_mm(f"enc{l}_wqkv")) + get_ew(f"enc{l}_bqkv")      # single fused projection
    q, k, v = qkv[..., :d], qkv[..., d:2 * d], qkv[..., 2 * d:]
    heads = []
    for h in range(nhead):                                              # heads via static lane slices
        sl = slice(h * dh, (h + 1) * dh)
        heads.append(_attention_core(q[..., sl], k[..., sl], v[..., sl]))
    ctx = jnp.concatenate(heads, axis=-1)                               # (B,S,d)
    sa = _mm3(ctx, get_mm(f"enc{l}_wo")) + get_ew(f"enc{l}_bo")         # single full-width out-proj
    x = _add_layernorm(x, sa, get_ew(f"enc{l}_ln1g"), get_ew(f"enc{l}_ln1b"))
    ff = jnp.maximum(_mm3(x, get_mm(f"enc{l}_ff1w")) + get_ew(f"enc{l}_ff1b"), 0.0)
    ff = _mm3(ff, get_mm(f"enc{l}_ff2w")) + get_ew(f"enc{l}_ff2b")
    return _add_layernorm(x, ff, get_ew(f"enc{l}_ln2g"), get_ew(f"enc{l}_ln2b"))


def _conv_bn(x, w2d, scale, shift, leaky, pad_scr):
    """1-D 'same' conv (stride 1) via im2col + folded BatchNorm (+ conv bias) + activation.

    w2d is the conv weight reshaped to (ks*Cin, Cout); padding comes from a VMEM
    staging scratch whose margin rows were zeroed once in the kernel prologue.
    """
    bsz, length, cin = x.shape
    ks = w2d.shape[0] // cin
    if ks == 1:
        y = _mm3(x, w2d)
    else:
        pad = (ks - 1) // 2
        scr = pad_scr[cin]
        scr[:, _PAD_OFF:_PAD_OFF + length, :] = x               # sublane-aligned interior store
        xcol = jnp.concatenate(
            [scr[:, _PAD_OFF - pad + t:_PAD_OFF - pad + t + length, :] for t in range(ks)],
            axis=-1)                                            # (B, L, ks*Cin) lane concat
        y = _mm3(xcol, w2d)                                     # one MXU matmul, K = ks*Cin
    y = y * scale + shift
    return _lrelu(y) if leaky else y


def _enhanced_block(x, pre, cfg, get_mm, get_ew, pad_scr):
    out = _conv_bn(x,   get_mm(pre + "_c1_w"), get_ew(pre + "_c1_s"), get_ew(pre + "_c1_h"), True,  pad_scr)
    out = _conv_bn(out, get_mm(pre + "_c2_w"), get_ew(pre + "_c2_s"), get_ew(pre + "_c2_h"), True,  pad_scr)
    out = _conv_bn(out, get_mm(pre + "_c3_w"), get_ew(pre + "_c3_s"), get_ew(pre + "_c3_h"), False, pad_scr)
    if cfg["has_sc"]:
        shortcut = _conv_bn(x, get_mm(pre + "_sc_w"), get_ew(pre + "_sc_s"), get_ew(pre + "_sc_h"),
                            False, pad_scr)
    else:
        shortcut = x
    # Squeeze-and-excitation: AdaptiveAvgPool1d(1) + two 1x1 convs == two tiny linears.
    pooled = jnp.mean(out, axis=1)
    hdn = jnp.maximum(_mm2(pooled, get_mm(pre + "_sew1")) + get_ew(pre + "_seb1"), 0.0)
    s = jax.nn.sigmoid(_mm2(hdn, get_mm(pre + "_sew2")) + get_ew(pre + "_seb2"))
    return jnp.maximum(out * s[:, None, :] + shortcut, 0.0)    # final torch.relu


def _mlp_head(cf, get_mm, get_ew):
    x1 = _lrelu(_mm2(cf, get_mm("fc1_w")) + get_ew("fc1_b"))
    skip1 = _mm2(cf, get_mm("skip1_w")) + get_ew("skip1_b")
    x2 = _lrelu(_mm2(x1, get_mm("fc2_w")) + get_ew("fc2_b")) + skip1
    skip2 = _mm2(x1, get_mm("skip2_w")) + get_ew("skip2_b")
    x3 = _lrelu(_mm2(x2, get_mm("fc3_w")) + get_ew("fc3_b")) + skip2
    # Final (32 -> 1) projection as a VPU multiply + lane reduce (no 1-lane MXU op).
    return jnp.sum(x3 * get_ew("out_w_t"), axis=-1, keepdims=True) + get_ew("out_b")


# ------------------------------------- fused kernel -------------------------------------

def _deep_resnet_kernel(x_ref, mm_ref, ew_ref, o_ref, *scratch, meta, nhead):
    offs_mm, offs_ew = meta["offs_mm"], meta["offs_ew"]

    def get_mm(name):
        off, r, c = offs_mm[name]
        return mm_ref[off:off + r, :c]

    def get_ew(name):
        off, r, c = offs_ew[name]
        return ew_ref[off:off + r, :c]

    pad_scr = dict(zip(meta["pad_widths"], scratch))
    x = x_ref[...]
    bsz, seq, d = x.shape

    # Zero ONLY the conv-padding margin rows once; interior rows are overwritten
    # before every read, so they never need initialisation.
    mp = meta["max_pad"]
    for scr in scratch:
        z = jnp.zeros((scr.shape[0], mp, scr.shape[2]), F32)
        scr[:, _PAD_OFF - mp:_PAD_OFF, :] = z
        scr[:, _PAD_OFF + seq:_PAD_OFF + seq + mp, :] = z

    # --- SelfAttention over raw features (scale folded into Q weights) ---
    qkv = _mm3(x, get_mm("attn_wqkv")) + get_ew("attn_bqkv")
    t = _attention_core(qkv[..., :d], qkv[..., d:2 * d], qkv[..., 2 * d:])

    # --- TransformerEncoder (post-norm, 2 layers); adjust_dim == Identity here.
    # TODO(synk): the dynamically-constructed nn.Linear(adjusted_dim, original_dim)
    # branch (only reachable when input_dim % nhead != 0) is not implemented.
    for l in range(meta["num_layers"]):
        t = _transformer_layer(t, l, nhead, get_mm, get_ew)
    x = x + 0.1 * t

    # --- input projection + conv feature extractor (channels-last == NCL math) ---
    h = _mm3(x, get_mm("proj_w")) + get_ew("proj_b")
    h = _conv_bn(h, get_mm("stem_w"), get_ew("stem_s"), get_ew("stem_h"), True, pad_scr)
    for bi, cfg in enumerate(meta["blocks"]):
        h = _enhanced_block(h, f"blk{bi}", cfg, get_mm, get_ew, pad_scr)
    cf = jnp.mean(h, axis=1)                        # AdaptiveAvgPool1d(1) -> (B, C)

    # --- MLP head with skip connections (dropout = identity in eval) ---
    o_ref[...] = _mlp_head(cf, get_mm, get_ew).astype(F32)


def make_forward(meta, nhead=4):
    kernel = partial(_deep_resnet_kernel, meta=meta, nhead=nhead)

    @jax.jit
    def forward(x, slab_mm, slab_ew):
        bsz, seq, _ = x.shape
        return pl.pallas_call(
            kernel,
            out_shape=jax.ShapeDtypeStruct((bsz, 1), F32),
            in_specs=[VMEM_SPEC, VMEM_SPEC, VMEM_SPEC],
            out_specs=VMEM_SPEC,
            scratch_shapes=[pltpu.VMEM((bsz, 2 * _PAD_OFF + seq, w), F32)
                            for w in meta["pad_widths"]],
        )(x, slab_mm, slab_ew)

    return forward


# ------------------------------------ parameter init ------------------------------------

def init_params(key, input_dim=16, hidden_dims=(32, 64), num_blocks=1, nhead=4):
    keys = iter(jax.random.split(key, 512))

    def nrm(shape, s=0.05):
        return s * jax.random.normal(next(keys), shape, dtype=jnp.float32)

    def bn_fold(c):  # eval-mode BatchNorm folded into per-channel scale/shift
        gamma = 1.0 + 0.1 * jax.random.normal(next(keys), (1, c), dtype=jnp.float32)
        beta = nrm((1, c))
        mean = nrm((1, c))
        var = 1.0 + 0.1 * jnp.abs(jax.random.normal(next(keys), (1, c), dtype=jnp.float32))
        scale = gamma / jnp.sqrt(var + 1e-5)
        shift = beta - mean * scale
        return scale, shift

    d = input_dim
    params = {"attn": {"q_w": nrm((d, d)), "q_b": nrm((1, d)),
                       "k_w": nrm((d, d)), "k_b": nrm((1, d)),
                       "v_w": nrm((d, d)), "v_b": nrm((1, d))}}

    layers = []
    for _ in range(2):
        layers.append({
            "q_w": nrm((d, d)), "q_b": nrm((1, d)),
            "k_w": nrm((d, d)), "k_b": nrm((1, d)),
            "v_w": nrm((d, d)), "v_b": nrm((1, d)),
            "wo": nrm((d, d)), "out_b": nrm((1, d)),
            "ln1_g": 1.0 + nrm((1, d)), "ln1_b": nrm((1, d)),
            "ff1_w": nrm((d, 4 * d)), "ff1_b": nrm((1, 4 * d)),
            "ff2_w": nrm((4 * d, d)), "ff2_b": nrm((1, d)),
            "ln2_g": 1.0 + nrm((1, d)), "ln2_b": nrm((1, d)),
        })
    params["transformer"] = layers

    h0 = hidden_dims[0]
    params["proj_w"] = nrm((d, h0))
    params["proj_b"] = nrm((1, h0))
    s, sh = bn_fold(h0)
    params["stem"] = {"w": nrm((3, h0, h0)), "b": nrm((1, h0)), "scale": s, "shift": sh}

    blocks = []
    in_ch = h0
    for out_ch in hidden_dims[1:]:
        for _ in range(num_blocks):
            p = {}
            for name, k, ci, co in (("c1", 3, in_ch, out_ch),
                                    ("c2", 5, out_ch, out_ch),
                                    ("c3", 3, out_ch, out_ch)):
                p[name + "_w"] = nrm((k, ci, co))
                p[name + "_b"] = nrm((1, co))
                sc_, sh_ = bn_fold(co)
                p[name + "_scale"] = sc_
                p[name + "_shift"] = sh_
            if in_ch != out_ch:
                p["sc_w"] = nrm((1, in_ch, out_ch))
                p["sc_b"] = nrm((1, out_ch))
                sc_, sh_ = bn_fold(out_ch)
                p["sc_scale"] = sc_
                p["sc_shift"] = sh_
            cr = max(out_ch // 16, 1)
            p["se_w1"] = nrm((out_ch, cr))
            p["se_b1"] = nrm((1, cr))
            p["se_w2"] = nrm((cr, out_ch))
            p["se_b2"] = nrm((1, out_ch))
            blocks.append(p)
            in_ch = out_ch
    params["blocks"] = blocks

    hl = hidden_dims[-1]
    params["head"] = {
        "fc1_w": nrm((hl, 128)), "fc1_b": nrm((1, 128)),
        "fc2_w": nrm((128, 64)), "fc2_b": nrm((1, 64)),
        "fc3_w": nrm((64, 32)), "fc3_b": nrm((1, 32)),
        "out_w": nrm((32, 1)), "out_b": nrm((1, 1)),
        "skip1_w": nrm((hl, 64)), "skip1_b": nrm((1, 64)),
        "skip2_w": nrm((128, 32)), "skip2_b": nrm((1, 32)),
    }
    return params


if __name__ == "__main__":
    key = jax.random.PRNGKey(0)
    kx, kp = jax.random.split(key)
    # (batch, seq_len, input_dim) — input_dim divisible by nhead=4
    x = jax.random.normal(kx, (2, 8, 16), dtype=jnp.float32)
    params = init_params(kp, input_dim=16, hidden_dims=(32, 64), num_blocks=1, nhead=4)

    slab_mm, slab_ew, meta = pack_params(params, nhead=4)      # one-time host-side packing
    forward = make_forward(meta, nhead=4)

    out = jax.block_until_ready(forward(x, slab_mm, slab_ew))
    assert out.shape == (2, 1) and out.dtype == jnp.float32
    assert bool(jnp.all(jnp.isfinite(out)))
    print("KERNEL_OK")
</pallas_src>

<mosaic_0001>
module attributes {stable_mosaic.version = 11 : i64} {
  func.func @_deep_resnet_kernel(%arg0: memref<2x8x16xf32, #tpu.memory_space<vmem>>, %arg1: memref<1520x128xbf16, #tpu.memory_space<vmem>>, %arg2: memref<40x128xf32, #tpu.memory_space<vmem>>, %arg3: memref<2x1xf32, #tpu.memory_space<vmem>>, %arg4: memref<2x24x32xf32, #tpu.memory_space<vmem>>, %arg5: memref<2x24x64xf32, #tpu.memory_space<vmem>>) attributes {dimension_semantics = [], scalar_prefetch = 0 : i64, scratch_operands = 2 : i64, tpu.core_type = #tpu.core_type<tc>} {
    %c0 = arith.constant 0 : index
    %c0_0 = arith.constant 0 : index
    %c0_1 = arith.constant 0 : index
    %0 = vector.load %arg0[%c0, %c0_0, %c0_1] : memref<2x8x16xf32, #tpu.memory_space<vmem>>, vector<2x8x16xf32>
    %cst = arith.constant 0.000000e+00 : f32
    %1 = vector.broadcast %cst : f32 to vector<2x2x32xf32>
    %c0_2 = arith.constant 0 : index
    %c6 = arith.constant 6 : index
    %c0_3 = arith.constant 0 : index
    %2 = vector.load %arg4[%c0_2, %c6, %c0_3] : memref<2x24x32xf32, #tpu.memory_space<vmem>>, vector<2x2x32xf32>
    tpu.vector_store %arg4[%c0_2, %c6, %c0_3], %1 {strides = array<i32>} : memref<2x24x32xf32, #tpu.memory_space<vmem>>, vector<2x2x32xf32>,
    %c0_4 = arith.constant 0 : index
    %c16 = arith.constant 16 : index
    %c0_5 = arith.constant 0 : index
    %3 = vector.load %arg4[%c0_4, %c16, %c0_5] : memref<2x24x32xf32, #tpu.memory_space<vmem>>, vector<2x2x32xf32>
    tpu.vector_store %arg4[%c0_4, %c16, %c0_5], %1 {strides = array<i32>} : memref<2x24x32xf32, #tpu.memory_space<vmem>>, vector<2x2x32xf32>,
    %cst_6 = arith.constant 0.000000e+00 : f32
    %4 = vector.broadcast %cst_6 : f32 to vector<2x2x64xf32>
    %c0_7 = arith.constant 0 : index
    %c6_8 = arith.constant 6 : index
    %c0_9 = arith.constant 0 : index
    %5 = vector.load %arg5[%c0_7, %c6_8, %c0_9] : memref<2x24x64xf32, #tpu.memory_space<vmem>>, vector<2x2x64xf32>
    tpu.vector_store %arg5[%c0_7, %c6_8, %c0_9], %4 {strides = array<i32>} : memref<2x24x64xf32, #tpu.memory_space<vmem>>, vector<2x2x64xf32>,
    %c0_10 = arith.constant 0 : index
    %c16_11 = arith.constant 16 : index
    %c0_12 = arith.constant 0 : index
    %6 = vector.load %arg5[%c0_10, %c16_11, %c0_12] : memref<2x24x64xf32, #tpu.memory_space<vmem>>, vector<2x2x64xf32>
    tpu.vector_store %arg5[%c0_10, %c16_11, %c0_12], %4 {strides = array<i32>} : memref<2x24x64xf32, #tpu.memory_space<vmem>>, vector<2x2x64xf32>,
    %c0_13 = arith.constant 0 : index
    %c0_14 = arith.constant 0 : index
    %7 = vector.load %arg1[%c0_13, %c0_14] : memref<1520x128xbf16, #tpu.memory_space<vmem>>, vector<16x48xbf16>
    %8 = arith.truncf %0 : vector<2x8x16xf32> to vector<2x8x16xbf16>
    "tpu.trace_start"() <{level = 10 : i32, message = "bsk,kn->bsn"}> : () -> ()
    %cst_15 = arith.constant dense<0.000000e+00> : vector<2x8x48xf32>
    %9 = tpu.matmul %8, %7, %cst_15 {dimension_numbers = #tpu.dot_dimension_numbers<[2], [0], [0, 1], [1], [0, 0, 0, 1, 1, 1], [], []>} : vector<2x8x16xbf16>, vector<16x48xbf16>, vector<2x8x48xf32> -> vector<2x8x48xf32>
    "tpu.trace_stop"() : () -> ()
    %c0_16 = arith.constant 0 : index
    %c0_17 = arith.constant 0 : index
    %10 = vector.load %arg2[%c0_16, %c0_17] : memref<40x128xf32, #tpu.memory_space<vmem>>, vector<1x48xf32>
    %11 = vector.shape_cast %10 : vector<1x48xf32> to vector<1x1x48xf32>
    %12 = vector.broadcast %11 : vector<1x1x48xf32> to vector<2x8x48xf32>
    %13 = arith.addf %9, %12 : vector<2x8x48xf32>
    %14 = vector.extract_strided_slice %13 {offsets = [0, 0, 0], sizes = [2, 8, 16], strides = [1, 1, 1]} : vector<2x8x48xf32> to vector<2x8x16xf32>
    %15 = vector.extract_strided_slice %13 {offsets = [0, 0, 16], sizes = [2, 8, 16], strides = [1, 1, 1]} : vector<2x8x48xf32> to vector<2x8x16xf32>
    %16 = vector.extract_strided_slice %13 {offsets = [0, 0, 32], sizes = [2, 8, 16], strides = [1, 1, 1]} : vector<2x8x48xf32> to vector<2x8x16xf32>
    %17 = arith.truncf %14 : vector<2x8x16xf32> to vector<2x8x16xbf16>
    %18 = arith.truncf %15 : vector<2x8x16xf32> to vector<2x8x16xbf16>
    "tpu.trace_start"() <{level = 10 : i32, message = "bqd,bkd->bqk"}> : () -> ()
    %cst_18 = arith.constant dense<0.000000e+00> : vector<2x8x8xf32>
    %19 = tpu.matmul %17, %18, %cst_18 {dimension_numbers = #tpu.dot_dimension_numbers<[2], [2], [1], [1], [0, 0, 0, 1, 1, 1], [0], [0]>} : vector<2x8x16xbf16>, vector<2x8x16xbf16>, vector<2x8x8xf32> -> vector<2x8x8xf32>
    "tpu.trace_stop"() : () -> ()
    %cst_19 = arith.constant dense<0xFF800000> : vector<2x8xf32>
    %20 = vector.multi_reduction <maximumf>, %19, %cst_19 [2] : vector<2x8x8xf32> to vector<2x8xf32>
    %21 = vector.shape_cast %20 : vector<2x8xf32> to vector<2x8x1xf32>
    %22 = vector.broadcast %21 : vector<2x8x1xf32> to vector<2x8x8xf32>
    %23 = arith.subf %19, %22 : vector<2x8x8xf32>
    %24 = math.exp %23 : vector<2x8x8xf32>
    %cst_20 = arith.constant dense<0.000000e+00> : vector<2x8xf32>
    %25 = vector.multi_reduction <add>, %24, %cst_20 [2] : vector<2x8x8xf32> to vector<2x8xf32>
    %26 = vector.shape_cast %25 : vector<2x8xf32> to vector<2x8x1xf32>
    %27 = tpu.reciprocal %26 {approx = true} : vector<2x8x1xf32> -> vector<2x8x1xf32>
    %28 = vector.broadcast %27 : vector<2x8x1xf32> to vector<2x8x8xf32>
    %29 = arith.mulf %24, %28 : vector<2x8x8xf32>
    %30 = arith.truncf %29 : vector<2x8x8xf32> to vector<2x8x8xbf16>
    %31 = arith.truncf %16 : vector<2x8x16xf32> to vector<2x8x16xbf16>
    "tpu.trace_start"() <{level = 10 : i32, message = "bqk,bkd->bqd"}> : () -> ()
    %cst_21 = arith.constant dense<0.000000e+00> : vector<2x8x16xf32>
    %32 = tpu.matmul %30, %31, %cst_21 {dimension_numbers = #tpu.dot_dimension_numbers<[2], [1], [1], [2], [0, 0, 0, 1, 1, 2], [0], [0]>} : vector<2x8x8xbf16>, vector<2x8x16xbf16>, vector<2x8x16xf32> -> vector<2x8x16xf32>
    "tpu.trace_stop"() : () -> ()
    %c16_22 = arith.constant 16 : index
    %c0_23 = arith.constant 0 : index
    %33 = vector.load %arg1[%c16_22, %c0_23] : memref<1520x128xbf16, #tpu.memory_space<vmem>>, vector<16x48xbf16>
    %34 = arith.truncf %32 : vector<2x8x16xf32> to vector<2x8x16xbf16>
    "tpu.trace_start"() <{level = 10 : i32, message = "bsk,kn->bsn"}> : () -> ()
    %cst_24 = arith.constant dense<0.000000e+00> : vector<2x8x48xf32>
    %35 = tpu.matmul %34, %33, %cst_24 {dimension_numbers = #tpu.dot_dimension_numbers<[2], [0], [0, 1], [1], [0, 0, 0, 1, 1, 1], [], []>} : vector<2x8x16xbf16>, vector<16x48xbf16>, vector<2x8x48xf32> -> vector<2x8x48xf32>
    "tpu.trace_stop"() : () -> ()
    %c1 = arith.constant 1 : index
    %c0_25 = arith.constant 0 : index
    %36 = vector.load %arg2[%c1, %c0_25] : memref<40x128xf32, #tpu.memory_space<vmem>>, vector<1x48xf32>
    %37 = vector.shape_cast %36 : vector<1x48xf32> to vector<1x1x48xf32>
    %38 = vector.broadcast %37 : vector<1x1x48xf32> to vector<2x8x48xf32>
    %39 = arith.addf %35, %38 : vector<2x8x48xf32>
    %40 = vector.extract_strided_slice %39 {offsets = [0, 0, 0], sizes = [2, 8, 16], strides = [1, 1, 1]} : vector<2x8x48xf32> to vector<2x8x16xf32>
    %41 = vector.extract_strided_slice %39 {offsets = [0, 0, 16], sizes = [2, 8, 16], strides = [1, 1, 1]} : vector<2x8x48xf32> to vector<2x8x16xf32>
    %42 = vector.extract_strided_slice %39 {offsets = [0, 0, 32], sizes = [2, 8, 16], strides = [1, 1, 1]} : vector<2x8x48xf32> to vector<2x8x16xf32>
    %43 = vector.extract_strided_slice %40 {offsets = [0, 0, 0], sizes = [2, 8, 4], strides = [1, 1, 1]} : vector<2x8x16xf32> to vector<2x8x4xf32>
    %44 = vector.extract_strided_slice %41 {offsets = [0, 0, 0], sizes = [2, 8, 4], strides = [1, 1, 1]} : vector<2x8x16xf32> to vector<2x8x4xf32>
    %45 = vector.extract_strided_slice %42 {offsets = [0, 0, 0], sizes = [2, 8, 4], strides = [1, 1, 1]} : vector<2x8x16xf32> to vector<2x8x4xf32>
    %46 = arith.truncf %43 : vector<2x8x4xf32> to vector<2x8x4xbf16>
    %47 = arith.truncf %44 : vector<2x8x4xf32> to vector<2x8x4xbf16>
    "tpu.trace_start"() <{level = 10 : i32, message = "bqd,bkd->bqk"}> : () -> ()
    %cst_26 = arith.constant dense<0.000000e+00> : vector<2x8x8xf32>
    %48 = tpu.matmul %46, %47, %cst_26 {dimension_numbers = #tpu.dot_dimension_numbers<[2], [2], [1], [1], [0, 0, 0, 1, 1, 1], [0], [0]>} : vector<2x8x4xbf16>, vector<2x8x4xbf16>, vector<2x8x8xf32> -> vector<2x8x8xf32>
    "tpu.trace_stop"() : () -> ()
    %cst_27 = arith.constant dense<0xFF800000> : vector<2x8xf32>
    %49 = vector.multi_reduction <maximumf>, %48, %cst_27 [2] : vector<2x8x8xf32> to vector<2x8xf32>
    %50 = vector.shape_cast %49 : vector<2x8xf32> to vector<2x8x1xf32>
    %51 = vector.broadcast %50 : vector<2x8x1xf32> to vector<2x8x8xf32>
    %52 = arith.subf %48, %51 : vector<2x8x8xf32>
    %53 = math.exp %52 : vector<2x8x8xf32>
    %cst_28 = arith.constant dense<0.000000e+00> : vector<2x8xf32>
    %54 = vector.multi_reduction <add>, %53, %cst_28 [2] : vector<2x8x8xf32> to vector<2x8xf32>
    %55 = vector.shape_cast %54 : vector<2x8xf32> to vector<2x8x1xf32>
    %56 = tpu.reciprocal %55 {approx = true} : vector<2x8x1xf32> -> vector<2x8x1xf32>
    %57 = vector.broadcast %56 : vector<2x8x1xf32> to vector<2x8x8xf32>
    %58 = arith.mulf %53, %57 : vector<2x8x8xf32>
    %59 = arith.truncf %58 : vector<2x8x8xf32> to vector<2x8x8xbf16>
    %60 = arith.truncf %45 : vector<2x8x4xf32> to vector<2x8x4xbf16>
    "tpu.trace_start"() <{level = 10 : i32, message = "bqk,bkd->bqd"}> : () -> ()
    %cst_29 = arith.constant dense<0.000000e+00> : vector<2x8x4xf32>
    %61 = tpu.matmul %59, %60, %cst_29 {dimension_numbers = #tpu.dot_dimension_numbers<[2], [1], [1], [2], [0, 0, 0, 1, 1, 2], [0], [0]>} : vector<2x8x8xbf16>, vector<2x8x4xbf16>, vector<2x8x4xf32> -> vector<2x8x4xf32>
    "tpu.trace_stop"() : () -> ()
    %62 = vector.extract_strided_slice %40 {offsets = [0, 0, 4], sizes = [2, 8, 4], strides = [1, 1, 1]} : vector<2x8x16xf32> to vector<2x8x4xf32>
    %63 = vector.extract_strided_slice %41 {offsets = [0, 0, 4], sizes = [2, 8, 4], strides = [1, 1, 1]} : vector<2x8x16xf32> to vector<2x8x4xf32>
    %64 = vector.extract_strided_slice %42 {offsets = [0, 0, 4], sizes = [2, 8, 4], strides = [1, 1, 1]} : vector<2x8x16xf32> to vector<2x8x4xf32>
    %65 = arith.truncf %62 : vector<2x8x4xf32> to vector<2x8x4xbf16>
    %66 = arith.truncf %63 : vector<2x8x4xf32> to vector<2x8x4xbf16>
    "tpu.trace_start"() <{level = 10 : i32, message = "bqd,bkd->bqk"}> : () -> ()
    %cst_30 = arith.constant dense<0.000000e+00> : vector<2x8x8xf32>
    %67 = tpu.matmul %65, %66, %cst_30 {dimension_numbers = #tpu.dot_dimension_numbers<[2], [2], [1], [1], [0, 0, 0, 1, 1, 1], [0], [0]>} : vector<2x8x4xbf16>, vector<2x8x4xbf16>, vector<2x8x8xf32> -> vector<2x8x8xf32>
    "tpu.trace_stop"() : () -> ()
    %cst_31 = arith.constant dense<0xFF800000> : vector<2x8xf32>
    %68 = vector.multi_reduction <maximumf>, %67, %cst_31 [2] : vector<2x8x8xf32> to vector<2x8xf32>
    %69 = vector.shape_cast %68 : vector<2x8xf32> to vector<2x8x1xf32>
    %70 = vector.broadcast %69 : vector<2x8x1xf32> to vector<2x8x8xf32>
    %71 = arith.subf %67, %70 : vector<2x8x8xf32>
    %72 = math.exp %71 : vector<2x8x8xf32>
    %cst_32 = arith.constant dense<0.000000e+00> : vector<2x8xf32>
    %73 = vector.multi_reduction <add>, %72, %cst_32 [2] : vector<2x8x8xf32> to vector<2x8xf32>
    %74 = vector.shape_cast %73 : vector<2x8xf32> to vector<2x8x1xf32>
    %75 = tpu.reciprocal %74 {approx = true} : vector<2x8x1xf32> -> vector<2x8x1xf32>
    %76 = vector.broadcast %75 : vector<2x8x1xf32> to vector<2x8x8xf32>
    %77 = arith.mulf %72, %76 : vector<2x8x8xf32>
    %78 = arith.truncf %77 : vector<2x8x8xf32> to vector<2x8x8xbf16>
    %79 = arith.truncf %64 : vector<2x8x4xf32> to vector<2x8x4xbf16>
    "tpu.trace_start"() <{level = 10 : i32, message = "bqk,bkd->bqd"}> : () -> ()
    %cst_33 = arith.constant dense<0.000000e+00> : vector<2x8x4xf32>
    %80 = tpu.matmul %78, %79, %cst_33 {dimension_numbers = #tpu.dot_dimension_numbers<[2], [1], [1], [2], [0, 0, 0, 1, 1, 2], [0], [0]>} : vector<2x8x8xbf16>, vector<2x8x4xbf16>, vector<2x8x4xf32> -> vector<2x8x4xf32>
    "tpu.trace_stop"() : () -> ()
    %81 = vector.extract_strided_slice %40 {offsets = [0, 0, 8], sizes = [2, 8, 4], strides = [1, 1, 1]} : vector<2x8x16xf32> to vector<2x8x4xf32>
    %82 = vector.extract_strided_slice %41 {offsets = [0, 0, 8], sizes = [2, 8, 4], strides = [1, 1, 1]} : vector<2x8x16xf32> to vector<2x8x4xf32>
    %83 = vector.extract_strided_slice %42 {offsets = [0, 0, 8], sizes = [2, 8, 4], strides = [1, 1, 1]} : vector<2x8x16xf32> to vector<2x8x4xf32>
    %84 = arith.truncf %81 : vector<2x8x4xf32> to vector<2x8x4xbf16>
    %85 = arith.truncf %82 : vector<2x8x4xf32> to vector<2x8x4xbf16>
    "tpu.trace_start"() <{level = 10 : i32, message = "bqd,bkd->bqk"}> : () -> ()
    %cst_34 = arith.constant dense<0.000000e+00> : vector<2x8x8xf32>
    %86 = tpu.matmul %84, %85, %cst_34 {dimension_numbers = #tpu.dot_dimension_numbers<[2], [2], [1], [1], [0, 0, 0, 1, 1, 1], [0], [0]>} : vector<2x8x4xbf16>, vector<2x8x4xbf16>, vector<2x8x8xf32> -> vector<2x8x8xf32>
    "tpu.trace_stop"() : () -> ()
    %cst_35 = arith.constant dense<0xFF800000> : vector<2x8xf32>
    %87 = vector.multi_reduction <maximumf>, %86, %cst_35 [2] : vector<2x8x8xf32> to vector<2x8xf32>
    %88 = vector.shape_cast %87 : vector<2x8xf32> to vector<2x8x1xf32>
    %89 = vector.broadcast %88 : vector<2x8x1xf32> to vector<2x8x8xf32>
    %90 = arith.subf %86, %89 : vector<2x8x8xf32>
    %91 = math.exp %90 : vector<2x8x8xf32>
    %cst_36 = arith.constant dense<0.000000e+00> : vector<2x8xf32>
    %92 = vector.multi_reduction <add>, %91, %cst_36 [2] : vector<2x8x8xf32> to vector<2x8xf32>
    %93 = vector.shape_cast %92 : vector<2x8xf32> to vector<2x8x1xf32>
    %94 = tpu.reciprocal %93 {approx = true} : vector<2x8x1xf32> -> vector<2x8x1xf32>
    %95 = vector.broadcast %94 : vector<2x8x1xf32> to vector<2x8x8xf32>
    %96 = arith.mulf %91, %95 : vector<2x8x8xf32>
    %97 = arith.truncf %96 : vector<2x8x8xf32> to vector<2x8x8xbf16>
    %98 = arith.truncf %83 : vector<2x8x4xf32> to vector<2x8x4xbf16>
    "tpu.trace_start"() <{level = 10 : i32, message = "bqk,bkd->bqd"}> : () -> ()
    %cst_37 = arith.constant dense<0.000000e+00> : vector<2x8x4xf32>
    %99 = tpu.matmul %97, %98, %cst_37 {dimension_numbers = #tpu.dot_dimension_numbers<[2], [1], [1], [2], [0, 0, 0, 1, 1, 2], [0], [0]>} : vector<2x8x8xbf16>, vector<2x8x4xbf16>, vector<2x8x4xf32> -> vector<2x8x4xf32>
    "tpu.trace_stop"() : () -> ()
    %100 = vector.extract_strided_slice %40 {offsets = [0, 0, 12], sizes = [2, 8, 4], strides = [1, 1, 1]} : vector<2x8x16xf32> to vector<2x8x4xf32>
    %101 = vector.extract_strided_slice %41 {offsets = [0, 0, 12], sizes = [2, 8, 4], strides = [1, 1, 1]} : vector<2x8x16xf32> to vector<2x8x4xf32>
    %102 = vector.extract_strided_slice %42 {offsets = [0, 0, 12], sizes = [2, 8, 4], strides = [1, 1, 1]} : vector<2x8x16xf32> to vector<2x8x4xf32>
    %103 = arith.truncf %100 : vector<2x8x4xf32> to vector<2x8x4xbf16>
    %104 = arith.truncf %101 : vector<2x8x4xf32> to vector<2x8x4xbf16>
    "tpu.trace_start"() <{level = 10 : i32, message = "bqd,bkd->bqk"}> : () -> ()
    %cst_38 = arith.constant dense<0.000000e+00> : vector<2x8x8xf32>
    %105 = tpu.matmul %103, %104, %cst_38 {dimension_numbers = #tpu.dot_dimension_numbers<[2], [2], [1], [1], [0, 0, 0, 1, 1, 1], [0], [0]>} : vector<2x8x4xbf16>, vector<2x8x4xbf16>, vector<2x8x8xf32> -> vector<2x8x8xf32>
    "tpu.trace_stop"() : () -> ()
    %cst_39 = arith.constant dense<0xFF800000> : vector<2x8xf32>
    %106 = vector.multi_reduction <maximumf>, %105, %cst_39 [2] : vector<2x8x8xf32> to vector<2x8xf32>
    %107 = vector.shape_cast %106 : vector<2x8xf32> to vector<2x8x1xf32>
    %108 = vector.broadcast %107 : vector<2x8x1xf32> to vector<2x8x8xf32>
    %109 = arith.subf %105, %108 : vector<2x8x8xf32>
    %110 = math.exp %109 : vector<2x8x8xf32>
    %cst_40 = arith.constant dense<0.000000e+00> : vector<2x8xf32>
    %111 = vector.multi_reduction <add>, %110, %cst_40 [2] : vector<2x8x8xf32> to vector<2x8xf32>
    %112 = vector.shape_cast %111 : vector<2x8xf32> to vector<2x8x1xf32>
    %113 = tpu.reciprocal %112 {approx = true} : vector<2x8x1xf32> -> vector<2x8x1xf32>
    %114 = vector.broadcast %113 : vector<2x8x1xf32> to vector<2x8x8xf32>
    %115 = arith.mulf %110, %114 : vector<2x8x8xf32>
    %116 = arith.truncf %115 : vector<2x8x8xf32> to vector<2x8x8xbf16>
    %117 = arith.truncf %102 : vector<2x8x4xf32> to vector<2x8x4xbf16>
    "tpu.trace_start"() <{level = 10 : i32, message = "bqk,bkd->bqd"}> : () -> ()
    %cst_41 = arith.constant dense<0.000000e+00> : vector<2x8x4xf32>
    %118 = tpu.matmul %116, %117, %cst_41 {dimension_numbers = #tpu.dot_dimension_numbers<[2], [1], [1], [2], [0, 0, 0, 1, 1, 2], [0], [0]>} : vector<2x8x8xbf16>, vector<2x8x4xbf16>, vector<2x8x4xf32> -> vector<2x8x4xf32>
    "tpu.trace_stop"() : () -> ()
    %119 = tpu.concatenate %61, %80, %99, %118 in 2 : vector<2x8x4xf32>, vector<2x8x4xf32>, vector<2x8x4xf32>, vector<2x8x4xf32> -> vector<2x8x16xf32>
    %c32 = arith.constant 32 : index
    %c0_42 = arith.constant 0 : index
    %120 = vector.load %arg1[%c32, %c0_42] : memref<1520x128xbf16, #tpu.memory_space<vmem>>, vector<16x16xbf16>
    %121 = arith.truncf %119 : vector<2x8x16xf32> to vector<2x8x16xbf16>
    "tpu.trace_start"() <{level = 10 : i32, message = "bsk,kn->bsn"}> : () -> ()
    %cst_43 = arith.constant dense<0.000000e+00> : vector<2x8x16xf32>
    %122 = tpu.matmul %121, %120, %cst_43 {dimension_numbers = #tpu.dot_dimension_numbers<[2], [0], [0, 1], [1], [0, 0, 0, 1, 1, 1], [], []>} : vector<2x8x16xbf16>, vector<16x16xbf16>, vector<2x8x16xf32> -> vector<2x8x16xf32>
    "tpu.trace_stop"() : () -> ()
    %c2 = arith.constant 2 : index
    %c0_44 = arith.constant 0 : index
    %123 = vector.load %arg2[%c2, %c0_44] : memref<40x128xf32, #tpu.memory_space<vmem>>, vector<1x16xf32>
    %124 = vector.shape_cast %123 : vector<1x16xf32> to vector<1x1x16xf32>
    %125 = vector.broadcast %124 : vector<1x1x16xf32> to vector<2x8x16xf32>
    %126 = arith.addf %122, %125 : vector<2x8x16xf32>
    %c3 = arith.constant 3 : index
    %c0_45 = arith.constant 0 : index
    %127 = vector.load %arg2[%c3, %c0_45] : memref<40x128xf32, #tpu.memory_space<vmem>>, vector<1x16xf32>
    %c4 = arith.constant 4 : index
    %c0_46 = arith.constant 0 : index
    %128 = vector.load %arg2[%c4, %c0_46] : memref<40x128xf32, #tpu.memory_space<vmem>>, vector<1x16xf32>
    %129 = arith.addf %32, %126 : vector<2x8x16xf32>
    %cst_47 = arith.constant dense<0.000000e+00> : vector<2x8xf32>
    %130 = vector.multi_reduction <add>, %129, %cst_47 [2] : vector<2x8x16xf32> to vector<2x8xf32>
    %131 = vector.shape_cast %130 : vector<2x8xf32> to vector<2x8x1xf32>
    %cst_48 = arith.constant 1.600000e+01 : f32
    %132 = vector.broadcast %cst_48 : f32 to vector<2x8x1xf32>
    %133 = arith.divf %131, %132 : vector<2x8x1xf32>
    %134 = vector.broadcast %133 : vector<2x8x1xf32> to vector<2x8x16xf32>
    %135 = arith.subf %129, %134 : vector<2x8x16xf32>
    %136 = arith.mulf %135, %135 : vector<2x8x16xf32>
    %cst_49 = arith.constant dense<0.000000e+00> : vector<2x8xf32>
    %137 = vector.multi_reduction <add>, %136, %cst_49 [2] : vector<2x8x16xf32> to vector<2x8xf32>
    %138 = vector.shape_cast %137 : vector<2x8xf32> to vector<2x8x1xf32>
    %cst_50 = arith.constant 1.600000e+01 : f32
    %139 = vector.broadcast %cst_50 : f32 to vector<2x8x1xf32>
    %140 = arith.divf %138, %139 : vector<2x8x1xf32>
    %141 = vector.broadcast %133 : vector<2x8x1xf32> to vector<2x8x16xf32>
    %142 = arith.subf %129, %141 : vector<2x8x16xf32>
    %cst_51 = arith.constant 9.99999974E-6 : f32
    %143 = vector.broadcast %cst_51 : f32 to vector<2x8x1xf32>
    %144 = arith.addf %140, %143 : vector<2x8x1xf32>
    %145 = math.rsqrt %144 : vector<2x8x1xf32>
    %146 = vector.broadcast %145 : vector<2x8x1xf32> to vector<2x8x16xf32>
    %147 = arith.mulf %142, %146 : vector<2x8x16xf32>
    %148 = vector.shape_cast %127 : vector<1x16xf32> to vector<1x1x16xf32>
    %149 = vector.broadcast %148 : vector<1x1x16xf32> to vector<2x8x16xf32>
    %150 = arith.mulf %147, %149 : vector<2x8x16xf32>
    %151 = vector.shape_cast %128 : vector<1x16xf32> to vector<1x1x16xf32>
    %152 = vector.broadcast %151 : vector<1x1x16xf32> to vector<2x8x16xf32>
    %153 = arith.addf %150, %152 : vector<2x8x16xf32>
    %c48 = arith.constant 48 : index
    %c0_52 = arith.constant 0 : index
    %154 = vector.load %arg1[%c48, %c0_52] : memref<1520x128xbf16, #tpu.memory_space<vmem>>, vector<16x64xbf16>
    %155 = arith.truncf %153 : vector<2x8x16xf32> to vector<2x8x16xbf16>
    "tpu.trace_start"() <{level = 10 : i32, message = "bsk,kn->bsn"}> : () -> ()
    %cst_53 = arith.constant dense<0.000000e+00> : vector<2x8x64xf32>
    %156 = tpu.matmul %155, %154, %cst_53 {dimension_numbers = #tpu.dot_dimension_numbers<[2], [0], [0, 1], [1], [0, 0, 0, 1, 1, 1], [], []>} : vector<2x8x16xbf16>, vector<16x64xbf16>, vector<2x8x64xf32> -> vector<2x8x64xf32>
    "tpu.trace_stop"() : () -> ()
    %c5 = arith.constant 5 : index
    %c0_54 = arith.constant 0 : index
    %157 = vector.load %arg2[%c5, %c0_54] : memref<40x128xf32, #tpu.memory_space<vmem>>, vector<1x64xf32>
    %158 = vector.shape_cast %157 : vector<1x64xf32> to vector<1x1x64xf32>
    %159 = vector.broadcast %158 : vector<1x1x64xf32> to vector<2x8x64xf32>
    %160 = arith.addf %156, %159 : vector<2x8x64xf32>
    %cst_55 = arith.constant 0.000000e+00 : f32
    %161 = vector.broadcast %cst_55 : f32 to vector<2x8x64xf32>
    %162 = arith.maximumf %160, %161 : vector<2x8x64xf32>
    %c64 = arith.constant 64 : index
    %c0_56 = arith.constant 0 : index
    %163 = vector.load %arg1[%c64, %c0_56] : memref<1520x128xbf16, #tpu.memory_space<vmem>>, vector<64x16xbf16>
    %164 = arith.truncf %162 : vector<2x8x64xf32> to vector<2x8x64xbf16>
    "tpu.trace_start"() <{level = 10 : i32, message = "bsk,kn->bsn"}> : () -> ()
    %cst_57 = arith.constant dense<0.000000e+00> : vector<2x8x16xf32>
    %165 = tpu.matmul %164, %163, %cst_57 {dimension_numbers = #tpu.dot_dimension_numbers<[2], [0], [0, 1], [1], [0, 0, 0, 1, 1, 1], [], []>} : vector<2x8x64xbf16>, vector<64x16xbf16>, vector<2x8x16xf32> -> vector<2x8x16xf32>
    "tpu.trace_stop"() : () -> ()
    %c6_58 = arith.constant 6 : index
    %c0_59 = arith.constant 0 : index
    %166 = vector.load %arg2[%c6_58, %c0_59] : memref<40x128xf32, #tpu.memory_space<vmem>>, vector<1x16xf32>
    %167 = vector.shape_cast %166 : vector<1x16xf32> to vector<1x1x16xf32>
    %168 = vector.broadcast %167 : vector<1x1x16xf32> to vector<2x8x16xf32>
    %169 = arith.addf %165, %168 : vector<2x8x16xf32>
    %c7 = arith.constant 7 : index
    %c0_60 = arith.constant 0 : index
    %170 = vector.load %arg2[%c7, %c0_60] : memref<40x128xf32, #tpu.memory_space<vmem>>, vector<1x16xf32>
    %c8 = arith.constant 8 : index
    %c0_61 = arith.constant 0 : index
    %171 = vector.load %arg2[%c8, %c0_61] : memref<40x128xf32, #tpu.memory_space<vmem>>, vector<1x16xf32>
    %172 = arith.addf %153, %169 : vector<2x8x16xf32>
    %cst_62 = arith.constant dense<0.000000e+00> : vector<2x8xf32>
    %173 = vector.multi_reduction <add>, %172, %cst_62 [2] : vector<2x8x16xf32> to vector<2x8xf32>
    %174 = vector.shape_cast %173 : vector<2x8xf32> to vector<2x8x1xf32>
    %cst_63 = arith.constant 1.600000e+01 : f32
    %175 = vector.broadcast %cst_63 : f32 to vector<2x8x1xf32>
    %176 = arith.divf %174, %175 : vector<2x8x1xf32>
    %177 = vector.broadcast %176 : vector<2x8x1xf32> to vector<2x8x16xf32>
    %178 = arith.subf %172, %177 : vector<2x8x16xf32>
    %179 = arith.mulf %178, %178 : vector<2x8x16xf32>
    %cst_64 = arith.constant dense<0.000000e+00> : vector<2x8xf32>
    %180 = vector.multi_reduction <add>, %179, %cst_64 [2] : vector<2x8x16xf32> to vector<2x8xf32>
    %181 = vector.shape_cast %180 : vector<2x8xf32> to vector<2x8x1xf32>
    %cst_65 = arith.constant 1.600000e+01 : f32
    %182 = vector.broadcast %cst_65 : f32 to vector<2x8x1xf32>
    %183 = arith.divf %181, %182 : vector<2x8x1xf32>
    %184 = vector.broadcast %176 : vector<2x8x1xf32> to vector<2x8x16xf32>
    %185 = arith.subf %172, %184 : vector<2x8x16xf32>
    %cst_66 = arith.constant 9.99999974E-6 : f32
    %186 = vector.broadcast %cst_66 : f32 to vector<2x8x1xf32>
    %187 = arith.addf %183, %186 : vector<2x8x1xf32>
    %188 = math.rsqrt %187 : vector<2x8x1xf32>
    %189 = vector.broadcast %188 : vector<2x8x1xf32> to vector<2x8x16xf32>
    %190 = arith.mulf %185, %189 : vector<2x8x16xf32>
    %191 = vector.shape_cast %170 : vector<1x16xf32> to vector<1x1x16xf32>
    %192 = vector.broadcast %191 : vector<1x1x16xf32> to vector<2x8x16xf32>
    %193 = arith.mulf %190, %192 : vector<2x8x16xf32>
    %194 = vector.shape_cast %171 : vector<1x16xf32> to vector<1x1x16xf32>
    %195 = vector.broadcast %194 : vector<1x1x16xf32> to vector<2x8x16xf32>
    %196 = arith.addf %193, %195 : vector<2x8x16xf32>
    %c128 = arith.constant 128 : index
    %c0_67 = arith.constant 0 : index
    %197 = vector.load %arg1[%c128, %c0_67] : memref<1520x128xbf16, #tpu.memory_space<vmem>>, vector<16x48xbf16>
    %198 = arith.truncf %196 : vector<2x8x16xf32> to vector<2x8x16xbf16>
    "tpu.trace_start"() <{level = 10 : i32, message = "bsk,kn->bsn"}> : () -> ()
    %cst_68 = arith.constant dense<0.000000e+00> : vector<2x8x48xf32>
    %199 = tpu.matmul %198, %197, %cst_68 {dimension_numbers = #tpu.dot_dimension_numbers<[2], [0], [0, 1], [1], [0, 0, 0, 1, 1, 1], [], []>} : vector<2x8x16xbf16>, vector<16x48xbf16>, vector<2x8x48xf32> -> vector<2x8x48xf32>
    "tpu.trace_stop"() : () -> ()
    %c9 = arith.constant 9 : index
    %c0_69 = arith.constant 0 : index
    %200 = vector.load %arg2[%c9, %c0_69] : memref<40x128xf32, #tpu.memory_space<vmem>>, vector<1x48xf32>
    %201 = vector.shape_cast %200 : vector<1x48xf32> to vector<1x1x48xf32>
    %202 = vector.broadcast %201 : vector<1x1x48xf32> to vector<2x8x48xf32>
    %203 = arith.addf %199, %202 : vector<2x8x48xf32>
    %204 = vector.extract_strided_slice %203 {offsets = [0, 0, 0], sizes = [2, 8, 16], strides = [1, 1, 1]} : vector<2x8x48xf32> to vector<2x8x16xf32>
    %205 = vector.extract_strided_slice %203 {offsets = [0, 0, 16], sizes = [2, 8, 16], strides = [1, 1, 1]} : vector<2x8x48xf32> to vector<2x8x16xf32>
    %206 = vector.extract_strided_slice %203 {offsets = [0, 0, 32], sizes = [2, 8, 16], strides = [1, 1, 1]} : vector<2x8x48xf32> to vector<2x8x16xf32>
    %207 = vector.extract_strided_slice %204 {offsets = [0, 0, 0], sizes = [2, 8, 4], strides = [1, 1, 1]} : vector<2x8x16xf32> to vector<2x8x4xf32>
    %208 = vector.extract_strided_slice %205 {offsets = [0, 0, 0], sizes = [2, 8, 4], strides = [1, 1, 1]} : vector<2x8x16xf32> to vector<2x8x4xf32>
    %209 = vector.extract_strided_slice %206 {offsets = [0, 0, 0], sizes = [2, 8, 4], strides = [1, 1, 1]} : vector<2x8x16xf32> to vector<2x8x4xf32>
    %210 = arith.truncf %207 : vector<2x8x4xf32> to vector<2x8x4xbf16>
    %211 = arith.truncf %208 : vector<2x8x4xf32> to vector<2x8x4xbf16>
    "tpu.trace_start"() <{level = 10 : i32, message = "bqd,bkd->bqk"}> : () -> ()
    %cst_70 = arith.constant dense<0.000000e+00> : vector<2x8x8xf32>
    %212 = tpu.matmul %210, %211, %cst_70 {dimension_numbers = #tpu.dot_dimension_numbers<[2], [2], [1], [1], [0, 0, 0, 1, 1, 1], [0], [0]>} : vector<2x8x4xbf16>, vector<2x8x4xbf16>, vector<2x8x8xf32> -> vector<2x8x8xf32>
    "tpu.trace_stop"() : () -> ()
    %cst_71 = arith.constant dense<0xFF800000> : vector<2x8xf32>
    %213 = vector.multi_reduction <maximumf>, %212, %cst_71 [2] : vector<2x8x8xf32> to vector<2x8xf32>
    %214 = vector.shape_cast %213 : vector<2x8xf32> to vector<2x8x1xf32>
    %215 = vector.broadcast %214 : vector<2x8x1xf32> to vector<2x8x8xf32>
    %216 = arith.subf %212, %215 : vector<2x8x8xf32>
    %217 = math.exp %216 : vector<2x8x8xf32>
    %cst_72 = arith.constant dense<0.000000e+00> : vector<2x8xf32>
    %218 = vector.multi_reduction <add>, %217, %cst_72 [2] : vector<2x8x8xf32> to vector<2x8xf32>
    %219 = vector.shape_cast %218 : vector<2x8xf32> to vector<2x8x1xf32>
    %220 = tpu.reciprocal %219 {approx = true} : vector<2x8x1xf32> -> vector<2x8x1xf32>
    %221 = vector.broadcast %220 : vector<2x8x1xf32> to vector<2x8x8xf32>
    %222 = arith.mulf %217, %221 : vector<2x8x8xf32>
    %223 = arith.truncf %222 : vector<2x8x8xf32> to vector<2x8x8xbf16>
    %224 = arith.truncf %209 : vector<2x8x4xf32> to vector<2x8x4xbf16>
    "tpu.trace_start"() <{level = 10 : i32, message = "bqk,bkd->bqd"}> : () -> ()
    %cst_73 = arith.constant dense<0.000000e+00> : vector<2x8x4xf32>
    %225 = tpu.matmul %223, %224, %cst_73 {dimension_numbers = #tpu.dot_dimension_numbers<[2], [1], [1], [2], [0, 0, 0, 1, 1, 2], [0], [0]>} : vector<2x8x8xbf16>, vector<2x8x4xbf16>, vector<2x8x4xf32> -> vector<2x8x4xf32>
    "tpu.trace_stop"() : () -> ()
    %226 = vector.extract_strided_slice %204 {offsets = [0, 0, 4], sizes = [2, 8, 4], strides = [1, 1, 1]} : vector<2x8x16xf32> to vector<2x8x4xf32>
    %227 = vector.extract_strided_slice %205 {offsets = [0, 0, 4], sizes = [2, 8, 4], strides = [1, 1, 1]} : vector<2x8x16xf32> to vector<2x8x4xf32>
    %228 = vector.extract_strided_slice %206 {offsets = [0, 0, 4], sizes = [2, 8, 4], strides = [1, 1, 1]} : vector<2x8x16xf32> to vector<2x8x4xf32>
    %229 = arith.truncf %226 : vector<2x8x4xf32> to vector<2x8x4xbf16>
    %230 = arith.truncf %227 : vector<2x8x4xf32> to vector<2x8x4xbf16>
    "tpu.trace_start"() <{level = 10 : i32, message = "bqd,bkd->bqk"}> : () -> ()
    %cst_74 = arith.constant dense<0.000000e+00> : vector<2x8x8xf32>
    %231 = tpu.matmul %229, %230, %cst_74 {dimension_numbers = #tpu.dot_dimension_numbers<[2], [2], [1], [1], [0, 0, 0, 1, 1, 1], [0], [0]>} : vector<2x8x4xbf16>, vector<2x8x4xbf16>, vector<2x8x8xf32> -> vector<2x8x8xf32>
    "tpu.trace_stop"() : () -> ()
    %cst_75 = arith.constant dense<0xFF800000> : vector<2x8xf32>
    %232 = vector.multi_reduction <maximumf>, %231, %cst_75 [2] : vector<2x8x8xf32> to vector<2x8xf32>
    %233 = vector.shape_cast %232 : vector<2x8xf32> to vector<2x8x1xf32>
    %234 = vector.broadcast %233 : vector<2x8x1xf32> to vector<2x8x8xf32>
    %235 = arith.subf %231, %234 : vector<2x8x8xf32>
    %236 = math.exp %235 : vector<2x8x8xf32>
    %cst_76 = arith.constant dense<0.000000e+00> : vector<2x8xf32>
    %237 = vector.multi_reduction <add>, %236, %cst_76 [2] : vector<2x8x8xf32> to vector<2x8xf32>
    %238 = vector.shape_cast %237 : vector<2x8xf32> to vector<2x8x1xf32>
    %239 = tpu.reciprocal %238 {approx = true} : vector<2x8x1xf32> -> vector<2x8x1xf32>
    %240 = vector.broadcast %239 : vector<2x8x1xf32> to vector<2x8x8xf32>
    %241 = arith.mulf %236, %240 : vector<2x8x8xf32>
    %242 = arith.truncf %241 : vector<2x8x8xf32> to vector<2x8x8xbf16>
    %243 = arith.truncf %228 : vector<2x8x4xf32> to vector<2x8x4xbf16>
    "tpu.trace_start"() <{level = 10 : i32, message = "bqk,bkd->bqd"}> : () -> ()
    %cst_77 = arith.constant dense<0.000000e+00> : vector<2x8x4xf32>
    %244 = tpu.matmul %242, %243, %cst_77 {dimension_numbers = #tpu.dot_dimension_numbers<[2], [1], [1], [2], [0, 0, 0, 1, 1, 2], [0], [0]>} : vector<2x8x8xbf16>, vector<2x8x4xbf16>, vector<2x8x4xf32> -> vector<2x8x4xf32>
    "tpu.trace_stop"() : () -> ()
    %245 = vector.extract_strided_slice %204 {offsets = [0, 0, 8], sizes = [2, 8, 4], strides = [1, 1, 1]} : vector<2x8x16xf32> to vector<2x8x4xf32>
    %246 = vector.extract_strided_slice %205 {offsets = [0, 0, 8], sizes = [2, 8, 4], strides = [1, 1, 1]} : vector<2x8x16xf32> to vector<2x8x4xf32>
    %247 = vector.extract_strided_slice %206 {offsets = [0, 0, 8], sizes = [2, 8, 4], strides = [1, 1, 1]} : vector<2x8x16xf32> to vector<2x8x4xf32>
    %248 = arith.truncf %245 : vector<2x8x4xf32> to vector<2x8x4xbf16>
    %249 = arith.truncf %246 : vector<2x8x4xf32> to vector<2x8x4xbf16>
    "tpu.trace_start"() <{level = 10 : i32, message = "bqd,bkd->bqk"}> : () -> ()
    %cst_78 = arith.constant dense<0.000000e+00> : vector<2x8x8xf32>
    %250 = tpu.matmul %248, %249, %cst_78 {dimension_numbers = #tpu.dot_dimension_numbers<[2], [2], [1], [1], [0, 0, 0, 1, 1, 1], [0], [0]>} : vector<2x8x4xbf16>, vector<2x8x4xbf16>, vector<2x8x8xf32> -> vector<2x8x8xf32>
    "tpu.trace_stop"() : () -> ()
    %cst_79 = arith.constant dense<0xFF800000> : vector<2x8xf32>
    %251 = vector.multi_reduction <maximumf>, %250, %cst_79 [2] : vector<2x8x8xf32> to vector<2x8xf32>
    %252 = vector.shape_cast %251 : vector<2x8xf32> to vector<2x8x1xf32>
    %253 = vector.broadcast %252 : vector<2x8x1xf32> to vector<2x8x8xf32>
    %254 = arith.subf %250, %253 : vector<2x8x8xf32>
    %255 = math.exp %254 : vector<2x8x8xf32>
    %cst_80 = arith.constant dense<0.000000e+00> : vector<2x8xf32>
    %256 = vector.multi_reduction <add>, %255, %cst_80 [2] : vector<2x8x8xf32> to vector<2x8xf32>
    %257 = vector.shape_cast %256 : vector<2x8xf32> to vector<2x8x1xf32>
    %258 = tpu.reciprocal %257 {approx = true} : vector<2x8x1xf32> -> vector<2x8x1xf32>
    %259 = vector.broadcast %258 : vector<2x8x1xf32> to vector<2x8x8xf32>
    %260 = arith.mulf %255, %259 : vector<2x8x8xf32>
    %261 = arith.truncf %260 : vector<2x8x8xf32> to vector<2x8x8xbf16>
    %262 = arith.truncf %247 : vector<2x8x4xf32> to vector<2x8x4xbf16>
    "tpu.trace_start"() <{level = 10 : i32, message = "bqk,bkd->bqd"}> : () -> ()
    %cst_81 = arith.constant dense<0.000000e+00> : vector<2x8x4xf32>
    %263 = tpu.matmul %261, %262, %cst_81 {dimension_numbers = #tpu.dot_dimension_numbers<[2], [1], [1], [2], [0, 0, 0, 1, 1, 2], [0], [0]>} : vector<2x8x8xbf16>, vector<2x8x4xbf16>, vector<2x8x4xf32> -> vector<2x8x4xf32>
    "tpu.trace_stop"() : () -> ()
    %264 = vector.extract_strided_slice %204 {offsets = [0, 0, 12], sizes = [2, 8, 4], strides = [1, 1, 1]} : vector<2x8x16xf32> to vector<2x8x4xf32>
    %265 = vector.extract_strided_slice %205 {offsets = [0, 0, 12], sizes = [2, 8, 4], strides = [1, 1, 1]} : vector<2x8x16xf32> to vector<2x8x4xf32>
    %266 = vector.extract_strided_slice %206 {offsets = [0, 0, 12], sizes = [2, 8, 4], strides = [1, 1, 1]} : vector<2x8x16xf32> to vector<2x8x4xf32>
    %267 = arith.truncf %264 : vector<2x8x4xf32> to vector<2x8x4xbf16>
    %268 = arith.truncf %265 : vector<2x8x4xf32> to vector<2x8x4xbf16>
    "tpu.trace_start"() <{level = 10 : i32, message = "bqd,bkd->bqk"}> : () -> ()
    %cst_82 = arith.constant dense<0.000000e+00> : vector<2x8x8xf32>
    %269 = tpu.matmul %267, %268, %cst_82 {dimension_numbers = #tpu.dot_dimension_numbers<[2], [2], [1], [1], [0, 0, 0, 1, 1, 1], [0], [0]>} : vector<2x8x4xbf16>, vector<2x8x4xbf16>, vector<2x8x8xf32> -> vector<2x8x8xf32>
    "tpu.trace_stop"() : () -> ()
    %cst_83 = arith.constant dense<0xFF800000> : vector<2x8xf32>
    %270 = vector.multi_reduction <maximumf>, %269, %cst_83 [2] : vector<2x8x8xf32> to vector<2x8xf32>
    %271 = vector.shape_cast %270 : vector<2x8xf32> to vector<2x8x1xf32>
    %272 = vector.broadcast %271 : vector<2x8x1xf32> to vector<2x8x8xf32>
    %273 = arith.subf %269, %272 : vector<2x8x8xf32>
    %274 = math.exp %273 : vector<2x8x8xf32>
    %cst_84 = arith.constant dense<0.000000e+00> : vector<2x8xf32>
    %275 = vector.multi_reduction <add>, %274, %cst_84 [2] : vector<2x8x8xf32> to vector<2x8xf32>
    %276 = vector.shape_cast %275 : vector<2x8xf32> to vector<2x8x1xf32>
    %277 = tpu.reciprocal %276 {approx = true} : vector<2x8x1xf32> -> vector<2x8x1xf32>
    %278 = vector.broadcast %277 : vector<2x8x1xf32> to vector<2x8x8xf32>
    %279 = arith.mulf %274, %278 : vector<2x8x8xf32>
    %280 = arith.truncf %279 : vector<2x8x8xf32> to vector<2x8x8xbf16>
    %281 = arith.truncf %266 : vector<2x8x4xf32> to vector<2x8x4xbf16>
    "tpu.trace_start"() <{level = 10 : i32, message = "bqk,bkd->bqd"}> : () -> ()
    %cst_85 = arith.constant dense<0.000000e+00> : vector<2x8x4xf32>
    %282 = tpu.matmul %280, %281, %cst_85 {dimension_numbers = #tpu.dot_dimension_numbers<[2], [1], [1], [2], [0, 0, 0, 1, 1, 2], [0], [0]>} : vector<2x8x8xbf16>, vector<2x8x4xbf16>, vector<2x8x4xf32> -> vector<2x8x4xf32>
    "tpu.trace_stop"() : () -> ()
    %283 = tpu.concatenate %225, %244, %263, %282 in 2 : vector<2x8x4xf32>, vector<2x8x4xf32>, vector<2x8x4xf32>, vector<2x8x4xf32> -> vector<2x8x16xf32>
    %c144 = arith.constant 144 : index
    %c0_86 = arith.constant 0 : index
    %284 = vector.load %arg1[%c144, %c0_86] : memref<1520x128xbf16, #tpu.memory_space<vmem>>, vector<16x16xbf16>
    %285 = arith.truncf %283 : vector<2x8x16xf32> to vector<2x8x16xbf16>
    "tpu.trace_start"() <{level = 10 : i32, message = "bsk,kn->bsn"}> : () -> ()
    %cst_87 = arith.constant dense<0.000000e+00> : vector<2x8x16xf32>
    %286 = tpu.matmul %285, %284, %cst_87 {dimension_numbers = #tpu.dot_dimension_numbers<[2], [0], [0, 1], [1], [0, 0, 0, 1, 1, 1], [], []>} : vector<2x8x16xbf16>, vector<16x16xbf16>, vector<2x8x16xf32> -> vector<2x8x16xf32>
    "tpu.trace_stop"() : () -> ()
    %c10 = arith.constant 10 : index
    %c0_88 = arith.constant 0 : index
    %287 = vector.load %arg2[%c10, %c0_88] : memref<40x128xf32, #tpu.memory_space<vmem>>, vector<1x16xf32>
    %288 = vector.shape_cast %287 : vector<1x16xf32> to vector<1x1x16xf32>
    %289 = vector.broadcast %288 : vector<1x1x16xf32> to vector<2x8x16xf32>
    %290 = arith.addf %286, %289 : vector<2x8x16xf32>
    %c11 = arith.constant 11 : index
    %c0_89 = arith.constant 0 : index
    %291 = vector.load %arg2[%c11, %c0_89] : memref<40x128xf32, #tpu.memory_space<vmem>>, vector<1x16xf32>
    %c12 = arith.constant 12 : index
    %c0_90 = arith.constant 0 : index
    %292 = vector.load %arg2[%c12, %c0_90] : memref<40x128xf32, #tpu.memory_space<vmem>>, vector<1x16xf32>
    %293 = arith.addf %196, %290 : vector<2x8x16xf32>
    %cst_91 = arith.constant dense<0.000000e+00> : vector<2x8xf32>
    %294 = vector.multi_reduction <add>, %293, %cst_91 [2] : vector<2x8x16xf32> to vector<2x8xf32>
    %295 = vector.shape_cast %294 : vector<2x8xf32> to vector<2x8x1xf32>
    %cst_92 = arith.constant 1.600000e+01 : f32
    %296 = vector.broadcast %cst_92 : f32 to vector<2x8x1xf32>
    %297 = arith.divf %295, %296 : vector<2x8x1xf32>
    %298 = vector.broadcast %297 : vector<2x8x1xf32> to vector<2x8x16xf32>
    %299 = arith.subf %293, %298 : vector<2x8x16xf32>
    %300 = arith.mulf %299, %299 : vector<2x8x16xf32>
    %cst_93 = arith.constant dense<0.000000e+00> : vector<2x8xf32>
    %301 = vector.multi_reduction <add>, %300, %cst_93 [2] : vector<2x8x16xf32> to vector<2x8xf32>
    %302 = vector.shape_cast %301 : vector<2x8xf32> to vector<2x8x1xf32>
    %cst_94 = arith.constant 1.600000e+01 : f32
    %303 = vector.broadcast %cst_94 : f32 to vector<2x8x1xf32>
    %304 = arith.divf %302, %303 : vector<2x8x1xf32>
    %305 = vector.broadcast %297 : vector<2x8x1xf32> to vector<2x8x16xf32>
    %306 = arith.subf %293, %305 : vector<2x8x16xf32>
    %cst_95 = arith.constant 9.99999974E-6 : f32
    %307 = vector.broadcast %cst_95 : f32 to vector<2x8x1xf32>
    %308 = arith.addf %304, %307 : vector<2x8x1xf32>
    %309 = math.rsqrt %308 : vector<2x8x1xf32>
    %310 = vector.broadcast %309 : vector<2x8x1xf32> to vector<2x8x16xf32>
    %311 = arith.mulf %306, %310 : vector<2x8x16xf32>
    %312 = vector.shape_cast %291 : vector<1x16xf32> to vector<1x1x16xf32>
    %313 = vector.broadcast %312 : vector<1x1x16xf32> to vector<2x8x16xf32>
    %314 = arith.mulf %311, %313 : vector<2x8x16xf32>
    %315 = vector.shape_cast %292 : vector<1x16xf32> to vector<1x1x16xf32>
    %316 = vector.broadcast %315 : vector<1x1x16xf32> to vector<2x8x16xf32>
    %317 = arith.addf %314, %316 : vector<2x8x16xf32>
    %c160 = arith.constant 160 : index
    %c0_96 = arith.constant 0 : index
    %318 = vector.load %arg1[%c160, %c0_96] : memref<1520x128xbf16, #tpu.memory_space<vmem>>, vector<16x64xbf16>
    %319 = arith.truncf %317 : vector<2x8x16xf32> to vector<2x8x16xbf16>
    "tpu.trace_start"() <{level = 10 : i32, message = "bsk,kn->bsn"}> : () -> ()
    %cst_97 = arith.constant dense<0.000000e+00> : vector<2x8x64xf32>
    %320 = tpu.matmul %319, %318, %cst_97 {dimension_numbers = #tpu.dot_dimension_numbers<[2], [0], [0, 1], [1], [0, 0, 0, 1, 1, 1], [], []>} : vector<2x8x16xbf16>, vector<16x64xbf16>, vector<2x8x64xf32> -> vector<2x8x64xf32>
    "tpu.trace_stop"() : () -> ()
    %c13 = arith.constant 13 : index
    %c0_98 = arith.constant 0 : index
    %321 = vector.load %arg2[%c13, %c0_98] : memref<40x128xf32, #tpu.memory_space<vmem>>, vector<1x64xf32>
    %322 = vector.shape_cast %321 : vector<1x64xf32> to vector<1x1x64xf32>
    %323 = vector.broadcast %322 : vector<1x1x64xf32> to vector<2x8x64xf32>
    %324 = arith.addf %320, %323 : vector<2x8x64xf32>
    %cst_99 = arith.constant 0.000000e+00 : f32
    %325 = vector.broadcast %cst_99 : f32 to vector<2x8x64xf32>
    %326 = arith.maximumf %324, %325 : vector<2x8x64xf32>
    %c176 = arith.constant 176 : index
    %c0_100 = arith.constant 0 : index
    %327 = vector.load %arg1[%c176, %c0_100] : memref<1520x128xbf16, #tpu.memory_space<vmem>>, vector<64x16xbf16>
    %328 = arith.truncf %326 : vector<2x8x64xf32> to vector<2x8x64xbf16>
    "tpu.trace_start"() <{level = 10 : i32, message = "bsk,kn->bsn"}> : () -> ()
    %cst_101 = arith.constant dense<0.000000e+00> : vector<2x8x16xf32>
    %329 = tpu.matmul %328, %327, %cst_101 {dimension_numbers = #tpu.dot_dimension_numbers<[2], [0], [0, 1], [1], [0, 0, 0, 1, 1, 1], [], []>} : vector<2x8x64xbf16>, vector<64x16xbf16>, vector<2x8x16xf32> -> vector<2x8x16xf32>
    "tpu.trace_stop"() : () -> ()
    %c14 = arith.constant 14 : index
    %c0_102 = arith.constant 0 : index
    %330 = vector.load %arg2[%c14, %c0_102] : memref<40x128xf32, #tpu.memory_space<vmem>>, vector<1x16xf32>
    %331 = vector.shape_cast %330 : vector<1x16xf32> to vector<1x1x16xf32>
    %332 = vector.broadcast %331 : vector<1x1x16xf32> to vector<2x8x16xf32>
    %333 = arith.addf %329, %332 : vector<2x8x16xf32>
    %c15 = arith.constant 15 : index
    %c0_103 = arith.constant 0 : index
    %334 = vector.load %arg2[%c15, %c0_103] : memref<40x128xf32, #tpu.memory_space<vmem>>, vector<1x16xf32>
    %c16_104 = arith.constant 16 : index
    %c0_105 = arith.constant 0 : index
    %335 = vector.load %arg2[%c16_104, %c0_105] : memref<40x128xf32, #tpu.memory_space<vmem>>, vector<1x16xf32>
    %336 = arith.addf %317, %333 : vector<2x8x16xf32>
    %cst_106 = arith.constant dense<0.000000e+00> : vector<2x8xf32>
    %337 = vector.multi_reduction <add>, %336, %cst_106 [2] : vector<2x8x16xf32> to vector<2x8xf32>
    %338 = vector.shape_cast %337 : vector<2x8xf32> to vector<2x8x1xf32>
    %cst_107 = arith.constant 1.600000e+01 : f32
    %339 = vector.broadcast %cst_107 : f32 to vector<2x8x1xf32>
    %340 = arith.divf %338, %339 : vector<2x8x1xf32>
    %341 = vector.broadcast %340 : vector<2x8x1xf32> to vector<2x8x16xf32>
    %342 = arith.subf %336, %341 : vector<2x8x16xf32>
    %343 = arith.mulf %342, %342 : vector<2x8x16xf32>
    %cst_108 = arith.constant dense<0.000000e+00> : vector<2x8xf32>
    %344 = vector.multi_reduction <add>, %343, %cst_108 [2] : vector<2x8x16xf32> to vector<2x8xf32>
    %345 = vector.shape_cast %344 : vector<2x8xf32> to vector<2x8x1xf32>
    %cst_109 = arith.constant 1.600000e+01 : f32
    %346 = vector.broadcast %cst_109 : f32 to vector<2x8x1xf32>
    %347 = arith.divf %345, %346 : vector<2x8x1xf32>
    %348 = vector.broadcast %340 : vector<2x8x1xf32> to vector<2x8x16xf32>
    %349 = arith.subf %336, %348 : vector<2x8x16xf32>
    %cst_110 = arith.constant 9.99999974E-6 : f32
    %350 = vector.broadcast %cst_110 : f32 to vector<2x8x1xf32>
    %351 = arith.addf %347, %350 : vector<2x8x1xf32>
    %352 = math.rsqrt %351 : vector<2x8x1xf32>
    %353 = vector.broadcast %352 : vector<2x8x1xf32> to vector<2x8x16xf32>
    %354 = arith.mulf %349, %353 : vector<2x8x16xf32>
    %355 = vector.shape_cast %334 : vector<1x16xf32> to vector<1x1x16xf32>
    %356 = vector.broadcast %355 : vector<1x1x16xf32> to vector<2x8x16xf32>
    %357 = arith.mulf %354, %356 : vector<2x8x16xf32>
    %358 = vector.shape_cast %335 : vector<1x16xf32> to vector<1x1x16xf32>
    %359 = vector.broadcast %358 : vector<1x1x16xf32> to vector<2x8x16xf32>
    %360 = arith.addf %357, %359 : vector<2x8x16xf32>
    %cst_111 = arith.constant 1.000000e-01 : f32
    %361 = vector.broadcast %cst_111 : f32 to vector<2x8x16xf32>
    %362 = arith.mulf %361, %360 : vector<2x8x16xf32>
    %363 = arith.addf %0, %362 : vector<2x8x16xf32>
    %c240 = arith.constant 240 : index
    %c0_112 = arith.constant 0 : index
    %364 = vector.load %arg1[%c240, %c0_112] : memref<1520x128xbf16, #tpu.memory_space<vmem>>, vector<16x32xbf16>
    %365 = arith.truncf %363 : vector<2x8x16xf32> to vector<2x8x16xbf16>
    "tpu.trace_start"() <{level = 10 : i32, message = "bsk,kn->bsn"}> : () -> ()
    %cst_113 = arith.constant dense<0.000000e+00> : vector<2x8x32xf32>
    %366 = tpu.matmul %365, %364, %cst_113 {dimension_numbers = #tpu.dot_dimension_numbers<[2], [0], [0, 1], [1], [0, 0, 0, 1, 1, 1], [], []>} : vector<2x8x16xbf16>, vector<16x32xbf16>, vector<2x8x32xf32> -> vector<2x8x32xf32>
    "tpu.trace_stop"() : () -> ()
    %c17 = arith.constant 17 : index
    %c0_114 = arith.constant 0 : index
    %367 = vector.load %arg2[%c17, %c0_114] : memref<40x128xf32, #tpu.memory_space<vmem>>, vector<1x32xf32>
    %368 = vector.shape_cast %367 : vector<1x32xf32> to vector<1x1x32xf32>
    %369 = vector.broadcast %368 : vector<1x1x32xf32> to vector<2x8x32xf32>
    %370 = arith.addf %366, %369 : vector<2x8x32xf32>
    %c256 = arith.constant 256 : index
    %c0_115 = arith.constant 0 : index
    %371 = vector.load %arg1[%c256, %c0_115] : memref<1520x128xbf16, #tpu.memory_space<vmem>>, vector<96x32xbf16>
    %c18 = arith.constant 18 : index
    %c0_116 = arith.constant 0 : index
    %372 = vector.load %arg2[%c18, %c0_116] : memref<40x128xf32, #tpu.memory_space<vmem>>, vector<1x32xf32>
    %c19 = arith.constant 19 : index
    %c0_117 = arith.constant 0 : index
    %373 = vector.load %arg2[%c19, %c0_117] : memref<40x128xf32, #tpu.memory_space<vmem>>, vector<1x32xf32>
    %c0_118 = arith.constant 0 : index
    %c8_119 = arith.constant 8 : index
    %c0_120 = arith.constant 0 : index
    %374 = vector.load %arg4[%c0_118, %c8_119, %c0_120] : memref<2x24x32xf32, #tpu.memory_space<vmem>>, vector<2x8x32xf32>
    tpu.vector_store %arg4[%c0_118, %c8_119, %c0_120], %370 {strides = array<i32>} : memref<2x24x32xf32, #tpu.memory_space<vmem>>, vector<2x8x32xf32>,
    %c0_121 = arith.constant 0 : index
    %c7_122 = arith.constant 7 : index
    %c0_123 = arith.constant 0 : index
    %375 = vector.load %arg4[%c0_121, %c7_122, %c0_123] : memref<2x24x32xf32, #tpu.memory_space<vmem>>, vector<2x8x32xf32>
    %c0_124 = arith.constant 0 : index
    %c8_125 = arith.constant 8 : index
    %c0_126 = arith.constant 0 : index
    %376 = vector.load %arg4[%c0_124, %c8_125, %c0_126] : memref<2x24x32xf32, #tpu.memory_space<vmem>>, vector<2x8x32xf32>
    %c0_127 = arith.constant 0 : index
    %c9_128 = arith.constant 9 : index
    %c0_129 = arith.constant 0 : index
    %377 = vector.load %arg4[%c0_127, %c9_128, %c0_129] : memref<2x24x32xf32, #tpu.memory_space<vmem>>, vector<2x8x32xf32>
    %378 = tpu.concatenate %375, %376, %377 in 2 : vector<2x8x32xf32>, vector<2x8x32xf32>, vector<2x8x32xf32> -> vector<2x8x96xf32>
    %379 = arith.truncf %378 : vector<2x8x96xf32> to vector<2x8x96xbf16>
    "tpu.trace_start"() <{level = 10 : i32, message = "bsk,kn->bsn"}> : () -> ()
    %cst_130 = arith.constant dense<0.000000e+00> : vector<2x8x32xf32>
    %380 = tpu.matmul %379, %371, %cst_130 {dimension_numbers = #tpu.dot_dimension_numbers<[2], [0], [0, 1], [1], [0, 0, 0, 1, 1, 1], [], []>} : vector<2x8x96xbf16>, vector<96x32xbf16>, vector<2x8x32xf32> -> vector<2x8x32xf32>
    "tpu.trace_stop"() : () -> ()
    %381 = vector.shape_cast %372 : vector<1x32xf32> to vector<1x1x32xf32>
    %382 = vector.broadcast %381 : vector<1x1x32xf32> to vector<2x8x32xf32>
    %383 = arith.mulf %380, %382 : vector<2x8x32xf32>
    %384 = vector.shape_cast %373 : vector<1x32xf32> to vector<1x1x32xf32>
    %385 = vector.broadcast %384 : vector<1x1x32xf32> to vector<2x8x32xf32>
    %386 = arith.addf %383, %385 : vector<2x8x32xf32>
    %cst_131 = arith.constant 1.000000e-01 : f32
    %387 = vector.broadcast %cst_131 : f32 to vector<2x8x32xf32>
    %388 = arith.mulf %387, %386 : vector<2x8x32xf32>
    %389 = arith.maximumf %386, %388 : vector<2x8x32xf32>
    %c352 = arith.constant 352 : index
    %c0_132 = arith.constant 0 : index
    %390 = vector.load %arg1[%c352, %c0_132] : memref<1520x128xbf16, #tpu.memory_space<vmem>>, vector<96x64xbf16>
    %c20 = arith.constant 20 : index
    %c0_133 = arith.constant 0 : index
    %391 = vector.load %arg2[%c20, %c0_133] : memref<40x128xf32, #tpu.memory_space<vmem>>, vector<1x64xf32>
    %c21 = arith.constant 21 : index
    %c0_134 = arith.constant 0 : index
    %392 = vector.load %arg2[%c21, %c0_134] : memref<40x128xf32, #tpu.memory_space<vmem>>, vector<1x64xf32>
    %c0_135 = arith.constant 0 : index
    %c8_136 = arith.constant 8 : index
    %c0_137 = arith.constant 0 : index
    %393 = vector.load %arg4[%c0_135, %c8_136, %c0_137] : memref<2x24x32xf32, #tpu.memory_space<vmem>>, vector<2x8x32xf32>
    tpu.vector_store %arg4[%c0_135, %c8_136, %c0_137], %389 {strides = array<i32>} : memref<2x24x32xf32, #tpu.memory_space<vmem>>, vector<2x8x32xf32>,
    %c0_138 = arith.constant 0 : index
    %c7_139 = arith.constant 7 : index
    %c0_140 = arith.constant 0 : index
    %394 = vector.load %arg4[%c0_138, %c7_139, %c0_140] : memref<2x24x32xf32, #tpu.memory_space<vmem>>, vector<2x8x32xf32>
    %c0_141 = arith.constant 0 : index
    %c8_142 = arith.constant 8 : index
    %c0_143 = arith.constant 0 : index
    %395 = vector.load %arg4[%c0_141, %c8_142, %c0_143] : memref<2x24x32xf32, #tpu.memory_space<vmem>>, vector<2x8x32xf32>
    %c0_144 = arith.constant 0 : index
    %c9_145 = arith.constant 9 : index
    %c0_146 = arith.constant 0 : index
    %396 = vector.load %arg4[%c0_144, %c9_145, %c0_146] : memref<2x24x32xf32, #tpu.memory_space<vmem>>, vector<2x8x32xf32>
    %397 = tpu.concatenate %394, %395, %396 in 2 : vector<2x8x32xf32>, vector<2x8x32xf32>, vector<2x8x32xf32> -> vector<2x8x96xf32>
    %398 = arith.truncf %397 : vector<2x8x96xf32> to vector<2x8x96xbf16>
    "tpu.trace_start"() <{level = 10 : i32, message = "bsk,kn->bsn"}> : () -> ()
    %cst_147 = arith.constant dense<0.000000e+00> : vector<2x8x64xf32>
    %399 = tpu.matmul %398, %390, %cst_147 {dimension_numbers = #tpu.dot_dimension_numbers<[2], [0], [0, 1], [1], [0, 0, 0, 1, 1, 1], [], []>} : vector<2x8x96xbf16>, vector<96x64xbf16>, vector<2x8x64xf32> -> vector<2x8x64xf32>
    "tpu.trace_stop"() : () -> ()
    %400 = vector.shape_cast %391 : vector<1x64xf32> to vector<1x1x64xf32>
    %401 = vector.broadcast %400 : vector<1x1x64xf32> to vector<2x8x64xf32>
    %402 = arith.mulf %399, %401 : vector<2x8x64xf32>
    %403 = vector.shape_cast %392 : vector<1x64xf32> to vector<1x1x64xf32>
    %404 = vector.broadcast %403 : vector<1x1x64xf32> to vector<2x8x64xf32>
    %405 = arith.addf %402, %404 : vector<2x8x64xf32>
    %cst_148 = arith.constant 1.000000e-01 : f32
    %406 = vector.broadcast %cst_148 : f32 to vector<2x8x64xf32>
    %407 = arith.mulf %406, %405 : vector<2x8x64xf32>
    %408 = arith.maximumf %405, %407 : vector<2x8x64xf32>
    %c448 = arith.constant 448 : index
    %c0_149 = arith.constant 0 : index
    %409 = vector.load %arg1[%c448, %c0_149] : memref<1520x128xbf16, #tpu.memory_space<vmem>>, vector<320x64xbf16>
    %c22 = arith.constant 22 : index
    %c0_150 = arith.constant 0 : index
    %410 = vector.load %arg2[%c22, %c0_150] : memref<40x128xf32, #tpu.memory_space<vmem>>, vector<1x64xf32>
    %c23 = arith.constant 23 : index
    %c0_151 = arith.constant 0 : index
    %411 = vector.load %arg2[%c23, %c0_151] : memref<40x128xf32, #tpu.memory_space<vmem>>, vector<1x64xf32>
    %c0_152 = arith.constant 0 : index
    %c8_153 = arith.constant 8 : index
    %c0_154 = arith.constant 0 : index
    %412 = vector.load %arg5[%c0_152, %c8_153, %c0_154] : memref<2x24x64xf32, #tpu.memory_space<vmem>>, vector<2x8x64xf32>
    tpu.vector_store %arg5[%c0_152, %c8_153, %c0_154], %408 {strides = array<i32>} : memref<2x24x64xf32, #tpu.memory_space<vmem>>, vector<2x8x64xf32>,
    %c0_155 = arith.constant 0 : index
    %c6_156 = arith.constant 6 : index
    %c0_157 = arith.constant 0 : index
    %413 = vector.load %arg5[%c0_155, %c6_156, %c0_157] : memref<2x24x64xf32, #tpu.memory_space<vmem>>, vector<2x8x64xf32>
    %c0_158 = arith.constant 0 : index
    %c7_159 = arith.constant 7 : index
    %c0_160 = arith.constant 0 : index
    %414 = vector.load %arg5[%c0_158, %c7_159, %c0_160] : memref<2x24x64xf32, #tpu.memory_space<vmem>>, vector<2x8x64xf32>
    %c0_161 = arith.constant 0 : index
    %c8_162 = arith.constant 8 : index
    %c0_163 = arith.constant 0 : index
    %415 = vector.load %arg5[%c0_161, %c8_162, %c0_163] : memref<2x24x64xf32, #tpu.memory_space<vmem>>, vector<2x8x64xf32>
    %c0_164 = arith.constant 0 : index
    %c9_165 = arith.constant 9 : index
    %c0_166 = arith.constant 0 : index
    %416 = vector.load %arg5[%c0_164, %c9_165, %c0_166] : memref<2x24x64xf32, #tpu.memory_space<vmem>>, vector<2x8x64xf32>
    %c0_167 = arith.constant 0 : index
    %c10_168 = arith.constant 10 : index
    %c0_169 = arith.constant 0 : index
    %417 = vector.load %arg5[%c0_167, %c10_168, %c0_169] : memref<2x24x64xf32, #tpu.memory_space<vmem>>, vector<2x8x64xf32>
    %418 = tpu.concatenate %413, %414, %415, %416, %417 in 2 : vector<2x8x64xf32>, vector<2x8x64xf32>, vector<2x8x64xf32>, vector<2x8x64xf32>, vector<2x8x64xf32> -> vector<2x8x320xf32>
    %419 = arith.truncf %418 : vector<2x8x320xf32> to vector<2x8x320xbf16>
    "tpu.trace_start"() <{level = 10 : i32, message = "bsk,kn->bsn"}> : () -> ()
    %cst_170 = arith.constant dense<0.000000e+00> : vector<2x8x64xf32>
    %420 = tpu.matmul %419, %409, %cst_170 {dimension_numbers = #tpu.dot_dimension_numbers<[2], [0], [0, 1], [1], [0, 0, 0, 1, 1, 1], [], []>} : vector<2x8x320xbf16>, vector<320x64xbf16>, vector<2x8x64xf32> -> vector<2x8x64xf32>
    "tpu.trace_stop"() : () -> ()
    %421 = vector.shape_cast %410 : vector<1x64xf32> to vector<1x1x64xf32>
    %422 = vector.broadcast %421 : vector<1x1x64xf32> to vector<2x8x64xf32>
    %423 = arith.mulf %420, %422 : vector<2x8x64xf32>
    %424 = vector.shape_cast %411 : vector<1x64xf32> to vector<1x1x64xf32>
    %425 = vector.broadcast %424 : vector<1x1x64xf32> to vector<2x8x64xf32>
    %426 = arith.addf %423, %425 : vector<2x8x64xf32>
    %cst_171 = arith.constant 1.000000e-01 : f32
    %427 = vector.broadcast %cst_171 : f32 to vector<2x8x64xf32>
    %428 = arith.mulf %427, %426 : vector<2x8x64xf32>
    %429 = arith.maximumf %426, %428 : vector<2x8x64xf32>
    %c768 = arith.constant 768 : index
    %c0_172 = arith.constant 0 : index
    %430 = vector.load %arg1[%c768, %c0_172] : memref<1520x128xbf16, #tpu.memory_space<vmem>>, vector<192x64xbf16>
    %c24 = arith.constant 24 : index
    %c0_173 = arith.constant 0 : index
    %431 = vector.load %arg2[%c24, %c0_173] : memref<40x128xf32, #tpu.memory_space<vmem>>, vector<1x64xf32>
    %c25 = arith.constant 25 : index
    %c0_174 = arith.constant 0 : index
    %432 = vector.load %arg2[%c25, %c0_174] : memref<40x128xf32, #tpu.memory_space<vmem>>, vector<1x64xf32>
    %c0_175 = arith.constant 0 : index
    %c8_176 = arith.constant 8 : index
    %c0_177 = arith.constant 0 : index
    %433 = vector.load %arg5[%c0_175, %c8_176, %c0_177] : memref<2x24x64xf32, #tpu.memory_space<vmem>>, vector<2x8x64xf32>
    tpu.vector_store %arg5[%c0_175, %c8_176, %c0_177], %429 {strides = array<i32>} : memref<2x24x64xf32, #tpu.memory_space<vmem>>, vector<2x8x64xf32>,
    %c0_178 = arith.constant 0 : index
    %c7_179 = arith.constant 7 : index
    %c0_180 = arith.constant 0 : index
    %434 = vector.load %arg5[%c0_178, %c7_179, %c0_180] : memref<2x24x64xf32, #tpu.memory_space<vmem>>, vector<2x8x64xf32>
    %c0_181 = arith.constant 0 : index
    %c8_182 = arith.constant 8 : index
    %c0_183 = arith.constant 0 : index
    %435 = vector.load %arg5[%c0_181, %c8_182, %c0_183] : memref<2x24x64xf32, #tpu.memory_space<vmem>>, vector<2x8x64xf32>
    %c0_184 = arith.constant 0 : index
    %c9_185 = arith.constant 9 : index
    %c0_186 = arith.constant 0 : index
    %436 = vector.load %arg5[%c0_184, %c9_185, %c0_186] : memref<2x24x64xf32, #tpu.memory_space<vmem>>, vector<2x8x64xf32>
    %437 = tpu.concatenate %434, %435, %436 in 2 : vector<2x8x64xf32>, vector<2x8x64xf32>, vector<2x8x64xf32> -> vector<2x8x192xf32>
    %438 = arith.truncf %437 : vector<2x8x192xf32> to vector<2x8x192xbf16>
    "tpu.trace_start"() <{level = 10 : i32, message = "bsk,kn->bsn"}> : () -> ()
    %cst_187 = arith.constant dense<0.000000e+00> : vector<2x8x64xf32>
    %439 = tpu.matmul %438, %430, %cst_187 {dimension_numbers = #tpu.dot_dimension_numbers<[2], [0], [0, 1], [1], [0, 0, 0, 1, 1, 1], [], []>} : vector<2x8x192xbf16>, vector<192x64xbf16>, vector<2x8x64xf32> -> vector<2x8x64xf32>
    "tpu.trace_stop"() : () -> ()
    %440 = vector.shape_cast %431 : vector<1x64xf32> to vector<1x1x64xf32>
    %441 = vector.broadcast %440 : vector<1x1x64xf32> to vector<2x8x64xf32>
    %442 = arith.mulf %439, %441 : vector<2x8x64xf32>
    %443 = vector.shape_cast %432 : vector<1x64xf32> to vector<1x1x64xf32>
    %444 = vector.broadcast %443 : vector<1x1x64xf32> to vector<2x8x64xf32>
    %445 = arith.addf %442, %444 : vector<2x8x64xf32>
    %c960 = arith.constant 960 : index
    %c0_188 = arith.constant 0 : index
    %446 = vector.load %arg1[%c960, %c0_188] : memref<1520x128xbf16, #tpu.memory_space<vmem>>, vector<32x64xbf16>
    %c26 = arith.constant 26 : index
    %c0_189 = arith.constant 0 : index
    %447 = vector.load %arg2[%c26, %c0_189] : memref<40x128xf32, #tpu.memory_space<vmem>>, vector<1x64xf32>
    %c27 = arith.constant 27 : index
    %c0_190 = arith.constant 0 : index
    %448 = vector.load %arg2[%c27, %c0_190] : memref<40x128xf32, #tpu.memory_space<vmem>>, vector<1x64xf32>
    %449 = arith.truncf %389 : vector<2x8x32xf32> to vector<2x8x32xbf16>
    "tpu.trace_start"() <{level = 10 : i32, message = "bsk,kn->bsn"}> : () -> ()
    %cst_191 = arith.constant dense<0.000000e+00> : vector<2x8x64xf32>
    %450 = tpu.matmul %449, %446, %cst_191 {dimension_numbers = #tpu.dot_dimension_numbers<[2], [0], [0, 1], [1], [0, 0, 0, 1, 1, 1], [], []>} : vector<2x8x32xbf16>, vector<32x64xbf16>, vector<2x8x64xf32> -> vector<2x8x64xf32>
    "tpu.trace_stop"() : () -> ()
    %451 = vector.shape_cast %447 : vector<1x64xf32> to vector<1x1x64xf32>
    %452 = vector.broadcast %451 : vector<1x1x64xf32> to vector<2x8x64xf32>
    %453 = arith.mulf %450, %452 : vector<2x8x64xf32>
    %454 = vector.shape_cast %448 : vector<1x64xf32> to vector<1x1x64xf32>
    %455 = vector.broadcast %454 : vector<1x1x64xf32> to vector<2x8x64xf32>
    %456 = arith.addf %453, %455 : vector<2x8x64xf32>
    %cst_192 = arith.constant dense<0.000000e+00> : vector<2x64xf32>
    %457 = vector.multi_reduction <add>, %445, %cst_192 [1] : vector<2x8x64xf32> to vector<2x64xf32>
    %cst_193 = arith.constant 8.000000e+00 : f32
    %458 = vector.broadcast %cst_193 : f32 to vector<2x64xf32>
    %459 = arith.divf %457, %458 : vector<2x64xf32>
    %c992 = arith.constant 992 : index
    %c0_194 = arith.constant 0 : index
    %460 = vector.load %arg1[%c992, %c0_194] : memref<1520x128xbf16, #tpu.memory_space<vmem>>, vector<64x4xbf16>
    %461 = arith.truncf %459 : vector<2x64xf32> to vector<2x64xbf16>
    %cst_195 = arith.constant dense<0.000000e+00> : vector<2x4xf32>
    %462 = tpu.matmul %461, %460, %cst_195 {dimension_numbers = #tpu.dot_dimension_numbers<[1], [0], [0], [1], [0, 0, 1, 1], [], []>} : vector<2x64xbf16>, vector<64x4xbf16>, vector<2x4xf32> -> vector<2x4xf32>
    %c28 = arith.constant 28 : index
    %c0_196 = arith.constant 0 : index
    %463 = vector.load %arg2[%c28, %c0_196] : memref<40x128xf32, #tpu.memory_space<vmem>>, vector<1x4xf32>
    %464 = vector.broadcast %463 : vector<1x4xf32> to vector<2x4xf32>
    %465 = arith.addf %462, %464 : vector<2x4xf32>
    %cst_197 = arith.constant 0.000000e+00 : f32
    %466 = vector.broadcast %cst_197 : f32 to vector<2x4xf32>
    %467 = arith.maximumf %465, %466 : vector<2x4xf32>
    %c1056 = arith.constant 1056 : index
    %c0_198 = arith.constant 0 : index
    %468 = vector.load %arg1[%c1056, %c0_198] : memref<1520x128xbf16, #tpu.memory_space<vmem>>, vector<4x64xbf16>
    %469 = arith.truncf %467 : vector<2x4xf32> to vector<2x4xbf16>
    %cst_199 = arith.constant dense<0.000000e+00> : vector<2x64xf32>
    %470 = tpu.matmul %469, %468, %cst_199 {dimension_numbers = #tpu.dot_dimension_numbers<[1], [0], [0], [1], [0, 0, 1, 1], [], []>} : vector<2x4xbf16>, vector<4x64xbf16>, vector<2x64xf32> -> vector<2x64xf32>
    %c29 = arith.constant 29 : index
    %c0_200 = arith.constant 0 : index
    %471 = vector.load %arg2[%c29, %c0_200] : memref<40x128xf32, #tpu.memory_space<vmem>>, vector<1x64xf32>
    %472 = vector.broadcast %471 : vector<1x64xf32> to vector<2x64xf32>
    %473 = arith.addf %470, %472 : vector<2x64xf32>
    %474 = arith.negf %473 : vector<2x64xf32>
    %475 = math.exp %474 : vector<2x64xf32>
    %cst_201 = arith.constant 1.000000e+00 : f32
    %476 = vector.broadcast %cst_201 : f32 to vector<2x64xf32>
    %477 = arith.addf %476, %475 : vector<2x64xf32>
    %478 = arith.divf %476, %477 : vector<2x64xf32>
    %479 = vector.shape_cast %478 : vector<2x64xf32> to vector<2x1x64xf32>
    %480 = vector.broadcast %479 : vector<2x1x64xf32> to vector<2x8x64xf32>
    %481 = arith.mulf %445, %480 : vector<2x8x64xf32>
    %482 = arith.addf %481, %456 : vector<2x8x64xf32>
    %cst_202 = arith.constant 0.000000e+00 : f32
    %483 = vector.broadcast %cst_202 : f32 to vector<2x8x64xf32>
    %484 = arith.maximumf %482, %483 : vector<2x8x64xf32>
    %cst_203 = arith.constant dense<0.000000e+00> : vector<2x64xf32>
    %485 = vector.multi_reduction <add>, %484, %cst_203 [1] : vector<2x8x64xf32> to vector<2x64xf32>
    %cst_204 = arith.constant 8.000000e+00 : f32
    %486 = vector.broadcast %cst_204 : f32 to vector<2x64xf32>
    %487 = arith.divf %485, %486 : vector<2x64xf32>
    %c1072 = arith.constant 1072 : index
    %c0_205 = arith.constant 0 : index
    %488 = vector.load %arg1[%c1072, %c0_205] : memref<1520x128xbf16, #tpu.memory_space<vmem>>, vector<64x128xbf16>
    %489 = arith.truncf %487 : vector<2x64xf32> to vector<2x64xbf16>
    %cst_206 = arith.constant dense<0.000000e+00> : vector<2x128xf32>
    %490 = tpu.matmul %489, %488, %cst_206 {dimension_numbers = #tpu.dot_dimension_numbers<[1], [0], [0], [1], [0, 0, 1, 1], [], []>} : vector<2x64xbf16>, vector<64x128xbf16>, vector<2x128xf32> -> vector<2x128xf32>
    %c30 = arith.constant 30 : index
    %c0_207 = arith.constant 0 : index
    %491 = vector.load %arg2[%c30, %c0_207] : memref<40x128xf32, #tpu.memory_space<vmem>>, vector<1x128xf32>
    %492 = vector.broadcast %491 : vector<1x128xf32> to vector<2x128xf32>
    %493 = arith.addf %490, %492 : vector<2x128xf32>
    %cst_208 = arith.constant 1.000000e-01 : f32
    %494 = vector.broadcast %cst_208 : f32 to vector<2x128xf32>
    %495 = arith.mulf %494, %493 : vector<2x128xf32>
    %496 = arith.maximumf %493, %495 : vector<2x128xf32>
    %c1328 = arith.constant 1328 : index
    %c0_209 = arith.constant 0 : index
    %497 = vector.load %arg1[%c1328, %c0_209] : memref<1520x128xbf16, #tpu.memory_space<vmem>>, vector<64x64xbf16>
    %498 = arith.truncf %487 : vector<2x64xf32> to vector<2x64xbf16>
    %cst_210 = arith.constant dense<0.000000e+00> : vector<2x64xf32>
    %499 = tpu.matmul %498, %497, %cst_210 {dimension_numbers = #tpu.dot_dimension_numbers<[1], [0], [0], [1], [0, 0, 1, 1], [], []>} : vector<2x64xbf16>, vector<64x64xbf16>, vector<2x64xf32> -> vector<2x64xf32>
    %c33 = arith.constant 33 : index
    %c0_211 = arith.constant 0 : index
    %500 = vector.load %arg2[%c33, %c0_211] : memref<40x128xf32, #tpu.memory_space<vmem>>, vector<1x64xf32>
    %501 = vector.broadcast %500 : vector<1x64xf32> to vector<2x64xf32>
    %502 = arith.addf %499, %501 : vector<2x64xf32>
    %c1136 = arith.constant 1136 : index
    %c0_212 = arith.constant 0 : index
    %503 = vector.load %arg1[%c1136, %c0_212] : memref<1520x128xbf16, #tpu.memory_space<vmem>>, vector<128x64xbf16>
    %504 = arith.truncf %496 : vector<2x128xf32> to vector<2x128xbf16>
    %cst_213 = arith.constant dense<0.000000e+00> : vector<2x64xf32>
    %505 = tpu.matmul %504, %503, %cst_213 {dimension_numbers = #tpu.dot_dimension_numbers<[1], [0], [0], [1], [0, 0, 1, 1], [], []>} : vector<2x128xbf16>, vector<128x64xbf16>, vector<2x64xf32> -> vector<2x64xf32>
    %c31 = arith.constant 31 : index
    %c0_214 = arith.constant 0 : index
    %506 = vector.load %arg2[%c31, %c0_214] : memref<40x128xf32, #tpu.memory_space<vmem>>, vector<1x64xf32>
    %507 = vector.broadcast %506 : vector<1x64xf32> to vector<2x64xf32>
    %508 = arith.addf %505, %507 : vector<2x64xf32>
    %cst_215 = arith.constant 1.000000e-01 : f32
    %509 = vector.broadcast %cst_215 : f32 to vector<2x64xf32>
    %510 = arith.mulf %509, %508 : vector<2x64xf32>
    %511 = arith.maximumf %508, %510 : vector<2x64xf32>
    %512 = arith.addf %511, %502 : vector<2x64xf32>
    %c1392 = arith.constant 1392 : index
    %c0_216 = arith.constant 0 : index
    %513 = vector.load %arg1[%c1392, %c0_216] : memref<1520x128xbf16, #tpu.memory_space<vmem>>, vector<128x32xbf16>
    %514 = arith.truncf %496 : vector<2x128xf32> to vector<2x128xbf16>
    %cst_217 = arith.constant dense<0.000000e+00> : vector<2x32xf32>
    %515 = tpu.matmul %514, %513, %cst_217 {dimension_numbers = #tpu.dot_dimension_numbers<[1], [0], [0], [1], [0, 0, 1, 1], [], []>} : vector<2x128xbf16>, vector<128x32xbf16>, vector<2x32xf32> -> vector<2x32xf32>
    %c34 = arith.constant 34 : index
    %c0_218 = arith.constant 0 : index
    %516 = vector.load %arg2[%c34, %c0_218] : memref<40x128xf32, #tpu.memory_space<vmem>>, vector<1x32xf32>
    %517 = vector.broadcast %516 : vector<1x32xf32> to vector<2x32xf32>
    %518 = arith.addf %515, %517 : vector<2x32xf32>
    %c1264 = arith.constant 1264 : index
    %c0_219 = arith.constant 0 : index
    %519 = vector.load %arg1[%c1264, %c0_219] : memref<1520x128xbf16, #tpu.memory_space<vmem>>, vector<64x32xbf16>
    %520 = arith.truncf %512 : vector<2x64xf32> to vector<2x64xbf16>
    %cst_220 = arith.constant dense<0.000000e+00> : vector<2x32xf32>
    %521 = tpu.matmul %520, %519, %cst_220 {dimension_numbers = #tpu.dot_dimension_numbers<[1], [0], [0], [1], [0, 0, 1, 1], [], []>} : vector<2x64xbf16>, vector<64x32xbf16>, vector<2x32xf32> -> vector<2x32xf32>
    %c32_221 = arith.constant 32 : index
    %c0_222 = arith.constant 0 : index
    %522 = vector.load %arg2[%c32_221, %c0_222] : memref<40x128xf32, #tpu.memory_space<vmem>>, vector<1x32xf32>
    %523 = vector.broadcast %522 : vector<1x32xf32> to vector<2x32xf32>
    %524 = arith.addf %521, %523 : vector<2x32xf32>
    %cst_223 = arith.constant 1.000000e-01 : f32
    %525 = vector.broadcast %cst_223 : f32 to vector<2x32xf32>
    %526 = arith.mulf %525, %524 : vector<2x32xf32>
    %527 = arith.maximumf %524, %526 : vector<2x32xf32>
    %528 = arith.addf %527, %518 : vector<2x32xf32>
    %c35 = arith.constant 35 : index
    %c0_224 = arith.constant 0 : index
    %529 = vector.load %arg2[%c35, %c0_224] : memref<40x128xf32, #tpu.memory_space<vmem>>, vector<1x32xf32>
    %530 = vector.broadcast %529 : vector<1x32xf32> to vector<2x32xf32>
    %531 = arith.mulf %528, %530 : vector<2x32xf32>
    %cst_225 = arith.constant dense<0.000000e+00> : vector<2xf32>
    %532 = vector.multi_reduction <add>, %531, %cst_225 [1] : vector<2x32xf32> to vector<2xf32>
    %533 = vector.shape_cast %532 : vector<2xf32> to vector<2x1xf32>
    %c36 = arith.constant 36 : index
    %c0_226 = arith.constant 0 : index
    %534 = vector.load %arg2[%c36, %c0_226] : memref<40x128xf32, #tpu.memory_space<vmem>>, vector<1x1xf32>
    %535 = vector.broadcast %534 : vector<1x1xf32> to vector<2x1xf32>
    %536 = arith.addf %533, %535 : vector<2x1xf32>
    %c0_227 = arith.constant 0 : index
    %c0_228 = arith.constant 0 : index
    %537 = vector.load %arg3[%c0_227, %c0_228] : memref<2x1xf32, #tpu.memory_space<vmem>>, vector<2x1xf32>
    tpu.vector_store %arg3[%c0_227, %c0_228], %536 {strides = array<i32>} : memref<2x1xf32, #tpu.memory_space<vmem>>, vector<2x1xf32>,
    return
  }
}

</mosaic_0001>

<llo_original>
// kernel: forward.1
$region0: #{forward.1}
  #allocation0 [shape = 'u32[]', space=smem, size = 0x4, offset = 0x4, fixed_abs, tag = 'smem constant byte address 0x4 - core index']
  #allocation1 [shape = 'u32[72,128]{1,0:T(1,128)}', space=vmem, size = 0x9000, scoped, tag = 'internal scratch']
  #allocation2 [shape = 'f32[2,24,32]{2,1,0:T(8,128)}', space=vmem, size = 0x6000, scoped, tag = 'scratch operand']
  #allocation3 [shape = 'f32[2,24,64]{2,1,0:T(8,128)}', space=vmem, size = 0x6000, scoped, tag = 'scratch operand']
  %s0 = inlined_call_operand.hbm [shape: f32[2,8,16], index: 0, kind: input, shape index: {}]
  %s1 = inlined_call_operand.hbm [shape: bf16[1520,128], index: 1, kind: input, shape index: {}]
  %s2 = inlined_call_operand.hbm [shape: f32[40,128], index: 2, kind: input, shape index: {}]
  %s3 = inlined_call_operand.vmem [shape: f32[2,1], index: 3, kind: output, shape index: {}]
  %s4 = sld [smem:[#allocation0]]
  $region34: #{forward.1} parent=0
    _
  %s6 = ssub.s32 1, %s4
  %s7 = scalar_select 0, %s6, %s4
  $region1: #{forward.1} parent=0
    #allocation4 [shape = 'u8[8192]{0}', space=vmem, size = 0x2000, scoped, tag = 'input window, operand 0, single buffered']
    #allocation5 [shape = 's32[1]{0}', space=sflag, size = 0x4, scoped, tag = 'scoped memory for forward.1']
    #allocation6 [shape = 'u8[389120]{0}', space=vmem, size = 0x5f000, scoped, tag = 'input window, operand 1, single buffered']
    #allocation7 [shape = 's32[1]{0}', space=sflag, size = 0x4, scoped, tag = 'scoped memory for forward.1']
    #allocation8 [shape = 'u8[20480]{0}', space=vmem, size = 0x5000, scoped, tag = 'input window, operand 2, single buffered']
    %8 = vsyncpa [#allocation5], 0
    %9 = vsyncpa [#allocation7], 0
    // Predicated region
    $region2: #{forward.1} parent=1 // pred_check
      _
    $region3: #{forward.1} parent=1 // pred_check_branch
      %11 = sbr.rel (0) target = $region5
    $region4: #{forward.1} parent=1 // pred_region
      %13 = vsyncadd [#allocation5], 0
      %s14 = sshll.u32 %s0, 4
      %s15 = int_to_ptr.hbm [resolvable:$true] %s14
      %s16 = sshll.u32 [#allocation4], 4
      %s17 = int_to_ptr.vmem [resolvable:$true] %s16
      %22 = dma.hbm_to_vmem [thread:$0]  %s15, 256, %s17, [#allocation5], 128, 128, 8
    $region5: #{forward.1} parent=1 // pred_fallthru
      _
    // Predicated region
    $region6: #{forward.1} parent=1 // pred_check
      _
    $region7: #{forward.1} parent=1 // pred_check_branch
      %24 = sbr.rel (0) target = $region9
    $region8: #{forward.1} parent=1 // pred_region
      %26 = vsyncadd [#allocation7], 0
      %s27 = sshll.u32 %s1, 4
      %s28 = int_to_ptr.hbm [resolvable:$true] %s27
      %s29 = sshll.u32 [#allocation6], 4
      %s30 = int_to_ptr.vmem [resolvable:$true] %s29
      %35 = dma.hbm_to_vmem [thread:$0]  %s28, 12160, %s30, [#allocation7], 64, 64, 4
    $region9: #{forward.1} parent=1 // pred_fallthru
      _
    // Predicated region
    $region10: #{forward.1} parent=1 // pred_check
      _
    $region11: #{forward.1} parent=1 // pred_check_branch
      %37 = sbr.rel (0) target = $region13
    $region12: #{forward.1} parent=1 // pred_region
      %39 = vsyncadd [#allocation7], 0
      %s40 = sshll.u32 %s2, 4
      %s41 = int_to_ptr.hbm [resolvable:$true] %s40
      %s42 = sshll.u32 [#allocation8], 4
      %s43 = int_to_ptr.vmem [resolvable:$true] %s42
      %48 = dma.hbm_to_vmem [thread:$0]  %s41, 640, %s43, [#allocation7], 128, 128, 8
    $region13: #{forward.1} parent=1 // pred_fallthru
      _
    // Predicated region
    $region14: #{forward.1} parent=1 // pred_check
      _
    $region15: #{forward.1} parent=1 // pred_check_branch
      %50 = sbr.rel (0) target = $region17
    $region16: #{forward.1} parent=1 // pred_region
      %52 = dma.done [#allocation5], 256
    $region17: #{forward.1} parent=1 // pred_fallthru
      _
    // Predicated region
    $region18: #{forward.1} parent=1 // pred_check
      _
    $region19: #{forward.1} parent=1 // pred_check_branch
      %54 = sbr.rel (0) target = $region21
    $region20: #{forward.1} parent=1 // pred_region
      %56 = dma.done [#allocation7], 12160
    $region21: #{forward.1} parent=1 // pred_fallthru
      _
    // Predicated region
    $region22: #{forward.1} parent=1 // pred_check
      _
    $region23: #{forward.1} parent=1 // pred_check_branch
      %58 = sbr.rel (0) target = $region25
    $region24: #{forward.1} parent=1 // pred_region
      %60 = dma.done [#allocation7], 640
    $region25: #{forward.1} parent=1 // pred_fallthru
      _
    %v62 = vld [vmem:[#allocation4] sm:$0xff]
    %v63 = vld [vmem:[#allocation4 + $0x8] sm:$0xff]
    %vm64 = vcmask 254976
    %65 = vst.msk [vmem:[#allocation2 + $0x6] sm:$0x3] %vm64, 0.0
    %66 = vst.msk [vmem:[#allocation2 + $0x1e] sm:$0x3] %vm64, 0.0
    %67 = vst.msk [vmem:[#allocation2 + $0x10] sm:$0x3] %vm64, 0.0
    %68 = vst.msk [vmem:[#allocation2 + $0x28] sm:$0x3] %vm64, 0.0
    %vm69 = vcmask 517120
    %70 = vst.msk [vmem:[#allocation3 + $0x6] sm:$0x3] %vm69, 0.0
    %71 = vst.msk [vmem:[#allocation3 + $0x1e] sm:$0x3] %vm69, 0.0
    %72 = vst.msk [vmem:[#allocation3 + $0x10] sm:$0x3] %vm69, 0.0
    %73 = vst.msk [vmem:[#allocation3 + $0x28] sm:$0x3] %vm69, 0.0
    %v74 = vld [vmem:[#allocation6] sm:$0xf]
    %v75 = vld [vmem:[#allocation6 + $0x4] sm:$0xf]
    %v76 = vpack.c.bf16 %v62, %v62
    %v77 = vpack.c.bf16 %v63, %v63
    %v78 = vld [vmem:[#allocation8] sm:$0x1]
    %v79 = vperm.slane %v78, 0
    %v82 = vunpack.c.l.b16 %v76
    %v83 = vunpack.c.l.b16 %v77
    %v84 = vpack.c.b16 %v83, %v82
    %v87 = vunpack.c.l.b16 %v74
    %v88 = vunpack.c.l.b16 %v75
    %v89 = vpack.c.b16 %v88, %v87
    %vm91 = vcmask 130048
    %v93 = vsel %vm91, %v84, 0
    %95 = vmatpush.bf16.msra.mxu0 0
    %96 = vmatpush.bf16.msra.mxu0 0
    %97 = vmatpush.bf16.msra.mxu0 0
    %98 = vmatpush.bf16.msra.mxu0 0
    %99 = vmatpush.bf16.msra.mxu0 0
    %100 = vmatpush.bf16.msra.mxu0 0
    %101 = vmatpush.bf16.msra.mxu0 0
    %102 = vmatpush.bf16.msra.mxu0 %v89
    %103 = vmatmul.bf16.gmra.mxu0 %v93
    %v104 = vpop.f32.mrf.mxu0
    %v105 = vadd.f32 %v79, %v104
    %v106 = vpop.f32.mrf.mxu0
    %v107 = vadd.f32 %v79, %v106
    %108 = vdwg.mxu0
    %v109 = vpack.c.bf16 %v105, %v105
    %v110 = vpack.c.bf16 %v107, %v107
    %v112 = vunpack.c.l.b16 %v109
    %v113 = vpack.c.b16 %v112, %v112
    %114 = vrot.lane.b32.xlu0 %v113, 112
    %v115 = vpop.permute.xlu0 %114
    %v117 = vsel %vm91, %v109, 0
    %v120 = vsel %vm91, %v115, 0
    %122 = vmatpush.bf16.xpose.msra.mxu0 0
    %123 = vmatpush.bf16.xpose.msra.mxu0 0
    %124 = vmatpush.bf16.xpose.msra.mxu0 0
    %125 = vmatpush.bf16.xpose.msra.mxu0 0
    %126 = vmatpush.bf16.xpose.msra.mxu0 0
    %127 = vmatpush.bf16.xpose.msra.mxu0 0
    %128 = vmatpush.bf16.xpose.msra.mxu0 0
    %129 = vmatpush.bf16.xpose.msra.mxu0 %v120
    %130 = vmatmul.bf16.gmra.mxu0 %v117
    %v131 = vpop.f32.mrf.mxu0
    %v132 = vadd.f32 0.0, %v131
    %v133 = vpop.f32.mrf.mxu0
    %134 = vdwg.mxu0
    %v136 = vunpack.c.l.b16 %v110
    %v137 = vpack.c.b16 %v136, %v136
    %138 = vrot.lane.b32.xlu0 %v137, 112
    %v139 = vpop.permute.xlu0 %138
    %v141 = vsel %vm91, %v110, 0
    %v144 = vsel %vm91, %v139, 0
    %146 = vmatpush.bf16.xpose.msra.mxu0 0
    %147 = vmatpush.bf16.xpose.msra.mxu0 0
    %148 = vmatpush.bf16.xpose.msra.mxu0 0
    %149 = vmatpush.bf16.xpose.msra.mxu0 0
    %150 = vmatpush.bf16.xpose.msra.mxu0 0
    %151 = vmatpush.bf16.xpose.msra.mxu0 0
    %152 = vmatpush.bf16.xpose.msra.mxu0 0
    %153 = vmatpush.bf16.xpose.msra.mxu0 %v144
    %154 = vmatmul.bf16.gmra.mxu0 %v141
    %v155 = vpop.f32.mrf.mxu0
    %v156 = vadd.f32 0.0, %v155
    %v157 = vpop.f32.mrf.mxu0
    %158 = vdwg.mxu0
    %vm159 = vcmask 64512
    %v160 = vsel %vm159, %v132, -inf
    %161 = vmax.xlane.f32.xlu0 %v160
    %v162 = vpop.xlane.xlu0 %161
    %v163 = vsel %vm159, %v156, -inf
    %164 = vmax.xlane.f32.xlu0 %v163
    %v165 = vpop.xlane.xlu0 %164
    %v166 = vsub.f32 %v132, %v162
    %v167 = vsub.f32 %v156, %v165
    %v168 = vmul.f32 %v166, 1.442695
    %v169 = vpow.pop %v168
    %v170 = vmul.f32 %v167, 1.442695
    %v171 = vpow.pop %v170
    %v172 = vsel %vm159, %v169, 0.0
    %173 = vadd.xlane.f32.xlu0 %v172
    %v174 = vpop.xlane.xlu0 %173
    %v175 = vsel %vm159, %v171, 0.0
    %176 = vadd.xlane.f32.xlu0 %v175
    %v177 = vpop.xlane.xlu0 %176
    %v178 = vrcp.pop %v174
    %v179 = vrcp.pop %v177
    %v180 = vmul.f32 %v169, %v178
    %v181 = vmul.f32 %v171, %v179
    %v182 = vpack.c.bf16 %v180, %v180
    %v183 = vpack.c.bf16 %v181, %v181
    %184 = vrot.lane.b32.xlu0 %v113, 96
    %v185 = vpop.permute.xlu0 %184
    %v187 = vsel %vm159, %v182, 0
    %vm189 = vcmask 1043456
    %v191 = vsel %vm189, %v185, 0
    %193 = vmatpush.bf16.msra.mxu0 0
    %194 = vmatpush.bf16.msra.mxu0 0
    %195 = vmatpush.bf16.msra.mxu0 0
    %196 = vmatpush.bf16.msra.mxu0 0
    %197 = vmatpush.bf16.msra.mxu0 0
    %198 = vmatpush.bf16.msra.mxu0 0
    %199 = vmatpush.bf16.msra.mxu0 0
    %200 = vmatpush.bf16.msra.mxu0 %v191
    %201 = vmatmul.bf16.gmra.mxu0 %v187
    %v202 = vpop.f32.mrf.mxu0
    %v203 = vadd.f32 0.0, %v202
    %v204 = vpop.f32.mrf.mxu0
    %205 = vdwg.mxu0
    %206 = vrot.lane.b32.xlu0 %v137, 96
    %v207 = vpop.permute.xlu0 %206
    %v209 = vsel %vm159, %v183, 0
    %v212 = vsel %vm189, %v207, 0
    %214 = vmatpush.bf16.msra.mxu0 0
    %215 = vmatpush.bf16.msra.mxu0 0
    %216 = vmatpush.bf16.msra.mxu0 0
    %217 = vmatpush.bf16.msra.mxu0 0
    %218 = vmatpush.bf16.msra.mxu0 0
    %219 = vmatpush.bf16.msra.mxu0 0
    %220 = vmatpush.bf16.msra.mxu0 0
    %221 = vmatpush.bf16.msra.mxu0 %v212
    %222 = vmatmul.bf16.gmra.mxu0 %v209
    %v223 = vpop.f32.mrf.mxu0
    %v224 = vadd.f32 0.0, %v223
    %v225 = vpop.f32.mrf.mxu0
    %226 = vdwg.mxu0
    %v227 = vld [vmem:[#allocation6 + $0x8] sm:$0xf]
    %v228 = vld [vmem:[#allocation6 + $0xc] sm:$0xf]
    %v229 = vpack.c.bf16 %v203, %v203
    %v230 = vpack.c.bf16 %v224, %v224
    %v231 = vld [vmem:[#allocation8 + $0x1] sm:$0x1]
    %v232 = vperm.slane %v231, 0
    %v235 = vunpack.c.l.b16 %v229
    %v236 = vunpack.c.l.b16 %v230
    %v237 = vpack.c.b16 %v236, %v235
    %v240 = vunpack.c.l.b16 %v227
    %v241 = vunpack.c.l.b16 %v228
    %v242 = vpack.c.b16 %v241, %v240
    %v245 = vsel %vm91, %v237, 0
    %247 = vmatpush.bf16.msra.mxu0 0
    %248 = vmatpush.bf16.msra.mxu0 0
    %249 = vmatpush.bf16.msra.mxu0 0
    %250 = vmatpush.bf16.msra.mxu0 0
    %251 = vmatpush.bf16.msra.mxu0 0
    %252 = vmatpush.bf16.msra.mxu0 0
    %253 = vmatpush.bf16.msra.mxu0 0
    %254 = vmatpush.bf16.msra.mxu0 %v242
    %255 = vmatmul.bf16.gmra.mxu0 %v245
    %v256 = vpop.f32.mrf.mxu0
    %v257 = vadd.f32 %v232, %v256
    %v258 = vpop.f32.mrf.mxu0
    %v259 = vadd.f32 %v232, %v258
    %260 = vdwg.mxu0
    %v261 = vpack.c.bf16 %v257, %v257
    %v262 = vpack.c.bf16 %v259, %v259
    %v264 = vunpack.c.l.b16 %v261
    %v265 = vpack.c.b16 %v264, %v264
    %266 = vrot.lane.b32.xlu0 %v265, 112
    %v267 = vpop.permute.xlu0 %266
    %vm268 = vcmask 31744
    %v270 = vsel %vm268, %v261, 0
    %v273 = vsel %vm268, %v267, 0
    %275 = vmatpush.bf16.xpose.msra.mxu0 0
    %276 = vmatpush.bf16.xpose.msra.mxu0 0
    %277 = vmatpush.bf16.xpose.msra.mxu0 0
    %278 = vmatpush.bf16.xpose.msra.mxu0 0
    %279 = vmatpush.bf16.xpose.msra.mxu0 0
    %280 = vmatpush.bf16.xpose.msra.mxu0 0
    %281 = vmatpush.bf16.xpose.msra.mxu0 0
    %282 = vmatpush.bf16.xpose.msra.mxu0 %v273
    %283 = vmatmul.bf16.gmra.mxu0 %v270
    %v284 = vpop.f32.mrf.mxu0
    %v285 = vadd.f32 0.0, %v284
    %v286 = vpop.f32.mrf.mxu0
    %287 = vdwg.mxu0
    %v289 = vunpack.c.l.b16 %v262
    %v290 = vpack.c.b16 %v289, %v289
    %291 = vrot.lane.b32.xlu0 %v290, 112
    %v292 = vpop.permute.xlu0 %291
    %v294 = vsel %vm268, %v262, 0
    %v297 = vsel %vm268, %v292, 0
    %299 = vmatpush.bf16.xpose.msra.mxu0 0
    %300 = vmatpush.bf16.xpose.msra.mxu0 0
    %301 = vmatpush.bf16.xpose.msra.mxu0 0
    %302 = vmatpush.bf16.xpose.msra.mxu0 0
    %303 = vmatpush.bf16.xpose.msra.mxu0 0
    %304 = vmatpush.bf16.xpose.msra.mxu0 0
    %305 = vmatpush.bf16.xpose.msra.mxu0 0
    %306 = vmatpush.bf16.xpose.msra.mxu0 %v297
    %307 = vmatmul.bf16.gmra.mxu0 %v294
    %v308 = vpop.f32.mrf.mxu0
    %v309 = vadd.f32 0.0, %v308
    %v310 = vpop.f32.mrf.mxu0
    %311 = vdwg.mxu0
    %v312 = vsel %vm159, %v285, -inf
    %313 = vmax.xlane.f32.xlu0 %v312
    %v314 = vpop.xlane.xlu0 %313
    %v315 = vsel %vm159, %v309, -inf
    %316 = vmax.xlane.f32.xlu0 %v315
    %v317 = vpop.xlane.xlu0 %316
    %v318 = vsub.f32 %v285, %v314
    %v319 = vsub.f32 %v309, %v317
    %v320 = vmul.f32 %v318, 1.442695
    %v321 = vpow.pop %v320
    %v322 = vmul.f32 %v319, 1.442695
    %v323 = vpow.pop %v322
    %v324 = vsel %vm159, %v321, 0.0
    %325 = vadd.xlane.f32.xlu0 %v324
    %v326 = vpop.xlane.xlu0 %325
    %v327 = vsel %vm159, %v323, 0.0
    %328 = vadd.xlane.f32.xlu0 %v327
    %v329 = vpop.xlane.xlu0 %328
    %v330 = vrcp.pop %v326
    %v331 = vrcp.pop %v329
    %v332 = vmul.f32 %v321, %v330
    %v333 = vmul.f32 %v323, %v331
    %v334 = vpack.c.bf16 %v332, %v332
    %v335 = vpack.c.bf16 %v333, %v333
    %336 = vrot.lane.b32.xlu0 %v265, 96
    %v337 = vpop.permute.xlu0 %336
    %v339 = vsel %vm159, %v334, 0
    %v342 = vsel %vm189, %v337, 0
    %344 = vmatpush.bf16.msra.mxu0 0
    %345 = vmatpush.bf16.msra.mxu0 0
    %346 = vmatpush.bf16.msra.mxu0 0
    %347 = vmatpush.bf16.msra.mxu0 0
    %348 = vmatpush.bf16.msra.mxu0 0
    %349 = vmatpush.bf16.msra.mxu0 0
    %350 = vmatpush.bf16.msra.mxu0 0
    %351 = vmatpush.bf16.msra.mxu0 %v342
    %352 = vmatmul.bf16.gmra.mxu0 %v339
    %v353 = vpop.f32.mrf.mxu0
    %v354 = vadd.f32 0.0, %v353
    %v355 = vpop.f32.mrf.mxu0
    %356 = vdwg.mxu0
    %357 = vrot.lane.b32.xlu0 %v290, 96
    %v358 = vpop.permute.xlu0 %357
    %v360 = vsel %vm159, %v335, 0
    %v363 = vsel %vm189, %v358, 0
    %365 = vmatpush.bf16.msra.mxu0 0
    %366 = vmatpush.bf16.msra.mxu0 0
    %367 = vmatpush.bf16.msra.mxu0 0
    %368 = vmatpush.bf16.msra.mxu0 0
    %369 = vmatpush.bf16.msra.mxu0 0
    %370 = vmatpush.bf16.msra.mxu0 0
    %371 = vmatpush.bf16.msra.mxu0 0
    %372 = vmatpush.bf16.msra.mxu0 %v363
    %373 = vmatmul.bf16.gmra.mxu0 %v360
    %v374 = vpop.f32.mrf.mxu0
    %v375 = vadd.f32 0.0, %v374
    %v376 = vpop.f32.mrf.mxu0
    %377 = vdwg.mxu0
    %378 = vrot.lane.b32.xlu0 %v265, 124
    %v379 = vpop.permute.xlu0 %378
    %380 = vrot.lane.b32.xlu0 %v265, 108
    %v381 = vpop.permute.xlu0 %380
    %v383 = vsel %vm268, %v379, 0
    %v386 = vsel %vm268, %v381, 0
    %388 = vmatpush.bf16.xpose.msra.mxu0 0
    %389 = vmatpush.bf16.xpose.msra.mxu0 0
    %390 = vmatpush.bf16.xpose.msra.mxu0 0
    %391 = vmatpush.bf16.xpose.msra.mxu0 0
    %392 = vmatpush.bf16.xpose.msra.mxu0 0
    %393 = vmatpush.bf16.xpose.msra.mxu0 0
    %394 = vmatpush.bf16.xpose.msra.mxu0 0
    %395 = vmatpush.bf16.xpose.msra.mxu0 %v386
    %396 = vmatmul.bf16.gmra.mxu0 %v383
    %v397 = vpop.f32.mrf.mxu0
    %v398 = vadd.f32 0.0, %v397
    %v399 = vpop.f32.mrf.mxu0
    %400 = vdwg.mxu0
    %401 = vrot.lane.b32.xlu0 %v290, 124
    %v402 = vpop.permute.xlu0 %401
    %403 = vrot.lane.b32.xlu0 %v290, 108
    %v404 = vpop.permute.xlu0 %403
    %v406 = vsel %vm268, %v402, 0
    %v409 = vsel %vm268, %v404, 0
    %411 = vmatpush.bf16.xpose.msra.mxu0 0
    %412 = vmatpush.bf16.xpose.msra.mxu0 0
    %413 = vmatpush.bf16.xpose.msra.mxu0 0
    %414 = vmatpush.bf16.xpose.msra.mxu0 0
    %415 = vmatpush.bf16.xpose.msra.mxu0 0
    %416 = vmatpush.bf16.xpose.msra.mxu0 0
    %417 = vmatpush.bf16.xpose.msra.mxu0 0
    %418 = vmatpush.bf16.xpose.msra.mxu0 %v409
    %419 = vmatmul.bf16.gmra.mxu0 %v406
    %v420 = vpop.f32.mrf.mxu0
    %v421 = vadd.f32 0.0, %v420
    %v422 = vpop.f32.mrf.mxu0
    %423 = vdwg.mxu0
    %v424 = vsel %vm159, %v398, -inf
    %425 = vmax.xlane.f32.xlu0 %v424
    %v426 = vpop.xlane.xlu0 %425
    %v427 = vsel %vm159, %v421, -inf
    %428 = vmax.xlane.f32.xlu0 %v427
    %v429 = vpop.xlane.xlu0 %428
    %v430 = vsub.f32 %v398, %v426
    %v431 = vsub.f32 %v421, %v429
    %v432 = vmul.f32 %v430, 1.442695
    %v433 = vpow.pop %v432
    %v434 = vmul.f32 %v431, 1.442695
    %v435 = vpow.pop %v434
    %v436 = vsel %vm159, %v433, 0.0
    %437 = vadd.xlane.f32.xlu0 %v436
    %v438 = vpop.xlane.xlu0 %437
    %v439 = vsel %vm159, %v435, 0.0
    %440 = vadd.xlane.f32.xlu0 %v439
    %v441 = vpop.xlane.xlu0 %440
    %v442 = vrcp.pop %v438
    %v443 = vrcp.pop %v441
    %v444 = vmul.f32 %v433, %v442
    %v445 = vmul.f32 %v435, %v443
    %v446 = vpack.c.bf16 %v444, %v444
    %v447 = vpack.c.bf16 %v445, %v445
    %448 = vrot.lane.b32.xlu0 %v265, 92
    %v449 = vpop.permute.xlu0 %448
    %v451 = vsel %vm159, %v446, 0
    %v454 = vsel %vm189, %v449, 0
    %456 = vmatpush.bf16.msra.mxu0 0
    %457 = vmatpush.bf16.msra.mxu0 0
    %458 = vmatpush.bf16.msra.mxu0 0
    %459 = vmatpush.bf16.msra.mxu0 0
    %460 = vmatpush.bf16.msra.mxu0 0
    %461 = vmatpush.bf16.msra.mxu0 0
    %462 = vmatpush.bf16.msra.mxu0 0
    %463 = vmatpush.bf16.msra.mxu0 %v454
    %464 = vmatmul.bf16.gmra.mxu0 %v451
    %v465 = vpop.f32.mrf.mxu0
    %v466 = vadd.f32 0.0, %v465
    %v467 = vpop.f32.mrf.mxu0
    %468 = vdwg.mxu0
    %469 = vrot.lane.b32.xlu0 %v290, 92
    %v470 = vpop.permute.xlu0 %469
    %v472 = vsel %vm159, %v447, 0
    %v475 = vsel %vm189, %v470, 0
    %477 = vmatpush.bf16.msra.mxu0 0
    %478 = vmatpush.bf16.msra.mxu0 0
    %479 = vmatpush.bf16.msra.mxu0 0
    %480 = vmatpush.bf16.msra.mxu0 0
    %481 = vmatpush.bf16.msra.mxu0 0
    %482 = vmatpush.bf16.msra.mxu0 0
    %483 = vmatpush.bf16.msra.mxu0 0
    %484 = vmatpush.bf16.msra.mxu0 %v475
    %485 = vmatmul.bf16.gmra.mxu0 %v472
    %v486 = vpop.f32.mrf.mxu0
    %v487 = vadd.f32 0.0, %v486
    %v488 = vpop.f32.mrf.mxu0
    %489 = vdwg.mxu0
    %490 = vrot.lane.b32.xlu0 %v265, 120
    %v491 = vpop.permute.xlu0 %490
    %492 = vrot.lane.b32.xlu0 %v265, 104
    %v493 = vpop.permute.xlu0 %492
    %v495 = vsel %vm268, %v491, 0
    %v498 = vsel %vm268, %v493, 0
    %500 = vmatpush.bf16.xpose.msra.mxu0 0
    %501 = vmatpush.bf16.xpose.msra.mxu0 0
    %502 = vmatpush.bf16.xpose.msra.mxu0 0
    %503 = vmatpush.bf16.xpose.msra.mxu0 0
    %504 = vmatpush.bf16.xpose.msra.mxu0 0
    %505 = vmatpush.bf16.xpose.msra.mxu0 0
    %506 = vmatpush.bf16.xpose.msra.mxu0 0
    %507 = vmatpush.bf16.xpose.msra.mxu0 %v498
    %508 = vmatmul.bf16.gmra.mxu0 %v495
    %v509 = vpop.f32.mrf.mxu0
    %v510 = vadd.f32 0.0, %v509
    %v511 = vpop.f32.mrf.mxu0
    %512 = vdwg.mxu0
    %513 = vrot.lane.b32.xlu0 %v290, 120
    %v514 = vpop.permute.xlu0 %513
    %515 = vrot.lane.b32.xlu0 %v290, 104
    %v516 = vpop.permute.xlu0 %515
    %v518 = vsel %vm268, %v514, 0
    %v521 = vsel %vm268, %v516, 0
    %523 = vmatpush.bf16.xpose.msra.mxu0 0
    %524 = vmatpush.bf16.xpose.msra.mxu0 0
    %525 = vmatpush.bf16.xpose.msra.mxu0 0
    %526 = vmatpush.bf16.xpose.msra.mxu0 0
    %527 = vmatpush.bf16.xpose.msra.mxu0 0
    %528 = vmatpush.bf16.xpose.msra.mxu0 0
    %529 = vmatpush.bf16.xpose.msra.mxu0 0
    %530 = vmatpush.bf16.xpose.msra.mxu0 %v521
    %531 = vmatmul.bf16.gmra.mxu0 %v518
    %v532 = vpop.f32.mrf.mxu0
    %v533 = vadd.f32 0.0, %v532
    %v534 = vpop.f32.mrf.mxu0
    %535 = vdwg.mxu0
    %v536 = vsel %vm159, %v510, -inf
    %537 = vmax.xlane.f32.xlu0 %v536
    %v538 = vpop.xlane.xlu0 %537
    %v539 = vsel %vm159, %v533, -inf
    %540 = vmax.xlane.f32.xlu0 %v539
    %v541 = vpop.xlane.xlu0 %540
    %v542 = vsub.f32 %v510, %v538
    %v543 = vsub.f32 %v533, %v541
    %v544 = vmul.f32 %v542, 1.442695
    %v545 = vpow.pop %v544
    %v546 = vmul.f32 %v543, 1.442695
    %v547 = vpow.pop %v546
    %v548 = vsel %vm159, %v545, 0.0
    %549 = vadd.xlane.f32.xlu0 %v548
    %v550 = vpop.xlane.xlu0 %549
    %v551 = vsel %vm159, %v547, 0.0
    %552 = vadd.xlane.f32.xlu0 %v551
    %v553 = vpop.xlane.xlu0 %552
    %v554 = vrcp.pop %v550
    %v555 = vrcp.pop %v553
    %v556 = vmul.f32 %v545, %v554
    %v557 = vmul.f32 %v547, %v555
    %v558 = vpack.c.bf16 %v556, %v556
    %v559 = vpack.c.bf16 %v557, %v557
    %560 = vrot.lane.b32.xlu0 %v265, 88
    %v561 = vpop.permute.xlu0 %560
    %v563 = vsel %vm159, %v558, 0
    %v566 = vsel %vm189, %v561, 0
    %568 = vmatpush.bf16.msra.mxu0 0
    %569 = vmatpush.bf16.msra.mxu0 0
    %570 = vmatpush.bf16.msra.mxu0 0
    %571 = vmatpush.bf16.msra.mxu0 0
    %572 = vmatpush.bf16.msra.mxu0 0
    %573 = vmatpush.bf16.msra.mxu0 0
    %574 = vmatpush.bf16.msra.mxu0 0
    %575 = vmatpush.bf16.msra.mxu0 %v566
    %576 = vmatmul.bf16.gmra.mxu0 %v563
    %v577 = vpop.f32.mrf.mxu0
    %v578 = vadd.f32 0.0, %v577
    %v579 = vpop.f32.mrf.mxu0
    %580 = vdwg.mxu0
    %581 = vrot.lane.b32.xlu0 %v290, 88
    %v582 = vpop.permute.xlu0 %581
    %v584 = vsel %vm159, %v559, 0
    %v587 = vsel %vm189, %v582, 0
    %589 = vmatpush.bf16.msra.mxu0 0
    %590 = vmatpush.bf16.msra.mxu0 0
    %591 = vmatpush.bf16.msra.mxu0 0
    %592 = vmatpush.bf16.msra.mxu0 0
    %593 = vmatpush.bf16.msra.mxu0 0
    %594 = vmatpush.bf16.msra.mxu0 0
    %595 = vmatpush.bf16.msra.mxu0 0
    %596 = vmatpush.bf16.msra.mxu0 %v587
    %597 = vmatmul.bf16.gmra.mxu0 %v584
    %v598 = vpop.f32.mrf.mxu0
    %v599 = vadd.f32 0.0, %v598
    %v600 = vpop.f32.mrf.mxu0
    %601 = vdwg.mxu0
    %602 = vrot.lane.b32.xlu0 %v265, 116
    %v603 = vpop.permute.xlu0 %602
    %604 = vrot.lane.b32.xlu0 %v265, 100
    %v605 = vpop.permute.xlu0 %604
    %v607 = vsel %vm268, %v603, 0
    %v610 = vsel %vm268, %v605, 0
    %612 = vmatpush.bf16.xpose.msra.mxu0 0
    %613 = vmatpush.bf16.xpose.msra.mxu0 0
    %614 = vmatpush.bf16.xpose.msra.mxu0 0
    %615 = vmatpush.bf16.xpose.msra.mxu0 0
    %616 = vmatpush.bf16.xpose.msra.mxu0 0
    %617 = vmatpush.bf16.xpose.msra.mxu0 0
    %618 = vmatpush.bf16.xpose.msra.mxu0 0
    %619 = vmatpush.bf16.xpose.msra.mxu0 %v610
    %620 = vmatmul.bf16.gmra.mxu0 %v607
    %v621 = vpop.f32.mrf.mxu0
    %v622 = vadd.f32 0.0, %v621
    %v623 = vpop.f32.mrf.mxu0
    %624 = vdwg.mxu0
    %625 = vrot.lane.b32.xlu0 %v290, 116
    %v626 = vpop.permute.xlu0 %625
    %627 = vrot.lane.b32.xlu0 %v290, 100
    %v628 = vpop.permute.xlu0 %627
    %v630 = vsel %vm268, %v626, 0
    %v633 = vsel %vm268, %v628, 0
    %635 = vmatpush.bf16.xpose.msra.mxu0 0
    %636 = vmatpush.bf16.xpose.msra.mxu0 0
    %637 = vmatpush.bf16.xpose.msra.mxu0 0
    %638 = vmatpush.bf16.xpose.msra.mxu0 0
    %639 = vmatpush.bf16.xpose.msra.mxu0 0
    %640 = vmatpush.bf16.xpose.msra.mxu0 0
    %641 = vmatpush.bf16.xpose.msra.mxu0 0
    %642 = vmatpush.bf16.xpose.msra.mxu0 %v633
    %643 = vmatmul.bf16.gmra.mxu0 %v630
    %v644 = vpop.f32.mrf.mxu0
    %v645 = vadd.f32 0.0, %v644
    %v646 = vpop.f32.mrf.mxu0
    %647 = vdwg.mxu0
    %v648 = vsel %vm159, %v622, -inf
    %649 = vmax.xlane.f32.xlu0 %v648
    %v650 = vpop.xlane.xlu0 %649
    %v651 = vsel %vm159, %v645, -inf
    %652 = vmax.xlane.f32.xlu0 %v651
    %v653 = vpop.xlane.xlu0 %652
    %v654 = vsub.f32 %v622, %v650
    %v655 = vsub.f32 %v645, %v653
    %v656 = vmul.f32 %v654, 1.442695
    %v657 = vpow.pop %v656
    %v658 = vmul.f32 %v655, 1.442695
    %v659 = vpow.pop %v658
    %v660 = vsel %vm159, %v657, 0.0
    %661 = vadd.xlane.f32.xlu0 %v660
    %v662 = vpop.xlane.xlu0 %661
    %v663 = vsel %vm159, %v659, 0.0
    %664 = vadd.xlane.f32.xlu0 %v663
    %v665 = vpop.xlane.xlu0 %664
    %v666 = vrcp.pop %v662
    %v667 = vrcp.pop %v665
    %v668 = vmul.f32 %v657, %v666
    %v669 = vmul.f32 %v659, %v667
    %v670 = vpack.c.bf16 %v668, %v668
    %v671 = vpack.c.bf16 %v669, %v669
    %672 = vrot.lane.b32.xlu0 %v265, 84
    %v673 = vpop.permute.xlu0 %672
    %v675 = vsel %vm159, %v670, 0
    %v678 = vsel %vm189, %v673, 0
    %680 = vmatpush.bf16.msra.mxu0 0
    %681 = vmatpush.bf16.msra.mxu0 0
    %682 = vmatpush.bf16.msra.mxu0 0
    %683 = vmatpush.bf16.msra.mxu0 0
    %684 = vmatpush.bf16.msra.mxu0 0
    %685 = vmatpush.bf16.msra.mxu0 0
    %686 = vmatpush.bf16.msra.mxu0 0
    %687 = vmatpush.bf16.msra.mxu0 %v678
    %688 = vmatmul.bf16.gmra.mxu0 %v675
    %v689 = vpop.f32.mrf.mxu0
    %v690 = vadd.f32 0.0, %v689
    %v691 = vpop.f32.mrf.mxu0
    %692 = vdwg.mxu0
    %693 = vrot.lane.b32.xlu0 %v290, 84
    %v694 = vpop.permute.xlu0 %693
    %v696 = vsel %vm159, %v671, 0
    %v699 = vsel %vm189, %v694, 0
    %701 = vmatpush.bf16.msra.mxu0 0
    %702 = vmatpush.bf16.msra.mxu0 0
    %703 = vmatpush.bf16.msra.mxu0 0
    %704 = vmatpush.bf16.msra.mxu0 0
    %705 = vmatpush.bf16.msra.mxu0 0
    %706 = vmatpush.bf16.msra.mxu0 0
    %707 = vmatpush.bf16.msra.mxu0 0
    %708 = vmatpush.bf16.msra.mxu0 %v699
    %709 = vmatmul.bf16.gmra.mxu0 %v696
    %v710 = vpop.f32.mrf.mxu0
    %v711 = vadd.f32 0.0, %v710
    %v712 = vpop.f32.mrf.mxu0
    %713 = vdwg.mxu0
    %716 = vrot.lane.b32.xlu0 %v466, 4
    %v717 = vpop.permute.xlu0 %716
    %718 = vrot.lane.b32.xlu0 %v487, 4
    %v719 = vpop.permute.xlu0 %718
    %724 = vrot.lane.b32.xlu0 %v578, 8
    %v725 = vpop.permute.xlu0 %724
    %726 = vrot.lane.b32.xlu0 %v599, 8
    %v727 = vpop.permute.xlu0 %726
    %732 = vrot.lane.b32.xlu0 %v690, 12
    %v733 = vpop.permute.xlu0 %732
    %734 = vrot.lane.b32.xlu0 %v711, 12
    %v735 = vpop.permute.xlu0 %734
    %v738 = vsel %vm268, %v354, %v717
    %v739 = vsel %vm268, %v375, %v719
    %v740 = vsel %vm159, %v738, %v725
    %v741 = vsel %vm159, %v739, %v727
    %vm742 = vcmask 97280
    %v743 = vsel %vm742, %v740, %v733
    %v744 = vsel %vm742, %v741, %v735
    %v745 = vld [vmem:[#allocation6 + $0x10] sm:$0xf]
    %v746 = vld [vmem:[#allocation6 + $0x14] sm:$0xf]
    %v747 = vpack.c.bf16 %v743, %v743
    %v748 = vpack.c.bf16 %v744, %v744
    %v749 = vld [vmem:[#allocation8 + $0x2] sm:$0x1]
    %v750 = vperm.slane %v749, 0
    %v753 = vunpack.c.l.b16 %v747
    %v754 = vunpack.c.l.b16 %v748
    %v755 = vpack.c.b16 %v754, %v753
    %v758 = vunpack.c.l.b16 %v745
    %v759 = vunpack.c.l.b16 %v746
    %v760 = vpack.c.b16 %v759, %v758
    %v763 = vsel %vm91, %v755, 0
    %765 = vmatpush.bf16.msra.mxu0 0
    %766 = vmatpush.bf16.msra.mxu0 0
    %767 = vmatpush.bf16.msra.mxu0 0
    %768 = vmatpush.bf16.msra.mxu0 0
    %769 = vmatpush.bf16.msra.mxu0 0
    %770 = vmatpush.bf16.msra.mxu0 0
    %771 = vmatpush.bf16.msra.mxu0 0
    %772 = vmatpush.bf16.msra.mxu0 %v760
    %773 = vmatmul.bf16.gmra.mxu0 %v763
    %v774 = vpop.f32.mrf.mxu0
    %v775 = vadd.f32 %v750, %v774
    %v776 = vpop.f32.mrf.mxu0
    %v777 = vadd.f32 %v750, %v776
    %778 = vdwg.mxu0
    %v779 = vld [vmem:[#allocation8 + $0x3] sm:$0x1]
    %v780 = vld [vmem:[#allocation8 + $0x4] sm:$0x1]
    %v781 = vadd.f32 %v203, %v775
    %v782 = vadd.f32 %v224, %v777
    %v783 = vsel %vm91, %v781, 0.0
    %784 = vadd.xlane.f32.xlu0 %v783
    %v785 = vpop.xlane.xlu0 %784
    %v786 = vsel %vm91, %v782, 0.0
    %787 = vadd.xlane.f32.xlu0 %v786
    %v788 = vpop.xlane.xlu0 %787
    %v789 = vrcp.pop 16.0
    %v790 = vmul.f32 16.0, %v789
    %v791 = vsub.f32 1.0, %v790
    %v792 = vmul.f32 %v789, %v791
    %v793 = vadd.f32 %v789, %v792
    %vm794 = vweird.f32 %v789
    %v795 = vsel %vm794, %v789, %v793
    %v796 = vmul.f32 %v785, %v795
    %v797 = vmul.f32 %v788, %v795
    %v798 = vsub.f32 %v781, %v796
    %v799 = vsub.f32 %v782, %v797
    %v800 = vmul.f32 %v798, %v798
    %v801 = vmul.f32 %v799, %v799
    %v802 = vsel %vm91, %v800, 0.0
    %803 = vadd.xlane.f32.xlu0 %v802
    %v804 = vpop.xlane.xlu0 %803
    %v805 = vsel %vm91, %v801, 0.0
    %806 = vadd.xlane.f32.xlu0 %v805
    %v807 = vpop.xlane.xlu0 %806
    %v808 = vmul.f32 %v804, %v795
    %v809 = vmul.f32 %v807, %v795
    %v810 = vadd.f32 %v808, 1e-05
    %v811 = vadd.f32 %v809, 1e-05
    %v812 = vrsqrt.pop %v810
    %v813 = vmul.f32 %v812, %v810
    %v814 = vmul.f32 %v813, %v812
    %v815 = vmul.f32 0.5, %v814
    %v816 = vsub.f32 1.5, %v815
    %v817 = vmul.f32 %v812, %v816
    %vm818 = vweird.f32 %v810
    %vm819 = vweird.f32 %v812
    %vm820 = vmor %vm818, %vm819
    %v821 = vsel %vm820, %v812, %v817
    %v822 = vrsqrt.pop %v811
    %v823 = vmul.f32 %v822, %v811
    %v824 = vmul.f32 %v823, %v822
    %v825 = vmul.f32 0.5, %v824
    %v826 = vsub.f32 1.5, %v825
    %v827 = vmul.f32 %v822, %v826
    %vm828 = vweird.f32 %v811
    %vm829 = vweird.f32 %v822
    %vm830 = vmor %vm828, %vm829
    %v831 = vsel %vm830, %v822, %v827
    %v832 = vmul.f32 %v798, %v821
    %v833 = vmul.f32 %v799, %v831
    %v834 = vperm.slane %v779, 0
    %v835 = vmul.f32 %v832, %v834
    %v836 = vmul.f32 %v833, %v834
    %v837 = vperm.slane %v780, 0
    %v838 = vadd.f32 %v835, %v837
    %v839 = vadd.f32 %v836, %v837
    %v840 = vld [vmem:[#allocation6 + $0x18] sm:$0xf]
    %v841 = vld [vmem:[#allocation6 + $0x1c] sm:$0xf]
    %v842 = vpack.c.bf16 %v838, %v838
    %v843 = vpack.c.bf16 %v839, %v839
    %v844 = vld [vmem:[#allocation8 + $0x5] sm:$0x1]
    %v845 = vperm.slane %v844, 0
    %v848 = vunpack.c.l.b16 %v842
    %v849 = vunpack.c.l.b16 %v843
    %v850 = vpack.c.b16 %v849, %v848
    %v853 = vunpack.c.l.b16 %v840
    %v854 = vunpack.c.l.b16 %v841
    %v855 = vpack.c.b16 %v854, %v853
    %v858 = vsel %vm91, %v850, 0
    %860 = vmatpush.bf16.msra.mxu0 0
    %861 = vmatpush.bf16.msra.mxu0 0
    %862 = vmatpush.bf16.msra.mxu0 0
    %863 = vmatpush.bf16.msra.mxu0 0
    %864 = vmatpush.bf16.msra.mxu0 0
    %865 = vmatpush.bf16.msra.mxu0 0
    %866 = vmatpush.bf16.msra.mxu0 0
    %867 = vmatpush.bf16.msra.mxu0 %v855
    %868 = vmatmul.bf16.gmra.mxu0 %v858
    %v869 = vpop.f32.mrf.mxu0
    %v870 = vadd.f32 %v845, %v869
    %v871 = vpop.f32.mrf.mxu0
    %v872 = vadd.f32 %v845, %v871
    %873 = vdwg.mxu0
    %v874 = vmax.f32 %v870, 0.0
    %v875 = vmax.f32 %v872, 0.0
    %v876 = vld [vmem:[#allocation6 + $0x20] sm:$0xf]
    %v877 = vld [vmem:[#allocation6 + $0x24] sm:$0xf]
    %v878 = vld [vmem:[#allocation6 + $0x28] sm:$0xf]
    %v879 = vld [vmem:[#allocation6 + $0x2c] sm:$0xf]
    %v880 = vld [vmem:[#allocation6 + $0x30] sm:$0xf]
    %v881 = vld [vmem:[#allocation6 + $0x34] sm:$0xf]
    %v882 = vld [vmem:[#allocation6 + $0x38] sm:$0xf]
    %v883 = vld [vmem:[#allocation6 + $0x3c] sm:$0xf]
    %v884 = vpack.c.bf16 %v874, %v874
    %v885 = vpack.c.bf16 %v875, %v875
    %v886 = vld [vmem:[#allocation8 + $0x6] sm:$0x1]
    %v887 = vperm.slane %v886, 0
    %v890 = vunpack.c.l.b16 %v884
    %v891 = vunpack.c.l.b16 %v885
    %v892 = vpack.c.b16 %v891, %v890
    %v901 = vunpack.c.l.b16 %v876
    %v902 = vunpack.c.l.b16 %v877
    %v903 = vunpack.c.l.b16 %v878
    %v904 = vunpack.c.l.b16 %v879
    %v905 = vunpack.c.l.b16 %v880
    %v906 = vunpack.c.l.b16 %v881
    %v907 = vunpack.c.l.b16 %v882
    %v908 = vunpack.c.l.b16 %v883
    %v909 = vpack.c.b16 %v902, %v901
    %v910 = vpack.c.b16 %v904, %v903
    %v911 = vpack.c.b16 %v906, %v905
    %v912 = vpack.c.b16 %v908, %v907
    %vm917 = vcmask 523264
    %v919 = vsel %vm917, %v892, 0
    %921 = vmatpush.bf16.msra.mxu0 0
    %922 = vmatpush.bf16.msra.mxu0 0
    %923 = vmatpush.bf16.msra.mxu0 0
    %924 = vmatpush.bf16.msra.mxu0 0
    %925 = vmatpush.bf16.msra.mxu0 %v912
    %926 = vmatpush.bf16.msra.mxu0 %v911
    %927 = vmatpush.bf16.msra.mxu0 %v910
    %928 = vmatpush.bf16.msra.mxu0 %v909
    %929 = vmatmul.bf16.gmra.mxu0 %v919
    %v930 = vpop.f32.mrf.mxu0
    %v931 = vadd.f32 %v887, %v930
    %v932 = vpop.f32.mrf.mxu0
    %v933 = vadd.f32 %v887, %v932
    %934 = vdwg.mxu0
    %v935 = vld [vmem:[#allocation8 + $0x7] sm:$0x1]
    %v936 = vld [vmem:[#allocation8 + $0x8] sm:$0x1]
    %v937 = vadd.f32 %v838, %v931
    %v938 = vadd.f32 %v839, %v933
    %v939 = vsel %vm91, %v937, 0.0
    %940 = vadd.xlane.f32.xlu0 %v939
    %v941 = vpop.xlane.xlu0 %940
    %v942 = vsel %vm91, %v938, 0.0
    %943 = vadd.xlane.f32.xlu0 %v942
    %v944 = vpop.xlane.xlu0 %943
    %v945 = vmul.f32 %v941, %v795
    %v946 = vmul.f32 %v944, %v795
    %v947 = vsub.f32 %v937, %v945
    %v948 = vsub.f32 %v938, %v946
    %v949 = vmul.f32 %v947, %v947
    %v950 = vmul.f32 %v948, %v948
    %v951 = vsel %vm91, %v949, 0.0
    %952 = vadd.xlane.f32.xlu0 %v951
    %v953 = vpop.xlane.xlu0 %952
    %v954 = vsel %vm91, %v950, 0.0
    %955 = vadd.xlane.f32.xlu0 %v954
    %v956 = vpop.xlane.xlu0 %955
    %v957 = vmul.f32 %v953, %v795
    %v958 = vmul.f32 %v956, %v795
    %v959 = vadd.f32 %v957, 1e-05
    %v960 = vadd.f32 %v958, 1e-05
    %v961 = vrsqrt.pop %v959
    %v962 = vmul.f32 %v961, %v959
    %v963 = vmul.f32 %v962, %v961
    %v964 = vmul.f32 0.5, %v963
    %v965 = vsub.f32 1.5, %v964
    %v966 = vmul.f32 %v961, %v965
    %vm967 = vweird.f32 %v959
    %vm968 = vweird.f32 %v961
    %vm969 = vmor %vm967, %vm968
    %v970 = vsel %vm969, %v961, %v966
    %v971 = vrsqrt.pop %v960
    %v972 = vmul.f32 %v971, %v960
    %v973 = vmul.f32 %v972, %v971
    %v974 = vmul.f32 0.5, %v973
    %v975 = vsub.f32 1.5, %v974
    %v976 = vmul.f32 %v971, %v975
    %vm977 = vweird.f32 %v960
    %vm978 = vweird.f32 %v971
    %vm979 = vmor %vm977, %vm978
    %v980 = vsel %vm979, %v971, %v976
    %v981 = vmul.f32 %v947, %v970
    %v982 = vmul.f32 %v948, %v980
    %v983 = vperm.slane %v935, 0
    %v984 = vmul.f32 %v981, %v983
    %v985 = vmul.f32 %v982, %v983
    %v986 = vperm.slane %v936, 0
    %v987 = vadd.f32 %v984, %v986
    %v988 = vadd.f32 %v985, %v986
    %v989 = vld [vmem:[#allocation6 + $0x40] sm:$0xf]
    %v990 = vld [vmem:[#allocation6 + $0x44] sm:$0xf]
    %v991 = vpack.c.bf16 %v987, %v987
    %v992 = vpack.c.bf16 %v988, %v988
    %v993 = vld [vmem:[#allocation8 + $0x9] sm:$0x1]
    %v994 = vperm.slane %v993, 0
    %v997 = vunpack.c.l.b16 %v991
    %v998 = vunpack.c.l.b16 %v992
    %v999 = vpack.c.b16 %v998, %v997
    %v1002 = vunpack.c.l.b16 %v989
    %v1003 = vunpack.c.l.b16 %v990
    %v1004 = vpack.c.b16 %v1003, %v1002
    %v1007 = vsel %vm91, %v999, 0
    %1009 = vmatpush.bf16.msra.mxu0 0
    %1010 = vmatpush.bf16.msra.mxu0 0
    %1011 = vmatpush.bf16.msra.mxu0 0
    %1012 = vmatpush.bf16.msra.mxu0 0
    %1013 = vmatpush.bf16.msra.mxu0 0
    %1014 = vmatpush.bf16.msra.mxu0 0
    %1015 = vmatpush.bf16.msra.mxu0 0
    %1016 = vmatpush.bf16.msra.mxu0 %v1004
    %1017 = vmatmul.bf16.gmra.mxu0 %v1007
    %v1018 = vpop.f32.mrf.mxu0
    %v1019 = vadd.f32 %v994, %v1018
    %v1020 = vpop.f32.mrf.mxu0
    %v1021 = vadd.f32 %v994, %v1020
    %1022 = vdwg.mxu0
    %v1023 = vpack.c.bf16 %v1019, %v1019
    %v1024 = vpack.c.bf16 %v1021, %v1021
    %v1026 = vunpack.c.l.b16 %v1023
    %v1027 = vpack.c.b16 %v1026, %v1026
    %1028 = vrot.lane.b32.xlu0 %v1027, 112
    %v1029 = vpop.permute.xlu0 %1028
    %v1031 = vsel %vm268, %v1023, 0
    %v1034 = vsel %vm268, %v1029, 0
    %1036 = vmatpush.bf16.xpose.msra.mxu0 0
    %1037 = vmatpush.bf16.xpose.msra.mxu0 0
    %1038 = vmatpush.bf16.xpose.msra.mxu0 0
    %1039 = vmatpush.bf16.xpose.msra.mxu0 0
    %1040 = vmatpush.bf16.xpose.msra.mxu0 0
    %1041 = vmatpush.bf16.xpose.msra.mxu0 0
    %1042 = vmatpush.bf16.xpose.msra.mxu0 0
    %1043 = vmatpush.bf16.xpose.msra.mxu0 %v1034
    %1044 = vmatmul.bf16.gmra.mxu0 %v1031
    %v1045 = vpop.f32.mrf.mxu0
    %v1046 = vadd.f32 0.0, %v1045
    %v1047 = vpop.f32.mrf.mxu0
    %1048 = vdwg.mxu0
    %v1050 = vunpack.c.l.b16 %v1024
    %v1051 = vpack.c.b16 %v1050, %v1050
    %1052 = vrot.lane.b32.xlu0 %v1051, 112
    %v1053 = vpop.permute.xlu0 %1052
    %v1055 = vsel %vm268, %v1024, 0
    %v1058 = vsel %vm268, %v1053, 0
    %1060 = vmatpush.bf16.xpose.msra.mxu0 0
    %1061 = vmatpush.bf16.xpose.msra.mxu0 0
    %1062 = vmatpush.bf16.xpose.msra.mxu0 0
    %1063 = vmatpush.bf16.xpose.msra.mxu0 0
    %1064 = vmatpush.bf16.xpose.msra.mxu0 0
    %1065 = vmatpush.bf16.xpose.msra.mxu0 0
    %1066 = vmatpush.bf16.xpose.msra.mxu0 0
    %1067 = vmatpush.bf16.xpose.msra.mxu0 %v1058
    %1068 = vmatmul.bf16.gmra.mxu0 %v1055
    %v1069 = vpop.f32.mrf.mxu0
    %v1070 = vadd.f32 0.0, %v1069
    %v1071 = vpop.f32.mrf.mxu0
    %1072 = vdwg.mxu0
    %v1073 = vsel %vm159, %v1046, -inf
    %1074 = vmax.xlane.f32.xlu0 %v1073
    %v1075 = vpop.xlane.xlu0 %1074
    %v1076 = vsel %vm159, %v1070, -inf
    %1077 = vmax.xlane.f32.xlu0 %v1076
    %v1078 = vpop.xlane.xlu0 %1077
    %v1079 = vsub.f32 %v1046, %v1075
    %v1080 = vsub.f32 %v1070, %v1078
    %v1081 = vmul.f32 %v1079, 1.442695
    %v1082 = vpow.pop %v1081
    %v1083 = vmul.f32 %v1080, 1.442695
    %v1084 = vpow.pop %v1083
    %v1085 = vsel %vm159, %v1082, 0.0
    %1086 = vadd.xlane.f32.xlu0 %v1085
    %v1087 = vpop.xlane.xlu0 %1086
    %v1088 = vsel %vm159, %v1084, 0.0
    %1089 = vadd.xlane.f32.xlu0 %v1088
    %v1090 = vpop.xlane.xlu0 %1089
    %v1091 = vrcp.pop %v1087
    %v1092 = vrcp.pop %v1090
    %v1093 = vmul.f32 %v1082, %v1091
    %v1094 = vmul.f32 %v1084, %v1092
    %v1095 = vpack.c.bf16 %v1093, %v1093
    %v1096 = vpack.c.bf16 %v1094, %v1094
    %1097 = vrot.lane.b32.xlu0 %v1027, 96
    %v1098 = vpop.permute.xlu0 %1097
    %v1100 = vsel %vm159, %v1095, 0
    %v1103 = vsel %vm189, %v1098, 0
    %1105 = vmatpush.bf16.msra.mxu0 0
    %1106 = vmatpush.bf16.msra.mxu0 0
    %1107 = vmatpush.bf16.msra.mxu0 0
    %1108 = vmatpush.bf16.msra.mxu0 0
    %1109 = vmatpush.bf16.msra.mxu0 0
    %1110 = vmatpush.bf16.msra.mxu0 0
    %1111 = vmatpush.bf16.msra.mxu0 0
    %1112 = vmatpush.bf16.msra.mxu0 %v1103
    %1113 = vmatmul.bf16.gmra.mxu0 %v1100
    %v1114 = vpop.f32.mrf.mxu0
    %v1115 = vadd.f32 0.0, %v1114
    %v1116 = vpop.f32.mrf.mxu0
    %1117 = vdwg.mxu0
    %1118 = vrot.lane.b32.xlu0 %v1051, 96
    %v1119 = vpop.permute.xlu0 %1118
    %v1121 = vsel %vm159, %v1096, 0
    %v1124 = vsel %vm189, %v1119, 0
    %1126 = vmatpush.bf16.msra.mxu0 0
    %1127 = vmatpush.bf16.msra.mxu0 0
    %1128 = vmatpush.bf16.msra.mxu0 0
    %1129 = vmatpush.bf16.msra.mxu0 0
    %1130 = vmatpush.bf16.msra.mxu0 0
    %1131 = vmatpush.bf16.msra.mxu0 0
    %1132 = vmatpush.bf16.msra.mxu0 0
    %1133 = vmatpush.bf16.msra.mxu0 %v1124
    %1134 = vmatmul.bf16.gmra.mxu0 %v1121
    %v1135 = vpop.f32.mrf.mxu0
    %v1136 = vadd.f32 0.0, %v1135
    %v1137 = vpop.f32.mrf.mxu0
    %1138 = vdwg.mxu0
    %1139 = vrot.lane.b32.xlu0 %v1027, 124
    %v1140 = vpop.permute.xlu0 %1139
    %1141 = vrot.lane.b32.xlu0 %v1027, 108
    %v1142 = vpop.permute.xlu0 %1141
    %v1144 = vsel %vm268, %v1140, 0
    %v1147 = vsel %vm268, %v1142, 0
    %1149 = vmatpush.bf16.xpose.msra.mxu0 0
    %1150 = vmatpush.bf16.xpose.msra.mxu0 0
    %1151 = vmatpush.bf16.xpose.msra.mxu0 0
    %1152 = vmatpush.bf16.xpose.msra.mxu0 0
    %1153 = vmatpush.bf16.xpose.msra.mxu0 0
    %1154 = vmatpush.bf16.xpose.msra.mxu0 0
    %1155 = vmatpush.bf16.xpose.msra.mxu0 0
    %1156 = vmatpush.bf16.xpose.msra.mxu0 %v1147
    %1157 = vmatmul.bf16.gmra.mxu0 %v1144
    %v1158 = vpop.f32.mrf.mxu0
    %v1159 = vadd.f32 0.0, %v1158
    %v1160 = vpop.f32.mrf.mxu0
    %1161 = vdwg.mxu0
    %1162 = vrot.lane.b32.xlu0 %v1051, 124
    %v1163 = vpop.permute.xlu0 %1162
    %1164 = vrot.lane.b32.xlu0 %v1051, 108
    %v1165 = vpop.permute.xlu0 %1164
    %v1167 = vsel %vm268, %v1163, 0
    %v1170 = vsel %vm268, %v1165, 0
    %1172 = vmatpush.bf16.xpose.msra.mxu0 0
    %1173 = vmatpush.bf16.xpose.msra.mxu0 0
    %1174 = vmatpush.bf16.xpose.msra.mxu0 0
    %1175 = vmatpush.bf16.xpose.msra.mxu0 0
    %1176 = vmatpush.bf16.xpose.msra.mxu0 0
    %1177 = vmatpush.bf16.xpose.msra.mxu0 0
    %1178 = vmatpush.bf16.xpose.msra.mxu0 0
    %1179 = vmatpush.bf16.xpose.msra.mxu0 %v1170
    %1180 = vmatmul.bf16.gmra.mxu0 %v1167
    %v1181 = vpop.f32.mrf.mxu0
    %v1182 = vadd.f32 0.0, %v1181
    %v1183 = vpop.f32.mrf.mxu0
    %1184 = vdwg.mxu0
    %v1185 = vsel %vm159, %v1159, -inf
    %1186 = vmax.xlane.f32.xlu0 %v1185
    %v1187 = vpop.xlane.xlu0 %1186
    %v1188 = vsel %vm159, %v1182, -inf
    %1189 = vmax.xlane.f32.xlu0 %v1188
    %v1190 = vpop.xlane.xlu0 %1189
    %v1191 = vsub.f32 %v1159, %v1187
    %v1192 = vsub.f32 %v1182, %v1190
    %v1193 = vmul.f32 %v1191, 1.442695
    %v1194 = vpow.pop %v1193
    %v1195 = vmul.f32 %v1192, 1.442695
    %v1196 = vpow.pop %v1195
    %v1197 = vsel %vm159, %v1194, 0.0
    %1198 = vadd.xlane.f32.xlu0 %v1197
    %v1199 = vpop.xlane.xlu0 %1198
    %v1200 = vsel %vm159, %v1196, 0.0
    %1201 = vadd.xlane.f32.xlu0 %v1200
    %v1202 = vpop.xlane.xlu0 %1201
    %v1203 = vrcp.pop %v1199
    %v1204 = vrcp.pop %v1202
    %v1205 = vmul.f32 %v1194, %v1203
    %v1206 = vmul.f32 %v1196, %v1204
    %v1207 = vpack.c.bf16 %v1205, %v1205
    %v1208 = vpack.c.bf16 %v1206, %v1206
    %1209 = vrot.lane.b32.xlu0 %v1027, 92
    %v1210 = vpop.permute.xlu0 %1209
    %v1212 = vsel %vm159, %v1207, 0
    %v1215 = vsel %vm189, %v1210, 0
    %1217 = vmatpush.bf16.msra.mxu0 0
    %1218 = vmatpush.bf16.msra.mxu0 0
    %1219 = vmatpush.bf16.msra.mxu0 0
    %1220 = vmatpush.bf16.msra.mxu0 0
    %1221 = vmatpush.bf16.msra.mxu0 0
    %1222 = vmatpush.bf16.msra.mxu0 0
    %1223 = vmatpush.bf16.msra.mxu0 0
    %1224 = vmatpush.bf16.msra.mxu0 %v1215
    %1225 = vmatmul.bf16.gmra.mxu0 %v1212
    %v1226 = vpop.f32.mrf.mxu0
    %v1227 = vadd.f32 0.0, %v1226
    %v1228 = vpop.f32.mrf.mxu0
    %1229 = vdwg.mxu0
    %1230 = vrot.lane.b32.xlu0 %v1051, 92
    %v1231 = vpop.permute.xlu0 %1230
    %v1233 = vsel %vm159, %v1208, 0
    %v1236 = vsel %vm189, %v1231, 0
    %1238 = vmatpush.bf16.msra.mxu0 0
    %1239 = vmatpush.bf16.msra.mxu0 0
    %1240 = vmatpush.bf16.msra.mxu0 0
    %1241 = vmatpush.bf16.msra.mxu0 0
    %1242 = vmatpush.bf16.msra.mxu0 0
    %1243 = vmatpush.bf16.msra.mxu0 0
    %1244 = vmatpush.bf16.msra.mxu0 0
    %1245 = vmatpush.bf16.msra.mxu0 %v1236
    %1246 = vmatmul.bf16.gmra.mxu0 %v1233
    %v1247 = vpop.f32.mrf.mxu0
    %v1248 = vadd.f32 0.0, %v1247
    %v1249 = vpop.f32.mrf.mxu0
    %1250 = vdwg.mxu0
    %1251 = vrot.lane.b32.xlu0 %v1027, 120
    %v1252 = vpop.permute.xlu0 %1251
    %1253 = vrot.lane.b32.xlu0 %v1027, 104
    %v1254 = vpop.permute.xlu0 %1253
    %v1256 = vsel %vm268, %v1252, 0
    %v1259 = vsel %vm268, %v1254, 0
    %1261 = vmatpush.bf16.xpose.msra.mxu0 0
    %1262 = vmatpush.bf16.xpose.msra.mxu0 0
    %1263 = vmatpush.bf16.xpose.msra.mxu0 0
    %1264 = vmatpush.bf16.xpose.msra.mxu0 0
    %1265 = vmatpush.bf16.xpose.msra.mxu0 0
    %1266 = vmatpush.bf16.xpose.msra.mxu0 0
    %1267 = vmatpush.bf16.xpose.msra.mxu0 0
    %1268 = vmatpush.bf16.xpose.msra.mxu0 %v1259
    %1269 = vmatmul.bf16.gmra.mxu0 %v1256
    %v1270 = vpop.f32.mrf.mxu0
    %v1271 = vadd.f32 0.0, %v1270
    %v1272 = vpop.f32.mrf.mxu0
    %1273 = vdwg.mxu0
    %1274 = vrot.lane.b32.xlu0 %v1051, 120
    %v1275 = vpop.permute.xlu0 %1274
    %1276 = vrot.lane.b32.xlu0 %v1051, 104
    %v1277 = vpop.permute.xlu0 %1276
    %v1279 = vsel %vm268, %v1275, 0
    %v1282 = vsel %vm268, %v1277, 0
    %1284 = vmatpush.bf16.xpose.msra.mxu0 0
    %1285 = vmatpush.bf16.xpose.msra.mxu0 0
    %1286 = vmatpush.bf16.xpose.msra.mxu0 0
    %1287 = vmatpush.bf16.xpose.msra.mxu0 0
    %1288 = vmatpush.bf16.xpose.msra.mxu0 0
    %1289 = vmatpush.bf16.xpose.msra.mxu0 0
    %1290 = vmatpush.bf16.xpose.msra.mxu0 0
    %1291 = vmatpush.bf16.xpose.msra.mxu0 %v1282
    %1292 = vmatmul.bf16.gmra.mxu0 %v1279
    %v1293 = vpop.f32.mrf.mxu0
    %v1294 = vadd.f32 0.0, %v1293
    %v1295 = vpop.f32.mrf.mxu0
    %1296 = vdwg.mxu0
    %v1297 = vsel %vm159, %v1271, -inf
    %1298 = vmax.xlane.f32.xlu0 %v1297
    %v1299 = vpop.xlane.xlu0 %1298
    %v1300 = vsel %vm159, %v1294, -inf
    %1301 = vmax.xlane.f32.xlu0 %v1300
    %v1302 = vpop.xlane.xlu0 %1301
    %v1303 = vsub.f32 %v1271, %v1299
    %v1304 = vsub.f32 %v1294, %v1302
    %v1305 = vmul.f32 %v1303, 1.442695
    %v1306 = vpow.pop %v1305
    %v1307 = vmul.f32 %v1304, 1.442695
    %v1308 = vpow.pop %v1307
    %v1309 = vsel %vm159, %v1306, 0.0
    %1310 = vadd.xlane.f32.xlu0 %v1309
    %v1311 = vpop.xlane.xlu0 %1310
    %v1312 = vsel %vm159, %v1308, 0.0
    %1313 = vadd.xlane.f32.xlu0 %v1312
    %v1314 = vpop.xlane.xlu0 %1313
    %v1315 = vrcp.pop %v1311
    %v1316 = vrcp.pop %v1314
    %v1317 = vmul.f32 %v1306, %v1315
    %v1318 = vmul.f32 %v1308, %v1316
    %v1319 = vpack.c.bf16 %v1317, %v1317
    %v1320 = vpack.c.bf16 %v1318, %v1318
    %1321 = vrot.lane.b32.xlu0 %v1027, 88
    %v1322 = vpop.permute.xlu0 %1321
    %v1324 = vsel %vm159, %v1319, 0
    %v1327 = vsel %vm189, %v1322, 0
    %1329 = vmatpush.bf16.msra.mxu0 0
    %1330 = vmatpush.bf16.msra.mxu0 0
    %1331 = vmatpush.bf16.msra.mxu0 0
    %1332 = vmatpush.bf16.msra.mxu0 0
    %1333 = vmatpush.bf16.msra.mxu0 0
    %1334 = vmatpush.bf16.msra.mxu0 0
    %1335 = vmatpush.bf16.msra.mxu0 0
    %1336 = vmatpush.bf16.msra.mxu0 %v1327
    %1337 = vmatmul.bf16.gmra.mxu0 %v1324
    %v1338 = vpop.f32.mrf.mxu0
    %v1339 = vadd.f32 0.0, %v1338
    %v1340 = vpop.f32.mrf.mxu0
    %1341 = vdwg.mxu0
    %1342 = vrot.lane.b32.xlu0 %v1051, 88
    %v1343 = vpop.permute.xlu0 %1342
    %v1345 = vsel %vm159, %v1320, 0
    %v1348 = vsel %vm189, %v1343, 0
    %1350 = vmatpush.bf16.msra.mxu0 0
    %1351 = vmatpush.bf16.msra.mxu0 0
    %1352 = vmatpush.bf16.msra.mxu0 0
    %1353 = vmatpush.bf16.msra.mxu0 0
    %1354 = vmatpush.bf16.msra.mxu0 0
    %1355 = vmatpush.bf16.msra.mxu0 0
    %1356 = vmatpush.bf16.msra.mxu0 0
    %1357 = vmatpush.bf16.msra.mxu0 %v1348
    %1358 = vmatmul.bf16.gmra.mxu0 %v1345
    %v1359 = vpop.f32.mrf.mxu0
    %v1360 = vadd.f32 0.0, %v1359
    %v1361 = vpop.f32.mrf.mxu0
    %1362 = vdwg.mxu0
    %1363 = vrot.lane.b32.xlu0 %v1027, 116
    %v1364 = vpop.permute.xlu0 %1363
    %1365 = vrot.lane.b32.xlu0 %v1027, 100
    %v1366 = vpop.permute.xlu0 %1365
    %v1368 = vsel %vm268, %v1364, 0
    %v1371 = vsel %vm268, %v1366, 0
    %1373 = vmatpush.bf16.xpose.msra.mxu0 0
    %1374 = vmatpush.bf16.xpose.msra.mxu0 0
    %1375 = vmatpush.bf16.xpose.msra.mxu0 0
    %1376 = vmatpush.bf16.xpose.msra.mxu0 0
    %1377 = vmatpush.bf16.xpose.msra.mxu0 0
    %1378 = vmatpush.bf16.xpose.msra.mxu0 0
    %1379 = vmatpush.bf16.xpose.msra.mxu0 0
    %1380 = vmatpush.bf16.xpose.msra.mxu0 %v1371
    %1381 = vmatmul.bf16.gmra.mxu0 %v1368
    %v1382 = vpop.f32.mrf.mxu0
    %v1383 = vadd.f32 0.0, %v1382
    %v1384 = vpop.f32.mrf.mxu0
    %1385 = vdwg.mxu0
    %1386 = vrot.lane.b32.xlu0 %v1051, 116
    %v1387 = vpop.permute.xlu0 %1386
    %1388 = vrot.lane.b32.xlu0 %v1051, 100
    %v1389 = vpop.permute.xlu0 %1388
    %v1391 = vsel %vm268, %v1387, 0
    %v1394 = vsel %vm268, %v1389, 0
    %1396 = vmatpush.bf16.xpose.msra.mxu0 0
    %1397 = vmatpush.bf16.xpose.msra.mxu0 0
    %1398 = vmatpush.bf16.xpose.msra.mxu0 0
    %1399 = vmatpush.bf16.xpose.msra.mxu0 0
    %1400 = vmatpush.bf16.xpose.msra.mxu0 0
    %1401 = vmatpush.bf16.xpose.msra.mxu0 0
    %1402 = vmatpush.bf16.xpose.msra.mxu0 0
    %1403 = vmatpush.bf16.xpose.msra.mxu0 %v1394
    %1404 = vmatmul.bf16.gmra.mxu0 %v1391
    %v1405 = vpop.f32.mrf.mxu0
    %v1406 = vadd.f32 0.0, %v1405
    %v1407 = vpop.f32.mrf.mxu0
    %1408 = vdwg.mxu0
    %v1409 = vsel %vm159, %v1383, -inf
    %1410 = vmax.xlane.f32.xlu0 %v1409
    %v1411 = vpop.xlane.xlu0 %1410
    %v1412 = vsel %vm159, %v1406, -inf
    %1413 = vmax.xlane.f32.xlu0 %v1412
    %v1414 = vpop.xlane.xlu0 %1413
    %v1415 = vsub.f32 %v1383, %v1411
    %v1416 = vsub.f32 %v1406, %v1414
    %v1417 = vmul.f32 %v1415, 1.442695
    %v1418 = vpow.pop %v1417
    %v1419 = vmul.f32 %v1416, 1.442695
    %v1420 = vpow.pop %v1419
    %v1421 = vsel %vm159, %v1418, 0.0
    %1422 = vadd.xlane.f32.xlu0 %v1421
    %v1423 = vpop.xlane.xlu0 %1422
    %v1424 = vsel %vm159, %v1420, 0.0
    %1425 = vadd.xlane.f32.xlu0 %v1424
    %v1426 = vpop.xlane.xlu0 %1425
    %v1427 = vrcp.pop %v1423
    %v1428 = vrcp.pop %v1426
    %v1429 = vmul.f32 %v1418, %v1427
    %v1430 = vmul.f32 %v1420, %v1428
    %v1431 = vpack.c.bf16 %v1429, %v1429
    %v1432 = vpack.c.bf16 %v1430, %v1430
    %1433 = vrot.lane.b32.xlu0 %v1027, 84
    %v1434 = vpop.permute.xlu0 %1433
    %v1436 = vsel %vm159, %v1431, 0
    %v1439 = vsel %vm189, %v1434, 0
    %1441 = vmatpush.bf16.msra.mxu0 0
    %1442 = vmatpush.bf16.msra.mxu0 0
    %1443 = vmatpush.bf16.msra.mxu0 0
    %1444 = vmatpush.bf16.msra.mxu0 0
    %1445 = vmatpush.bf16.msra.mxu0 0
    %1446 = vmatpush.bf16.msra.mxu0 0
    %1447 = vmatpush.bf16.msra.mxu0 0
    %1448 = vmatpush.bf16.msra.mxu0 %v1439
    %1449 = vmatmul.bf16.gmra.mxu0 %v1436
    %v1450 = vpop.f32.mrf.mxu0
    %v1451 = vadd.f32 0.0, %v1450
    %v1452 = vpop.f32.mrf.mxu0
    %1453 = vdwg.mxu0
    %1454 = vrot.lane.b32.xlu0 %v1051, 84
    %v1455 = vpop.permute.xlu0 %1454
    %v1457 = vsel %vm159, %v1432, 0
    %v1460 = vsel %vm189, %v1455, 0
    %1462 = vmatpush.bf16.msra.mxu0 0
    %1463 = vmatpush.bf16.msra.mxu0 0
    %1464 = vmatpush.bf16.msra.mxu0 0
    %1465 = vmatpush.bf16.msra.mxu0 0
    %1466 = vmatpush.bf16.msra.mxu0 0
    %1467 = vmatpush.bf16.msra.mxu0 0
    %1468 = vmatpush.bf16.msra.mxu0 0
    %1469 = vmatpush.bf16.msra.mxu0 %v1460
    %1470 = vmatmul.bf16.gmra.mxu0 %v1457
    %v1471 = vpop.f32.mrf.mxu0
    %v1472 = vadd.f32 0.0, %v1471
    %v1473 = vpop.f32.mrf.mxu0
    %1474 = vdwg.mxu0
    %1477 = vrot.lane.b32.xlu0 %v1227, 4
    %v1478 = vpop.permute.xlu0 %1477
    %1479 = vrot.lane.b32.xlu0 %v1248, 4
    %v1480 = vpop.permute.xlu0 %1479
    %1485 = vrot.lane.b32.xlu0 %v1339, 8
    %v1486 = vpop.permute.xlu0 %1485
    %1487 = vrot.lane.b32.xlu0 %v1360, 8
    %v1488 = vpop.permute.xlu0 %1487
    %1493 = vrot.lane.b32.xlu0 %v1451, 12
    %v1494 = vpop.permute.xlu0 %1493
    %1495 = vrot.lane.b32.xlu0 %v1472, 12
    %v1496 = vpop.permute.xlu0 %1495
    %v1499 = vsel %vm268, %v1115, %v1478
    %v1500 = vsel %vm268, %v1136, %v1480
    %v1501 = vsel %vm159, %v1499, %v1486
    %v1502 = vsel %vm159, %v1500, %v1488
    %v1503 = vsel %vm742, %v1501, %v1494
    %v1504 = vsel %vm742, %v1502, %v1496
    %v1505 = vld [vmem:[#allocation6 + $0x48] sm:$0xf]
    %v1506 = vld [vmem:[#allocation6 + $0x4c] sm:$0xf]
    %v1507 = vpack.c.bf16 %v1503, %v1503
    %v1508 = vpack.c.bf16 %v1504, %v1504
    %v1509 = vld [vmem:[#allocation8 + $0xa] sm:$0x1]
    %v1510 = vperm.slane %v1509, 0
    %v1513 = vunpack.c.l.b16 %v1507
    %v1514 = vunpack.c.l.b16 %v1508
    %v1515 = vpack.c.b16 %v1514, %v1513
    %v1518 = vunpack.c.l.b16 %v1505
    %v1519 = vunpack.c.l.b16 %v1506
    %v1520 = vpack.c.b16 %v1519, %v1518
    %v1523 = vsel %vm91, %v1515, 0
    %1525 = vmatpush.bf16.msra.mxu0 0
    %1526 = vmatpush.bf16.msra.mxu0 0
    %1527 = vmatpush.bf16.msra.mxu0 0
    %1528 = vmatpush.bf16.msra.mxu0 0
    %1529 = vmatpush.bf16.msra.mxu0 0
    %1530 = vmatpush.bf16.msra.mxu0 0
    %1531 = vmatpush.bf16.msra.mxu0 0
    %1532 = vmatpush.bf16.msra.mxu0 %v1520
    %1533 = vmatmul.bf16.gmra.mxu0 %v1523
    %v1534 = vpop.f32.mrf.mxu0
    %v1535 = vadd.f32 %v1510, %v1534
    %v1536 = vpop.f32.mrf.mxu0
    %v1537 = vadd.f32 %v1510, %v1536
    %1538 = vdwg.mxu0
    %v1539 = vld [vmem:[#allocation8 + $0xb] sm:$0x1]
    %v1540 = vld [vmem:[#allocation8 + $0xc] sm:$0x1]
    %v1541 = vadd.f32 %v987, %v1535
    %v1542 = vadd.f32 %v988, %v1537
    %v1543 = vsel %vm91, %v1541, 0.0
    %1544 = vadd.xlane.f32.xlu0 %v1543
    %v1545 = vpop.xlane.xlu0 %1544
    %v1546 = vsel %vm91, %v1542, 0.0
    %1547 = vadd.xlane.f32.xlu0 %v1546
    %v1548 = vpop.xlane.xlu0 %1547
    %v1549 = vmul.f32 %v1545, %v795
    %v1550 = vmul.f32 %v1548, %v795
    %v1551 = vsub.f32 %v1541, %v1549
    %v1552 = vsub.f32 %v1542, %v1550
    %v1553 = vmul.f32 %v1551, %v1551
    %v1554 = vmul.f32 %v1552, %v1552
    %v1555 = vsel %vm91, %v1553, 0.0
    %1556 = vadd.xlane.f32.xlu0 %v1555
    %v1557 = vpop.xlane.xlu0 %1556
    %v1558 = vsel %vm91, %v1554, 0.0
    %1559 = vadd.xlane.f32.xlu0 %v1558
    %v1560 = vpop.xlane.xlu0 %1559
    %v1561 = vmul.f32 %v1557, %v795
    %v1562 = vmul.f32 %v1560, %v795
    %v1563 = vadd.f32 %v1561, 1e-05
    %v1564 = vadd.f32 %v1562, 1e-05
    %v1565 = vrsqrt.pop %v1563
    %v1566 = vmul.f32 %v1565, %v1563
    %v1567 = vmul.f32 %v1566, %v1565
    %v1568 = vmul.f32 0.5, %v1567
    %v1569 = vsub.f32 1.5, %v1568
    %v1570 = vmul.f32 %v1565, %v1569
    %vm1571 = vweird.f32 %v1563
    %vm1572 = vweird.f32 %v1565
    %vm1573 = vmor %vm1571, %vm1572
    %v1574 = vsel %vm1573, %v1565, %v1570
    %v1575 = vrsqrt.pop %v1564
    %v1576 = vmul.f32 %v1575, %v1564
    %v1577 = vmul.f32 %v1576, %v1575
    %v1578 = vmul.f32 0.5, %v1577
    %v1579 = vsub.f32 1.5, %v1578
    %v1580 = vmul.f32 %v1575, %v1579
    %vm1581 = vweird.f32 %v1564
    %vm1582 = vweird.f32 %v1575
    %vm1583 = vmor %vm1581, %vm1582
    %v1584 = vsel %vm1583, %v1575, %v1580
    %v1585 = vmul.f32 %v1551, %v1574
    %v1586 = vmul.f32 %v1552, %v1584
    %v1587 = vperm.slane %v1539, 0
    %v1588 = vmul.f32 %v1585, %v1587
    %v1589 = vmul.f32 %v1586, %v1587
    %v1590 = vperm.slane %v1540, 0
    %v1591 = vadd.f32 %v1588, %v1590
    %v1592 = vadd.f32 %v1589, %v1590
    %v1593 = vld [vmem:[#allocation6 + $0x50] sm:$0xf]
    %v1594 = vld [vmem:[#allocation6 + $0x54] sm:$0xf]
    %v1595 = vpack.c.bf16 %v1591, %v1591
    %v1596 = vpack.c.bf16 %v1592, %v1592
    %v1597 = vld [vmem:[#allocation8 + $0xd] sm:$0x1]
    %v1598 = vperm.slane %v1597, 0
    %v1601 = vunpack.c.l.b16 %v1595
    %v1602 = vunpack.c.l.b16 %v1596
    %v1603 = vpack.c.b16 %v1602, %v1601
    %v1606 = vunpack.c.l.b16 %v1593
    %v1607 = vunpack.c.l.b16 %v1594
    %v1608 = vpack.c.b16 %v1607, %v1606
    %v1611 = vsel %vm91, %v1603, 0
    %1613 = vmatpush.bf16.msra.mxu0 0
    %1614 = vmatpush.bf16.msra.mxu0 0
    %1615 = vmatpush.bf16.msra.mxu0 0
    %1616 = vmatpush.bf16.msra.mxu0 0
    %1617 = vmatpush.bf16.msra.mxu0 0
    %1618 = vmatpush.bf16.msra.mxu0 0
    %1619 = vmatpush.bf16.msra.mxu0 0
    %1620 = vmatpush.bf16.msra.mxu0 %v1608
    %1621 = vmatmul.bf16.gmra.mxu0 %v1611
    %v1622 = vpop.f32.mrf.mxu0
    %v1623 = vadd.f32 %v1598, %v1622
    %v1624 = vpop.f32.mrf.mxu0
    %v1625 = vadd.f32 %v1598, %v1624
    %1626 = vdwg.mxu0
    %v1627 = vmax.f32 %v1623, 0.0
    %v1628 = vmax.f32 %v1625, 0.0
    %v1629 = vld [vmem:[#allocation6 + $0x58] sm:$0xf]
    %v1630 = vld [vmem:[#allocation6 + $0x5c] sm:$0xf]
    %v1631 = vld [vmem:[#allocation6 + $0x60] sm:$0xf]
    %v1632 = vld [vmem:[#allocation6 + $0x64] sm:$0xf]
    %v1633 = vld [vmem:[#allocation6 + $0x68] sm:$0xf]
    %v1634 = vld [vmem:[#allocation6 + $0x6c] sm:$0xf]
    %v1635 = vld [vmem:[#allocation6 + $0x70] sm:$0xf]
    %v1636 = vld [vmem:[#allocation6 + $0x74] sm:$0xf]
    %v1637 = vpack.c.bf16 %v1627, %v1627
    %v1638 = vpack.c.bf16 %v1628, %v1628
    %v1639 = vld [vmem:[#allocation8 + $0xe] sm:$0x1]
    %v1640 = vperm.slane %v1639, 0
    %v1643 = vunpack.c.l.b16 %v1637
    %v1644 = vunpack.c.l.b16 %v1638
    %v1645 = vpack.c.b16 %v1644, %v1643
    %v1654 = vunpack.c.l.b16 %v1629
    %v1655 = vunpack.c.l.b16 %v1630
    %v1656 = vunpack.c.l.b16 %v1631
    %v1657 = vunpack.c.l.b16 %v1632
    %v1658 = vunpack.c.l.b16 %v1633
    %v1659 = vunpack.c.l.b16 %v1634
    %v1660 = vunpack.c.l.b16 %v1635
    %v1661 = vunpack.c.l.b16 %v1636
    %v1662 = vpack.c.b16 %v1655, %v1654
    %v1663 = vpack.c.b16 %v1657, %v1656
    %v1664 = vpack.c.b16 %v1659, %v1658
    %v1665 = vpack.c.b16 %v1661, %v1660
    %v1671 = vsel %vm917, %v1645, 0
    %1673 = vmatpush.bf16.msra.mxu0 0
    %1674 = vmatpush.bf16.msra.mxu0 0
    %1675 = vmatpush.bf16.msra.mxu0 0
    %1676 = vmatpush.bf16.msra.mxu0 0
    %1677 = vmatpush.bf16.msra.mxu0 %v1665
    %1678 = vmatpush.bf16.msra.mxu0 %v1664
    %1679 = vmatpush.bf16.msra.mxu0 %v1663
    %1680 = vmatpush.bf16.msra.mxu0 %v1662
    %1681 = vmatmul.bf16.gmra.mxu0 %v1671
    %v1682 = vpop.f32.mrf.mxu0
    %v1683 = vadd.f32 %v1640, %v1682
    %v1684 = vpop.f32.mrf.mxu0
    %v1685 = vadd.f32 %v1640, %v1684
    %1686 = vdwg.mxu0
    %v1687 = vld [vmem:[#allocation8 + $0xf] sm:$0x1]
    %v1688 = vld [vmem:[#allocation8 + $0x10] sm:$0x1]
    %v1689 = vadd.f32 %v1591, %v1683
    %v1690 = vadd.f32 %v1592, %v1685
    %v1691 = vsel %vm91, %v1689, 0.0
    %1692 = vadd.xlane.f32.xlu0 %v1691
    %v1693 = vpop.xlane.xlu0 %1692
    %v1694 = vsel %vm91, %v1690, 0.0
    %1695 = vadd.xlane.f32.xlu0 %v1694
    %v1696 = vpop.xlane.xlu0 %1695
    %v1697 = vmul.f32 %v1693, %v795
    %v1698 = vmul.f32 %v1696, %v795
    %v1699 = vsub.f32 %v1689, %v1697
    %v1700 = vsub.f32 %v1690, %v1698
    %v1701 = vmul.f32 %v1699, %v1699
    %v1702 = vmul.f32 %v1700, %v1700
    %v1703 = vsel %vm91, %v1701, 0.0
    %1704 = vadd.xlane.f32.xlu0 %v1703
    %v1705 = vpop.xlane.xlu0 %1704
    %v1706 = vsel %vm91, %v1702, 0.0
    %1707 = vadd.xlane.f32.xlu0 %v1706
    %v1708 = vpop.xlane.xlu0 %1707
    %v1709 = vmul.f32 %v1705, %v795
    %v1710 = vmul.f32 %v1708, %v795
    %v1711 = vadd.f32 %v1709, 1e-05
    %v1712 = vadd.f32 %v1710, 1e-05
    %v1713 = vrsqrt.pop %v1711
    %v1714 = vmul.f32 %v1713, %v1711
    %v1715 = vmul.f32 %v1714, %v1713
    %v1716 = vmul.f32 0.5, %v1715
    %v1717 = vsub.f32 1.5, %v1716
    %v1718 = vmul.f32 %v1713, %v1717
    %vm1719 = vweird.f32 %v1711
    %vm1720 = vweird.f32 %v1713
    %vm1721 = vmor %vm1719, %vm1720
    %v1722 = vsel %vm1721, %v1713, %v1718
    %v1723 = vrsqrt.pop %v1712
    %v1724 = vmul.f32 %v1723, %v1712
    %v1725 = vmul.f32 %v1724, %v1723
    %v1726 = vmul.f32 0.5, %v1725
    %v1727 = vsub.f32 1.5, %v1726
    %v1728 = vmul.f32 %v1723, %v1727
    %vm1729 = vweird.f32 %v1712
    %vm1730 = vweird.f32 %v1723
    %vm1731 = vmor %vm1729, %vm1730
    %v1732 = vsel %vm1731, %v1723, %v1728
    %v1733 = vmul.f32 %v1699, %v1722
    %v1734 = vmul.f32 %v1700, %v1732
    %v1735 = vperm.slane %v1687, 0
    %v1736 = vmul.f32 %v1733, %v1735
    %v1737 = vmul.f32 %v1734, %v1735
    %v1738 = vperm.slane %v1688, 0
    %v1739 = vadd.f32 %v1736, %v1738
    %v1740 = vadd.f32 %v1737, %v1738
    %v1741 = vmul.f32 %v1739, 0.1
    %v1742 = vmul.f32 %v1740, 0.1
    %v1743 = vadd.f32 %v62, %v1741
    %v1744 = vadd.f32 %v63, %v1742
    %v1745 = vld [vmem:[#allocation6 + $0x78] sm:$0xf]
    %v1746 = vld [vmem:[#allocation6 + $0x7c] sm:$0xf]
    %v1747 = vpack.c.bf16 %v1743, %v1743
    %v1748 = vpack.c.bf16 %v1744, %v1744
    %v1749 = vld [vmem:[#allocation8 + $0x11] sm:$0x1]
    %v1750 = vperm.slane %v1749, 0
    %v1753 = vunpack.c.l.b16 %v1747
    %v1754 = vunpack.c.l.b16 %v1748
    %v1755 = vpack.c.b16 %v1754, %v1753
    %v1758 = vunpack.c.l.b16 %v1745
    %v1759 = vunpack.c.l.b16 %v1746
    %v1760 = vpack.c.b16 %v1759, %v1758
    %v1763 = vsel %vm91, %v1755, 0
    %1765 = vmatpush.bf16.msra.mxu0 0
    %1766 = vmatpush.bf16.msra.mxu0 0
    %1767 = vmatpush.bf16.msra.mxu0 0
    %1768 = vmatpush.bf16.msra.mxu0 0
    %1769 = vmatpush.bf16.msra.mxu0 0
    %1770 = vmatpush.bf16.msra.mxu0 0
    %1771 = vmatpush.bf16.msra.mxu0 0
    %1772 = vmatpush.bf16.msra.mxu0 %v1760
    %1773 = vmatmul.bf16.gmra.mxu0 %v1763
    %v1774 = vpop.f32.mrf.mxu0
    %v1775 = vadd.f32 %v1750, %v1774
    %v1776 = vpop.f32.mrf.mxu0
    %v1777 = vadd.f32 %v1750, %v1776
    %1778 = vdwg.mxu0
    %v1779 = vld [vmem:[#allocation6 + $0x80] sm:$0xf]
    %v1780 = vld [vmem:[#allocation6 + $0x84] sm:$0xf]
    %v1781 = vld [vmem:[#allocation6 + $0x88] sm:$0xf]
    %v1782 = vld [vmem:[#allocation6 + $0x8c] sm:$0xf]
    %v1783 = vld [vmem:[#allocation6 + $0x90] sm:$0xf]
    %v1784 = vld [vmem:[#allocation6 + $0x94] sm:$0xf]
    %v1785 = vld [vmem:[#allocation6 + $0x98] sm:$0xf]
    %v1786 = vld [vmem:[#allocation6 + $0x9c] sm:$0xf]
    %v1787 = vld [vmem:[#allocation6 + $0xa0] sm:$0xf]
    %v1788 = vld [vmem:[#allocation6 + $0xa4] sm:$0xf]
    %v1789 = vld [vmem:[#allocation6 + $0xa8] sm:$0xf]
    %v1790 = vld [vmem:[#allocation6 + $0xac] sm:$0xf]
    %v1791 = vld [vmem:[#allocation8 + $0x12] sm:$0x1]
    %v1792 = vld [vmem:[#allocation8 + $0x13] sm:$0x1]
    %vm1793 = vcmask 261120
    %1794 = vst.msk [vmem:[#allocation2 + $0x8] sm:$0xff] %vm1793, %v1775
    %1795 = vst.msk [vmem:[#allocation2 + $0x20] sm:$0xff] %vm1793, %v1777
    %v1796 = vld [vmem:[#allocation2 + $0x7] sm:$0xff]
    %v1797 = vld [vmem:[#allocation2 + $0x1f] sm:$0xff]
    %v1798 = vld [vmem:[#allocation2 + $0x8] sm:$0xff]
    %v1799 = vld [vmem:[#allocation2 + $0x20] sm:$0xff]
    %v1800 = vld [vmem:[#allocation2 + $0x9] sm:$0xff]
    %v1801 = vld [vmem:[#allocation2 + $0x21] sm:$0xff]
    %1804 = vrot.lane.b32.xlu0 %v1798, 32
    %v1805 = vpop.permute.xlu0 %1804
    %1806 = vrot.lane.b32.xlu0 %v1799, 32
    %v1807 = vpop.permute.xlu0 %1806
    %1812 = vrot.lane.b32.xlu0 %v1800, 64
    %v1813 = vpop.permute.xlu0 %1812
    %1814 = vrot.lane.b32.xlu0 %v1801, 64
    %v1815 = vpop.permute.xlu0 %1814
    %v1818 = vsel %vm1793, %v1796, %v1805
    %v1819 = vsel %vm1793, %v1797, %v1807
    %v1820 = vsel %vm917, %v1818, %v1813
    %v1821 = vsel %vm917, %v1819, %v1815
    %v1822 = vpack.c.bf16 %v1820, %v1820
    %v1823 = vpack.c.bf16 %v1821, %v1821
    %v1826 = vunpack.c.l.b16 %v1822
    %v1827 = vunpack.c.l.b16 %v1823
    %v1828 = vpack.c.b16 %v1827, %v1826
    %v1841 = vunpack.c.l.b16 %v1779
    %v1842 = vunpack.c.l.b16 %v1780
    %v1843 = vunpack.c.l.b16 %v1781
    %v1844 = vunpack.c.l.b16 %v1782
    %v1845 = vunpack.c.l.b16 %v1783
    %v1846 = vunpack.c.l.b16 %v1784
    %v1847 = vunpack.c.l.b16 %v1785
    %v1848 = vunpack.c.l.b16 %v1786
    %v1849 = vunpack.c.l.b16 %v1787
    %v1850 = vunpack.c.l.b16 %v1788
    %v1851 = vunpack.c.l.b16 %v1789
    %v1852 = vunpack.c.l.b16 %v1790
    %v1853 = vpack.c.b16 %v1842, %v1841
    %v1854 = vpack.c.b16 %v1844, %v1843
    %v1855 = vpack.c.b16 %v1846, %v1845
    %v1856 = vpack.c.b16 %v1848, %v1847
    %v1857 = vpack.c.b16 %v1850, %v1849
    %v1858 = vpack.c.b16 %v1852, %v1851
    %vm1865 = vcmask 785408
    %v1867 = vsel %vm1865, %v1828, 0
    %1869 = vmatpush.bf16.msra.mxu0 0
    %1870 = vmatpush.bf16.msra.mxu0 0
    %1871 = vmatpush.bf16.msra.mxu0 %v1858
    %1872 = vmatpush.bf16.msra.mxu0 %v1857
    %1873 = vmatpush.bf16.msra.mxu0 %v1856
    %1874 = vmatpush.bf16.msra.mxu0 %v1855
    %1875 = vmatpush.bf16.msra.mxu0 %v1854
    %1876 = vmatpush.bf16.msra.mxu0 %v1853
    %1877 = vmatmul.bf16.gmra.mxu0 %v1867
    %v1878 = vpop.f32.mrf.mxu0
    %v1879 = vadd.f32 0.0, %v1878
    %v1880 = vpop.f32.mrf.mxu0
    %v1881 = vadd.f32 0.0, %v1880
    %1882 = vdwg.mxu0
    %v1883 = vperm.slane %v1791, 0
    %v1884 = vmul.f32 %v1879, %v1883
    %v1885 = vmul.f32 %v1881, %v1883
    %v1886 = vperm.slane %v1792, 0
    %v1887 = vadd.f32 %v1884, %v1886
    %v1888 = vadd.f32 %v1885, %v1886
    %v1889 = vmul.f32 %v1887, 0.1
    %v1890 = vmul.f32 %v1888, 0.1
    %v1891 = vmax.f32 %v1887, %v1889
    %v1892 = vmax.f32 %v1888, %v1890
    %v1893 = vld [vmem:[#allocation6 + $0xb0] sm:$0xf]
    %v1894 = vld [vmem:[#allocation6 + $0xb4] sm:$0xf]
    %v1895 = vld [vmem:[#allocation6 + $0xb8] sm:$0xf]
    %v1896 = vld [vmem:[#allocation6 + $0xbc] sm:$0xf]
    %v1897 = vld [vmem:[#allocation6 + $0xc0] sm:$0xf]
    %v1898 = vld [vmem:[#allocation6 + $0xc4] sm:$0xf]
    %v1899 = vld [vmem:[#allocation6 + $0xc8] sm:$0xf]
    %v1900 = vld [vmem:[#allocation6 + $0xcc] sm:$0xf]
    %v1901 = vld [vmem:[#allocation6 + $0xd0] sm:$0xf]
    %v1902 = vld [vmem:[#allocation6 + $0xd4] sm:$0xf]
    %v1903 = vld [vmem:[#allocation6 + $0xd8] sm:$0xf]
    %v1904 = vld [vmem:[#allocation6 + $0xdc] sm:$0xf]
    %v1905 = vld [vmem:[#allocation8 + $0x14] sm:$0x1]
    %v1906 = vld [vmem:[#allocation8 + $0x15] sm:$0x1]
    %1907 = vst.msk [vmem:[#allocation2 + $0x8] sm:$0xff] %vm1793, %v1891
    %1908 = vst.msk [vmem:[#allocation2 + $0x20] sm:$0xff] %vm1793, %v1892
    %v1909 = vld [vmem:[#allocation2 + $0x7] sm:$0xff]
    %v1910 = vld [vmem:[#allocation2 + $0x1f] sm:$0xff]
    %v1911 = vld [vmem:[#allocation2 + $0x8] sm:$0xff]
    %v1912 = vld [vmem:[#allocation2 + $0x20] sm:$0xff]
    %v1913 = vld [vmem:[#allocation2 + $0x9] sm:$0xff]
    %v1914 = vld [vmem:[#allocation2 + $0x21] sm:$0xff]
    %1917 = vrot.lane.b32.xlu0 %v1911, 32
    %v1918 = vpop.permute.xlu0 %1917
    %1919 = vrot.lane.b32.xlu0 %v1912, 32
    %v1920 = vpop.permute.xlu0 %1919
    %1925 = vrot.lane.b32.xlu0 %v1913, 64
    %v1926 = vpop.permute.xlu0 %1925
    %1927 = vrot.lane.b32.xlu0 %v1914, 64
    %v1928 = vpop.permute.xlu0 %1927
    %v1931 = vsel %vm1793, %v1909, %v1918
    %v1932 = vsel %vm1793, %v1910, %v1920
    %v1933 = vsel %vm917, %v1931, %v1926
    %v1934 = vsel %vm917, %v1932, %v1928
    %v1935 = vpack.c.bf16 %v1933, %v1933
    %v1936 = vpack.c.bf16 %v1934, %v1934
    %v1939 = vunpack.c.l.b16 %v1935
    %v1940 = vunpack.c.l.b16 %v1936
    %v1941 = vpack.c.b16 %v1940, %v1939
    %v1954 = vunpack.c.l.b16 %v1893
    %v1955 = vunpack.c.l.b16 %v1894
    %v1956 = vunpack.c.l.b16 %v1895
    %v1957 = vunpack.c.l.b16 %v1896
    %v1958 = vunpack.c.l.b16 %v1897
    %v1959 = vunpack.c.l.b16 %v1898
    %v1960 = vunpack.c.l.b16 %v1899
    %v1961 = vunpack.c.l.b16 %v1900
    %v1962 = vunpack.c.l.b16 %v1901
    %v1963 = vunpack.c.l.b16 %v1902
    %v1964 = vunpack.c.l.b16 %v1903
    %v1965 = vunpack.c.l.b16 %v1904
    %v1966 = vpack.c.b16 %v1955, %v1954
    %v1967 = vpack.c.b16 %v1957, %v1956
    %v1968 = vpack.c.b16 %v1959, %v1958
    %v1969 = vpack.c.b16 %v1961, %v1960
    %v1970 = vpack.c.b16 %v1963, %v1962
    %v1971 = vpack.c.b16 %v1965, %v1964
    %v1979 = vsel %vm1865, %v1941, 0
    %1981 = vmatpush.bf16.msra.mxu0 0
    %1982 = vmatpush.bf16.msra.mxu0 0
    %1983 = vmatpush.bf16.msra.mxu0 %v1971
    %1984 = vmatpush.bf16.msra.mxu0 %v1970
    %1985 = vmatpush.bf16.msra.mxu0 %v1969
    %1986 = vmatpush.bf16.msra.mxu0 %v1968
    %1987 = vmatpush.bf16.msra.mxu0 %v1967
    %1988 = vmatpush.bf16.msra.mxu0 %v1966
    %1989 = vmatmul.bf16.gmra.mxu0 %v1979
    %v1990 = vpop.f32.mrf.mxu0
    %v1991 = vadd.f32 0.0, %v1990
    %v1992 = vpop.f32.mrf.mxu0
    %v1993 = vadd.f32 0.0, %v1992
    %1994 = vdwg.mxu0
    %v1995 = vperm.slane %v1905, 0
    %v1996 = vmul.f32 %v1991, %v1995
    %v1997 = vmul.f32 %v1993, %v1995
    %v1998 = vperm.slane %v1906, 0
    %v1999 = vadd.f32 %v1996, %v1998
    %v2000 = vadd.f32 %v1997, %v1998
    %v2001 = vmul.f32 %v1999, 0.1
    %v2002 = vmul.f32 %v2000, 0.1
    %v2003 = vmax.f32 %v1999, %v2001
    %v2004 = vmax.f32 %v2000, %v2002
    %v2005 = vld [vmem:[#allocation6 + $0xe0] sm:$0xf]
    %v2006 = vld [vmem:[#allocation6 + $0xe4] sm:$0xf]
    %v2007 = vld [vmem:[#allocation6 + $0xe8] sm:$0xf]
    %v2008 = vld [vmem:[#allocation6 + $0xec] sm:$0xf]
    %v2009 = vld [vmem:[#allocation6 + $0xf0] sm:$0xf]
    %v2010 = vld [vmem:[#allocation6 + $0xf4] sm:$0xf]
    %v2011 = vld [vmem:[#allocation6 + $0xf8] sm:$0xf]
    %v2012 = vld [vmem:[#allocation6 + $0xfc] sm:$0xf]
    %v2013 = vld [vmem:[#allocation6 + $0x100] sm:$0xf]
    %v2014 = vld [vmem:[#allocation6 + $0x104] sm:$0xf]
    %v2015 = vld [vmem:[#allocation6 + $0x108] sm:$0xf]
    %v2016 = vld [vmem:[#allocation6 + $0x10c] sm:$0xf]
    %v2017 = vld [vmem:[#allocation6 + $0x110] sm:$0xf]
    %v2018 = vld [vmem:[#allocation6 + $0x114] sm:$0xf]
    %v2019 = vld [vmem:[#allocation6 + $0x118] sm:$0xf]
    %v2020 = vld [vmem:[#allocation6 + $0x11c] sm:$0xf]
    %v2021 = vld [vmem:[#allocation6 + $0x120] sm:$0xf]
    %v2022 = vld [vmem:[#allocation6 + $0x124] sm:$0xf]
    %v2023 = vld [vmem:[#allocation6 + $0x128] sm:$0xf]
    %v2024 = vld [vmem:[#allocation6 + $0x12c] sm:$0xf]
    %v2025 = vld [vmem:[#allocation6 + $0x130] sm:$0xf]
    %v2026 = vld [vmem:[#allocation6 + $0x134] sm:$0xf]
    %v2027 = vld [vmem:[#allocation6 + $0x138] sm:$0xf]
    %v2028 = vld [vmem:[#allocation6 + $0x13c] sm:$0xf]
    %v2029 = vld [vmem:[#allocation6 + $0x140] sm:$0xf]
    %v2030 = vld [vmem:[#allocation6 + $0x144] sm:$0xf]
    %v2031 = vld [vmem:[#allocation6 + $0x148] sm:$0xf]
    %v2032 = vld [vmem:[#allocation6 + $0x14c] sm:$0xf]
    %v2033 = vld [vmem:[#allocation6 + $0x150] sm:$0xf]
    %v2034 = vld [vmem:[#allocation6 + $0x154] sm:$0xf]
    %v2035 = vld [vmem:[#allocation6 + $0x158] sm:$0xf]
    %v2036 = vld [vmem:[#allocation6 + $0x15c] sm:$0xf]
    %v2037 = vld [vmem:[#allocation6 + $0x160] sm:$0xf]
    %v2038 = vld [vmem:[#allocation6 + $0x164] sm:$0xf]
    %v2039 = vld [vmem:[#allocation6 + $0x168] sm:$0xf]
    %v2040 = vld [vmem:[#allocation6 + $0x16c] sm:$0xf]
    %v2041 = vld [vmem:[#allocation6 + $0x170] sm:$0xf]
    %v2042 = vld [vmem:[#allocation6 + $0x174] sm:$0xf]
    %v2043 = vld [vmem:[#allocation6 + $0x178] sm:$0xf]
    %v2044 = vld [vmem:[#allocation6 + $0x17c] sm:$0xf]
    %v2045 = vld [vmem:[#allocation8 + $0x16] sm:$0x1]
    %v2046 = vld [vmem:[#allocation8 + $0x17] sm:$0x1]
    %2047 = vst.msk [vmem:[#allocation3 + $0x8] sm:$0xff] %vm917, %v2003
    %2048 = vst.msk [vmem:[#allocation3 + $0x20] sm:$0xff] %vm917, %v2004
    %v2049 = vld [vmem:[#allocation3 + $0x6] sm:$0xff]
    %v2050 = vld [vmem:[#allocation3 + $0x1e] sm:$0xff]
    %v2051 = vld [vmem:[#allocation3 + $0x7] sm:$0xff]
    %v2052 = vld [vmem:[#allocation3 + $0x1f] sm:$0xff]
    %v2053 = vld [vmem:[#allocation3 + $0x8] sm:$0xff]
    %v2054 = vld [vmem:[#allocation3 + $0x20] sm:$0xff]
    %v2055 = vld [vmem:[#allocation3 + $0x9] sm:$0xff]
    %v2056 = vld [vmem:[#allocation3 + $0x21] sm:$0xff]
    %v2057 = vld [vmem:[#allocation3 + $0xa] sm:$0xff]
    %v2058 = vld [vmem:[#allocation3 + $0x22] sm:$0xff]
    %2061 = vrot.lane.b32.xlu0 %v2051, 64
    %v2062 = vpop.permute.xlu0 %2061
    %2063 = vrot.lane.b32.xlu0 %v2052, 64
    %v2064 = vpop.permute.xlu0 %2063
    %2069 = vrot.lane.b32.xlu0 %v2055, 64
    %v2070 = vpop.permute.xlu0 %2069
    %2071 = vrot.lane.b32.xlu0 %v2056, 64
    %v2072 = vpop.permute.xlu0 %2071
    %v2075 = vsel %vm917, %v2049, %v2062
    %v2076 = vsel %vm917, %v2050, %v2064
    %v2077 = vsel %vm917, %v2053, %v2070
    %v2078 = vsel %vm917, %v2054, %v2072
    %v2079 = vpack.c.bf16 %v2077, %v2075
    %v2080 = vpack.c.bf16 %v2057, %v2057
    %v2081 = vpack.c.bf16 %v2078, %v2076
    %v2082 = vpack.c.bf16 %v2058, %v2058
    %v2087 = vunpack.c.l.b16 %v2079
    %v2088 = vunpack.c.h.b16 %v2079
    %v2089 = vunpack.c.l.b16 %v2080
    %v2090 = vunpack.c.l.b16 %v2081
    %v2091 = vunpack.c.h.b16 %v2081
    %v2092 = vunpack.c.l.b16 %v2082
    %v2093 = vpack.c.b16 %v2090, %v2087
    %v2094 = vpack.c.b16 %v2091, %v2088
    %v2095 = vpack.c.b16 %v2092, %v2089
    %v2138 = vunpack.c.l.b16 %v2005
    %v2139 = vunpack.c.l.b16 %v2006
    %v2140 = vunpack.c.l.b16 %v2007
    %v2141 = vunpack.c.l.b16 %v2008
    %v2142 = vunpack.c.l.b16 %v2009
    %v2143 = vunpack.c.l.b16 %v2010
    %v2144 = vunpack.c.l.b16 %v2011
    %v2145 = vunpack.c.l.b16 %v2012
    %v2146 = vunpack.c.l.b16 %v2013
    %v2147 = vunpack.c.l.b16 %v2014
    %v2148 = vunpack.c.l.b16 %v2015
    %v2149 = vunpack.c.l.b16 %v2016
    %v2150 = vunpack.c.l.b16 %v2017
    %v2151 = vunpack.c.l.b16 %v2018
    %v2152 = vunpack.c.l.b16 %v2019
    %v2153 = vunpack.c.l.b16 %v2020
    %v2154 = vunpack.c.l.b16 %v2021
    %v2155 = vunpack.c.l.b16 %v2022
    %v2156 = vunpack.c.l.b16 %v2023
    %v2157 = vunpack.c.l.b16 %v2024
    %v2158 = vunpack.c.l.b16 %v2025
    %v2159 = vunpack.c.l.b16 %v2026
    %v2160 = vunpack.c.l.b16 %v2027
    %v2161 = vunpack.c.l.b16 %v2028
    %v2162 = vunpack.c.l.b16 %v2029
    %v2163 = vunpack.c.l.b16 %v2030
    %v2164 = vunpack.c.l.b16 %v2031
    %v2165 = vunpack.c.l.b16 %v2032
    %v2166 = vunpack.c.l.b16 %v2033
    %v2167 = vunpack.c.l.b16 %v2034
    %v2168 = vunpack.c.l.b16 %v2035
    %v2169 = vunpack.c.l.b16 %v2036
    %v2170 = vunpack.c.l.b16 %v2037
    %v2171 = vunpack.c.l.b16 %v2038
    %v2172 = vunpack.c.l.b16 %v2039
    %v2173 = vunpack.c.l.b16 %v2040
    %v2174 = vunpack.c.l.b16 %v2041
    %v2175 = vunpack.c.l.b16 %v2042
    %v2176 = vunpack.c.l.b16 %v2043
    %v2177 = vunpack.c.l.b16 %v2044
    %v2178 = vpack.c.b16 %v2139, %v2138
    %v2179 = vpack.c.b16 %v2141, %v2140
    %v2180 = vpack.c.b16 %v2143, %v2142
    %v2181 = vpack.c.b16 %v2145, %v2144
    %v2182 = vpack.c.b16 %v2147, %v2146
    %v2183 = vpack.c.b16 %v2149, %v2148
    %v2184 = vpack.c.b16 %v2151, %v2150
    %v2185 = vpack.c.b16 %v2153, %v2152
    %v2186 = vpack.c.b16 %v2155, %v2154
    %v2187 = vpack.c.b16 %v2157, %v2156
    %v2188 = vpack.c.b16 %v2159, %v2158
    %v2189 = vpack.c.b16 %v2161, %v2160
    %v2190 = vpack.c.b16 %v2163, %v2162
    %v2191 = vpack.c.b16 %v2165, %v2164
    %v2192 = vpack.c.b16 %v2167, %v2166
    %v2193 = vpack.c.b16 %v2169, %v2168
    %v2194 = vpack.c.b16 %v2171, %v2170
    %v2195 = vpack.c.b16 %v2173, %v2172
    %v2196 = vpack.c.b16 %v2175, %v2174
    %v2197 = vpack.c.b16 %v2177, %v2176
    %v2219 = vsel %vm917, %v2095, 0
    %2221 = vmatpush.bf16.msra.mxu0 %v2185
    %2222 = vmatpush.bf16.msra.mxu0 %v2184
    %2223 = vmatpush.bf16.msra.mxu0 %v2183
    %2224 = vmatpush.bf16.msra.mxu0 %v2182
    %2225 = vmatpush.bf16.msra.mxu0 %v2181
    %2226 = vmatpush.bf16.msra.mxu0 %v2180
    %2227 = vmatpush.bf16.msra.mxu0 %v2179
    %2228 = vmatpush.bf16.msra.mxu0 %v2178
    %2229 = vmatmul.bf16.gmra.mxu0 %v2093
    %v2230 = vpop.f32.mrf.mxu0
    %v2231 = vadd.f32 0.0, %v2230
    %v2232 = vpop.f32.mrf.mxu0
    %v2233 = vadd.f32 0.0, %v2232
    %2234 = vdwg.mxu0
    %2235 = vmatpush.bf16.msra.mxu0 %v2193
    %2236 = vmatpush.bf16.msra.mxu0 %v2192
    %2237 = vmatpush.bf16.msra.mxu0 %v2191
    %2238 = vmatpush.bf16.msra.mxu0 %v2190
    %2239 = vmatpush.bf16.msra.mxu0 %v2189
    %2240 = vmatpush.bf16.msra.mxu0 %v2188
    %2241 = vmatpush.bf16.msra.mxu0 %v2187
    %2242 = vmatpush.bf16.msra.mxu0 %v2186
    %2243 = vmatmul.bf16.gmra.mxu0 %v2094
    %v2244 = vpop.f32.mrf.mxu0
    %v2245 = vadd.f32 %v2231, %v2244
    %v2246 = vpop.f32.mrf.mxu0
    %v2247 = vadd.f32 %v2233, %v2246
    %2248 = vdwg.mxu0
    %2249 = vmatpush.bf16.msra.mxu0 0
    %2250 = vmatpush.bf16.msra.mxu0 0
    %2251 = vmatpush.bf16.msra.mxu0 0
    %2252 = vmatpush.bf16.msra.mxu0 0
    %2253 = vmatpush.bf16.msra.mxu0 %v2197
    %2254 = vmatpush.bf16.msra.mxu0 %v2196
    %2255 = vmatpush.bf16.msra.mxu0 %v2195
    %2256 = vmatpush.bf16.msra.mxu0 %v2194
    %2257 = vmatmul.bf16.gmra.mxu0 %v2219
    %v2258 = vpop.f32.mrf.mxu0
    %v2259 = vadd.f32 %v2245, %v2258
    %v2260 = vpop.f32.mrf.mxu0
    %v2261 = vadd.f32 %v2247, %v2260
    %2262 = vdwg.mxu0
    %v2263 = vperm.slane %v2045, 0
    %v2264 = vmul.f32 %v2259, %v2263
    %v2265 = vmul.f32 %v2261, %v2263
    %v2266 = vperm.slane %v2046, 0
    %v2267 = vadd.f32 %v2264, %v2266
    %v2268 = vadd.f32 %v2265, %v2266
    %v2269 = vmul.f32 %v2267, 0.1
    %v2270 = vmul.f32 %v2268, 0.1
    %v2271 = vmax.f32 %v2267, %v2269
    %v2272 = vmax.f32 %v2268, %v2270
    %v2273 = vld [vmem:[#allocation6 + $0x180] sm:$0xf]
    %v2274 = vld [vmem:[#allocation6 + $0x184] sm:$0xf]
    %v2275 = vld [vmem:[#allocation6 + $0x188] sm:$0xf]
    %v2276 = vld [vmem:[#allocation6 + $0x18c] sm:$0xf]
    %v2277 = vld [vmem:[#allocation6 + $0x190] sm:$0xf]
    %v2278 = vld [vmem:[#allocation6 + $0x194] sm:$0xf]
    %v2279 = vld [vmem:[#allocation6 + $0x198] sm:$0xf]
    %v2280 = vld [vmem:[#allocation6 + $0x19c] sm:$0xf]
    %v2281 = vld [vmem:[#allocation6 + $0x1a0] sm:$0xf]
    %v2282 = vld [vmem:[#allocation6 + $0x1a4] sm:$0xf]
    %v2283 = vld [vmem:[#allocation6 + $0x1a8] sm:$0xf]
    %v2284 = vld [vmem:[#allocation6 + $0x1ac] sm:$0xf]
    %v2285 = vld [vmem:[#allocation6 + $0x1b0] sm:$0xf]
    %v2286 = vld [vmem:[#allocation6 + $0x1b4] sm:$0xf]
    %v2287 = vld [vmem:[#allocation6 + $0x1b8] sm:$0xf]
    %v2288 = vld [vmem:[#allocation6 + $0x1bc] sm:$0xf]
    %v2289 = vld [vmem:[#allocation6 + $0x1c0] sm:$0xf]
    %v2290 = vld [vmem:[#allocation6 + $0x1c4] sm:$0xf]
    %v2291 = vld [vmem:[#allocation6 + $0x1c8] sm:$0xf]
    %v2292 = vld [vmem:[#allocation6 + $0x1cc] sm:$0xf]
    %v2293 = vld [vmem:[#allocation6 + $0x1d0] sm:$0xf]
    %v2294 = vld [vmem:[#allocation6 + $0x1d4] sm:$0xf]
    %v2295 = vld [vmem:[#allocation6 + $0x1d8] sm:$0xf]
    %v2296 = vld [vmem:[#allocation6 + $0x1dc] sm:$0xf]
    %v2297 = vld [vmem:[#allocation8 + $0x18] sm:$0x1]
    %v2298 = vld [vmem:[#allocation8 + $0x19] sm:$0x1]
    %2299 = vst.msk [vmem:[#allocation3 + $0x8] sm:$0xff] %vm917, %v2271
    %2300 = vst.msk [vmem:[#allocation3 + $0x20] sm:$0xff] %vm917, %v2272
    %v2301 = vld [vmem:[#allocation3 + $0x7] sm:$0xff]
    %v2302 = vld [vmem:[#allocation3 + $0x1f] sm:$0xff]
    %v2303 = vld [vmem:[#allocation3 + $0x8] sm:$0xff]
    %v2304 = vld [vmem:[#allocation3 + $0x20] sm:$0xff]
    %v2305 = vld [vmem:[#allocation3 + $0x9] sm:$0xff]
    %v2306 = vld [vmem:[#allocation3 + $0x21] sm:$0xff]
    %2309 = vrot.lane.b32.xlu0 %v2303, 64
    %v2310 = vpop.permute.xlu0 %2309
    %2311 = vrot.lane.b32.xlu0 %v2304, 64
    %v2312 = vpop.permute.xlu0 %2311
    %v2315 = vsel %vm917, %v2301, %v2310
    %v2316 = vsel %vm917, %v2302, %v2312
    %v2317 = vpack.c.bf16 %v2305, %v2315
    %v2318 = vpack.c.bf16 %v2306, %v2316
    %v2321 = vunpack.c.l.b16 %v2317
    %v2322 = vunpack.c.h.b16 %v2317
    %v2323 = vunpack.c.l.b16 %v2318
    %v2324 = vunpack.c.h.b16 %v2318
    %v2325 = vpack.c.b16 %v2323, %v2321
    %v2326 = vpack.c.b16 %v2324, %v2322
    %v2352 = vunpack.c.l.b16 %v2273
    %v2353 = vunpack.c.l.b16 %v2274
    %v2354 = vunpack.c.l.b16 %v2275
    %v2355 = vunpack.c.l.b16 %v2276
    %v2356 = vunpack.c.l.b16 %v2277
    %v2357 = vunpack.c.l.b16 %v2278
    %v2358 = vunpack.c.l.b16 %v2279
    %v2359 = vunpack.c.l.b16 %v2280
    %v2360 = vunpack.c.l.b16 %v2281
    %v2361 = vunpack.c.l.b16 %v2282
    %v2362 = vunpack.c.l.b16 %v2283
    %v2363 = vunpack.c.l.b16 %v2284
    %v2364 = vunpack.c.l.b16 %v2285
    %v2365 = vunpack.c.l.b16 %v2286
    %v2366 = vunpack.c.l.b16 %v2287
    %v2367 = vunpack.c.l.b16 %v2288
    %v2368 = vunpack.c.l.b16 %v2289
    %v2369 = vunpack.c.l.b16 %v2290
    %v2370 = vunpack.c.l.b16 %v2291
    %v2371 = vunpack.c.l.b16 %v2292
    %v2372 = vunpack.c.l.b16 %v2293
    %v2373 = vunpack.c.l.b16 %v2294
    %v2374 = vunpack.c.l.b16 %v2295
    %v2375 = vunpack.c.l.b16 %v2296
    %v2376 = vpack.c.b16 %v2353, %v2352
    %v2377 = vpack.c.b16 %v2355, %v2354
    %v2378 = vpack.c.b16 %v2357, %v2356
    %v2379 = vpack.c.b16 %v2359, %v2358
    %v2380 = vpack.c.b16 %v2361, %v2360
    %v2381 = vpack.c.b16 %v2363, %v2362
    %v2382 = vpack.c.b16 %v2365, %v2364
    %v2383 = vpack.c.b16 %v2367, %v2366
    %v2384 = vpack.c.b16 %v2369, %v2368
    %v2385 = vpack.c.b16 %v2371, %v2370
    %v2386 = vpack.c.b16 %v2373, %v2372
    %v2387 = vpack.c.b16 %v2375, %v2374
    %v2401 = vsel %vm917, %v2326, 0
    %2403 = vmatpush.bf16.msra.mxu0 %v2383
    %2404 = vmatpush.bf16.msra.mxu0 %v2382
    %2405 = vmatpush.bf16.msra.mxu0 %v2381
    %2406 = vmatpush.bf16.msra.mxu0 %v2380
    %2407 = vmatpush.bf16.msra.mxu0 %v2379
    %2408 = vmatpush.bf16.msra.mxu0 %v2378
    %2409 = vmatpush.bf16.msra.mxu0 %v2377
    %2410 = vmatpush.bf16.msra.mxu0 %v2376
    %2411 = vmatmul.bf16.gmra.mxu0 %v2325
    %v2412 = vpop.f32.mrf.mxu0
    %v2413 = vadd.f32 0.0, %v2412
    %v2414 = vpop.f32.mrf.mxu0
    %v2415 = vadd.f32 0.0, %v2414
    %2416 = vdwg.mxu0
    %2417 = vmatpush.bf16.msra.mxu0 0
    %2418 = vmatpush.bf16.msra.mxu0 0
    %2419 = vmatpush.bf16.msra.mxu0 0
    %2420 = vmatpush.bf16.msra.mxu0 0
    %2421 = vmatpush.bf16.msra.mxu0 %v2387
    %2422 = vmatpush.bf16.msra.mxu0 %v2386
    %2423 = vmatpush.bf16.msra.mxu0 %v2385
    %2424 = vmatpush.bf16.msra.mxu0 %v2384
    %2425 = vmatmul.bf16.gmra.mxu0 %v2401
    %v2426 = vpop.f32.mrf.mxu0
    %v2427 = vadd.f32 %v2413, %v2426
    %v2428 = vpop.f32.mrf.mxu0
    %v2429 = vadd.f32 %v2415, %v2428
    %2430 = vdwg.mxu0
    %v2431 = vperm.slane %v2297, 0
    %v2432 = vmul.f32 %v2427, %v2431
    %v2433 = vmul.f32 %v2429, %v2431
    %v2434 = vperm.slane %v2298, 0
    %v2435 = vadd.f32 %v2432, %v2434
    %v2436 = vadd.f32 %v2433, %v2434
    %v2437 = vld [vmem:[#allocation6 + $0x1e0] sm:$0xf]
    %v2438 = vld [vmem:[#allocation6 + $0x1e4] sm:$0xf]
    %v2439 = vld [vmem:[#allocation6 + $0x1e8] sm:$0xf]
    %v2440 = vld [vmem:[#allocation6 + $0x1ec] sm:$0xf]
    %v2441 = vld [vmem:[#allocation8 + $0x1a] sm:$0x1]
    %v2442 = vld [vmem:[#allocation8 + $0x1b] sm:$0x1]
    %v2443 = vpack.c.bf16 %v1891, %v1891
    %v2444 = vpack.c.bf16 %v1892, %v1892
    %v2447 = vunpack.c.l.b16 %v2443
    %v2448 = vunpack.c.l.b16 %v2444
    %v2449 = vpack.c.b16 %v2448, %v2447
    %v2454 = vunpack.c.l.b16 %v2437
    %v2455 = vunpack.c.l.b16 %v2438
    %v2456 = vunpack.c.l.b16 %v2439
    %v2457 = vunpack.c.l.b16 %v2440
    %v2458 = vpack.c.b16 %v2455, %v2454
    %v2459 = vpack.c.b16 %v2457, %v2456
    %v2463 = vsel %vm1793, %v2449, 0
    %2465 = vmatpush.bf16.msra.mxu0 0
    %2466 = vmatpush.bf16.msra.mxu0 0
    %2467 = vmatpush.bf16.msra.mxu0 0
    %2468 = vmatpush.bf16.msra.mxu0 0
    %2469 = vmatpush.bf16.msra.mxu0 0
    %2470 = vmatpush.bf16.msra.mxu0 0
    %2471 = vmatpush.bf16.msra.mxu0 %v2459
    %2472 = vmatpush.bf16.msra.mxu0 %v2458
    %2473 = vmatmul.bf16.gmra.mxu0 %v2463
    %v2474 = vpop.f32.mrf.mxu0
    %v2475 = vadd.f32 0.0, %v2474
    %v2476 = vpop.f32.mrf.mxu0
    %v2477 = vadd.f32 0.0, %v2476
    %2478 = vdwg.mxu0
    %v2479 = vperm.slane %v2441, 0
    %v2480 = vmul.f32 %v2475, %v2479
    %v2481 = vmul.f32 %v2477, %v2479
    %v2482 = vperm.slane %v2442, 0
    %v2483 = vadd.f32 %v2480, %v2482
    %v2484 = vadd.f32 %v2481, %v2482
    %v2485 = vsel %vm917, %v2435, 0.0
    %v2486 = vrot.slane %v2485, 4
    %v2487 = vadd.f32 %v2485, %v2486
    %v2488 = vrot.slane %v2487, 2
    %v2489 = vadd.f32 %v2487, %v2488
    %v2490 = vrot.slane %v2489, 1
    %v2491 = vadd.f32 %v2489, %v2490
    %v2492 = vsel %vm917, %v2436, 0.0
    %v2493 = vrot.slane %v2492, 4
    %v2494 = vadd.f32 %v2492, %v2493
    %v2495 = vrot.slane %v2494, 2
    %v2496 = vadd.f32 %v2494, %v2495
    %v2497 = vrot.slane %v2496, 1
    %v2498 = vadd.f32 %v2496, %v2497
    %v2499 = vrcp.pop 8.0
    %v2500 = vmul.f32 8.0, %v2499
    %v2501 = vsub.f32 1.0, %v2500
    %v2502 = vmul.f32 %v2499, %v2501
    %v2503 = vadd.f32 %v2499, %v2502
    %vm2504 = vweird.f32 %v2499
    %v2505 = vsel %vm2504, %v2499, %v2503
    %v2506 = vmul.f32 %v2491, %v2505
    %v2507 = vmul.f32 %v2498, %v2505
    %v2508 = vld [vmem:[#allocation6 + $0x1f0] sm:$0xf]
    %v2509 = vld [vmem:[#allocation6 + $0x1f4] sm:$0xf]
    %v2510 = vld [vmem:[#allocation6 + $0x1f8] sm:$0xf]
    %v2511 = vld [vmem:[#allocation6 + $0x1fc] sm:$0xf]
    %v2512 = vld [vmem:[#allocation6 + $0x200] sm:$0xf]
    %v2513 = vld [vmem:[#allocation6 + $0x204] sm:$0xf]
    %v2514 = vld [vmem:[#allocation6 + $0x208] sm:$0xf]
    %v2515 = vld [vmem:[#allocation6 + $0x20c] sm:$0xf]
    %v2516 = vpack.c.bf16 %v2506, %v2506
    %v2517 = vpack.c.bf16 %v2507, %v2507
    %v2518 = vld [vmem:[#allocation8 + $0x1c] sm:$0x1]
    %v2519 = vperm.slane %v2518, 0
    %v2522 = vunpack.c.l.b16 %v2516
    %v2523 = vunpack.c.l.b16 %v2517
    %vm2524 = vcmask 1041409
    %v2525 = vsel %vm2524, %v2523, %v2522
    %v2526 = vpack.c.b16 %v2525, %v2525
    %v2535 = vunpack.c.l.b16 %v2508
    %v2536 = vunpack.c.l.b16 %v2509
    %v2537 = vunpack.c.l.b16 %v2510
    %v2538 = vunpack.c.l.b16 %v2511
    %v2539 = vunpack.c.l.b16 %v2512
    %v2540 = vunpack.c.l.b16 %v2513
    %v2541 = vunpack.c.l.b16 %v2514
    %v2542 = vunpack.c.l.b16 %v2515
    %v2543 = vpack.c.b16 %v2536, %v2535
    %v2544 = vpack.c.b16 %v2538, %v2537
    %v2545 = vpack.c.b16 %v2540, %v2539
    %v2546 = vpack.c.b16 %v2542, %v2541
    %v2552 = vsel %vm917, %v2526, 0
    %2554 = vmatpush.bf16.msra.mxu0 0
    %2555 = vmatpush.bf16.msra.mxu0 0
    %2556 = vmatpush.bf16.msra.mxu0 0
    %2557 = vmatpush.bf16.msra.mxu0 0
    %2558 = vmatpush.bf16.msra.mxu0 %v2546
    %2559 = vmatpush.bf16.msra.mxu0 %v2545
    %2560 = vmatpush.bf16.msra.mxu0 %v2544
    %2561 = vmatpush.bf16.msra.mxu0 %v2543
    %2562 = vmatmul.bf16.gmra.mxu0 %v2552
    %v2563 = vpop.f32.mrf.mxu0
    %v2564 = vadd.f32 %v2519, %v2563
    %v2565 = vpop.f32.mrf.mxu0
    %2566 = vdwg.mxu0
    %v2567 = vmax.f32 %v2564, 0.0
    %v2568 = vld [vmem:[#allocation6 + $0x210] sm:$0x3]
    %v2569 = vpack.c.bf16 %v2567, %v2567
    %v2570 = vld [vmem:[#allocation8 + $0x1d] sm:$0x1]
    %v2571 = vperm.slane %v2570, 0
    %v2573 = vsel %vm268, %v2569, 0
    %vm2575 = vcmask 1041408
    %v2577 = vsel %vm2575, %v2568, 0
    %2579 = vmatpush.bf16.msra.mxu0 0
    %2580 = vmatpush.bf16.msra.mxu0 0
    %2581 = vmatpush.bf16.msra.mxu0 0
    %2582 = vmatpush.bf16.msra.mxu0 0
    %2583 = vmatpush.bf16.msra.mxu0 0
    %2584 = vmatpush.bf16.msra.mxu0 0
    %2585 = vmatpush.bf16.msra.mxu0 0
    %2586 = vmatpush.bf16.msra.mxu0 %v2577
    %2587 = vmatmul.bf16.gmra.mxu0 %v2573
    %v2588 = vpop.f32.mrf.mxu0
    %v2589 = vadd.f32 %v2571, %v2588
    %v2590 = vpop.f32.mrf.mxu0
    %2591 = vdwg.mxu0
    %v2592 = vxor.u32 %v2589, 2147483648
    %v2593 = vmul.f32 %v2592, 1.442695
    %v2594 = vpow.pop %v2593
    %v2595 = vadd.f32 %v2594, 1.0
    %v2596 = vrcp.pop %v2595
    %v2597 = vmul.f32 %v2595, %v2596
    %v2598 = vsub.f32 1.0, %v2597
    %v2599 = vmul.f32 %v2596, %v2598
    %v2600 = vadd.f32 %v2596, %v2599
    %vm2601 = vweird.f32 %v2595
    %vm2602 = vweird.f32 %v2596
    %vm2603 = vmor %vm2601, %vm2602
    %v2604 = vsel %vm2603, %v2596, %v2600
    %v2605 = vand.u32 2147483647, %v2595
    %vm2606 = vcmp.eq.f32.partialorder %v2605, 8.507059e+37
    %v2607 = vand.u32 %v2595, 2147483648
    %v2608 = vor.u32 1.1754944e-38, %v2607
    %v2609 = vsel %vm2606, %v2608, %v2604
    %v2610 = vmul.f32 1.0, %v2609
    %v2612 = vrot.slane %v2610, 1
    %v2613 = vperm.slane %v2610, 0
    %v2614 = vperm.slane %v2612, 0
    %v2617 = vmul.f32 %v2435, %v2613
    %v2618 = vmul.f32 %v2436, %v2614
    %v2619 = vadd.f32 %v2617, %v2483
    %v2620 = vadd.f32 %v2618, %v2484
    %v2621 = vmax.f32 %v2619, 0.0
    %v2622 = vmax.f32 %v2620, 0.0
    %v2623 = vsel %vm917, %v2621, 0.0
    %v2624 = vrot.slane %v2623, 4
    %v2625 = vadd.f32 %v2623, %v2624
    %v2626 = vrot.slane %v2625, 2
    %v2627 = vadd.f32 %v2625, %v2626
    %v2628 = vrot.slane %v2627, 1
    %v2629 = vadd.f32 %v2627, %v2628
    %v2630 = vsel %vm917, %v2622, 0.0
    %v2631 = vrot.slane %v2630, 4
    %v2632 = vadd.f32 %v2630, %v2631
    %v2633 = vrot.slane %v2632, 2
    %v2634 = vadd.f32 %v2632, %v2633
    %v2635 = vrot.slane %v2634, 1
    %v2636 = vadd.f32 %v2634, %v2635
    %v2637 = vmul.f32 %v2629, %v2505
    %v2638 = vmul.f32 %v2636, %v2505
    %v2639 = vld [vmem:[#allocation6 + $0x218] sm:$0xf]
    %v2640 = vld [vmem:[#allocation6 + $0x21c] sm:$0xf]
    %v2641 = vld [vmem:[#allocation6 + $0x220] sm:$0xf]
    %v2642 = vld [vmem:[#allocation6 + $0x224] sm:$0xf]
    %v2643 = vld [vmem:[#allocation6 + $0x228] sm:$0xf]
    %v2644 = vld [vmem:[#allocation6 + $0x22c] sm:$0xf]
    %v2645 = vld [vmem:[#allocation6 + $0x230] sm:$0xf]
    %v2646 = vld [vmem:[#allocation6 + $0x234] sm:$0xf]
    %v2647 = vpack.c.bf16 %v2637, %v2637
    %v2648 = vpack.c.bf16 %v2638, %v2638
    %v2649 = vld [vmem:[#allocation8 + $0x1e] sm:$0x1]
    %v2650 = vperm.slane %v2649, 0
    %v2653 = vunpack.c.l.b16 %v2647
    %v2654 = vunpack.c.l.b16 %v2648
    %v2655 = vsel %vm2524, %v2654, %v2653
    %v2656 = vpack.c.b16 %v2655, %v2655
    %v2665 = vunpack.c.l.b16 %v2639
    %v2666 = vunpack.c.l.b16 %v2640
    %v2667 = vunpack.c.l.b16 %v2641
    %v2668 = vunpack.c.l.b16 %v2642
    %v2669 = vunpack.c.l.b16 %v2643
    %v2670 = vunpack.c.l.b16 %v2644
    %v2671 = vunpack.c.l.b16 %v2645
    %v2672 = vunpack.c.l.b16 %v2646
    %v2673 = vpack.c.b16 %v2666, %v2665
    %v2674 = vpack.c.b16 %v2668, %v2667
    %v2675 = vpack.c.b16 %v2670, %v2669
    %v2676 = vpack.c.b16 %v2672, %v2671
    %v2682 = vsel %vm917, %v2656, 0
    %2684 = vmatpush.bf16.msra.mxu0 0
    %2685 = vmatpush.bf16.msra.mxu0 0
    %2686 = vmatpush.bf16.msra.mxu0 0
    %2687 = vmatpush.bf16.msra.mxu0 0
    %2688 = vmatpush.bf16.msra.mxu0 %v2676
    %2689 = vmatpush.bf16.msra.mxu0 %v2675
    %2690 = vmatpush.bf16.msra.mxu0 %v2674
    %2691 = vmatpush.bf16.msra.mxu0 %v2673
    %2692 = vmatmul.bf16.gmra.mxu0 %v2682
    %v2693 = vpop.f32.mrf.mxu0
    %v2694 = vadd.f32 %v2650, %v2693
    %v2695 = vpop.f32.mrf.mxu0
    %2696 = vdwg.mxu0
    %v2697 = vmul.f32 %v2694, 0.1
    %v2698 = vmax.f32 %v2694, %v2697
    %v2699 = vld [vmem:[#allocation6 + $0x298] sm:$0xf]
    %v2700 = vld [vmem:[#allocation6 + $0x29c] sm:$0xf]
    %v2701 = vld [vmem:[#allocation6 + $0x2a0] sm:$0xf]
    %v2702 = vld [vmem:[#allocation6 + $0x2a4] sm:$0xf]
    %v2703 = vld [vmem:[#allocation6 + $0x2a8] sm:$0xf]
    %v2704 = vld [vmem:[#allocation6 + $0x2ac] sm:$0xf]
    %v2705 = vld [vmem:[#allocation6 + $0x2b0] sm:$0xf]
    %v2706 = vld [vmem:[#allocation6 + $0x2b4] sm:$0xf]
    %v2707 = vld [vmem:[#allocation8 + $0x21] sm:$0x1]
    %v2708 = vperm.slane %v2707, 0
    %v2717 = vunpack.c.l.b16 %v2699
    %v2718 = vunpack.c.l.b16 %v2700
    %v2719 = vunpack.c.l.b16 %v2701
    %v2720 = vunpack.c.l.b16 %v2702
    %v2721 = vunpack.c.l.b16 %v2703
    %v2722 = vunpack.c.l.b16 %v2704
    %v2723 = vunpack.c.l.b16 %v2705
    %v2724 = vunpack.c.l.b16 %v2706
    %v2725 = vpack.c.b16 %v2718, %v2717
    %v2726 = vpack.c.b16 %v2720, %v2719
    %v2727 = vpack.c.b16 %v2722, %v2721
    %v2728 = vpack.c.b16 %v2724, %v2723
    %2733 = vmatpush.bf16.msra.mxu0 0
    %2734 = vmatpush.bf16.msra.mxu0 0
    %2735 = vmatpush.bf16.msra.mxu0 0
    %2736 = vmatpush.bf16.msra.mxu0 0
    %2737 = vmatpush.bf16.msra.mxu0 %v2728
    %2738 = vmatpush.bf16.msra.mxu0 %v2727
    %2739 = vmatpush.bf16.msra.mxu0 %v2726
    %2740 = vmatpush.bf16.msra.mxu0 %v2725
    %2741 = vmatmul.bf16.gmra.mxu0 %v2682
    %v2742 = vpop.f32.mrf.mxu0
    %v2743 = vadd.f32 %v2708, %v2742
    %v2744 = vpop.f32.mrf.mxu0
    %2745 = vdwg.mxu0
    %v2746 = vld [vmem:[#allocation6 + $0x238] sm:$0xf]
    %v2747 = vld [vmem:[#allocation6 + $0x23c] sm:$0xf]
    %v2748 = vld [vmem:[#allocation6 + $0x240] sm:$0xf]
    %v2749 = vld [vmem:[#allocation6 + $0x244] sm:$0xf]
    %v2750 = vld [vmem:[#allocation6 + $0x248] sm:$0xf]
    %v2751 = vld [vmem:[#allocation6 + $0x24c] sm:$0xf]
    %v2752 = vld [vmem:[#allocation6 + $0x250] sm:$0xf]
    %v2753 = vld [vmem:[#allocation6 + $0x254] sm:$0xf]
    %v2754 = vld [vmem:[#allocation6 + $0x258] sm:$0xf]
    %v2755 = vld [vmem:[#allocation6 + $0x25c] sm:$0xf]
    %v2756 = vld [vmem:[#allocation6 + $0x260] sm:$0xf]
    %v2757 = vld [vmem:[#allocation6 + $0x264] sm:$0xf]
    %v2758 = vld [vmem:[#allocation6 + $0x268] sm:$0xf]
    %v2759 = vld [vmem:[#allocation6 + $0x26c] sm:$0xf]
    %v2760 = vld [vmem:[#allocation6 + $0x270] sm:$0xf]
    %v2761 = vld [vmem:[#allocation6 + $0x274] sm:$0xf]
    %v2762 = vpack.c.bf16 %v2698, %v2698
    %v2763 = vld [vmem:[#allocation8 + $0x1f] sm:$0x1]
    %v2764 = vperm.slane %v2763, 0
    %v2781 = vunpack.c.l.b16 %v2746
    %v2782 = vunpack.c.l.b16 %v2747
    %v2783 = vunpack.c.l.b16 %v2748
    %v2784 = vunpack.c.l.b16 %v2749
    %v2785 = vunpack.c.l.b16 %v2750
    %v2786 = vunpack.c.l.b16 %v2751
    %v2787 = vunpack.c.l.b16 %v2752
    %v2788 = vunpack.c.l.b16 %v2753
    %v2789 = vunpack.c.l.b16 %v2754
    %v2790 = vunpack.c.l.b16 %v2755
    %v2791 = vunpack.c.l.b16 %v2756
    %v2792 = vunpack.c.l.b16 %v2757
    %v2793 = vunpack.c.l.b16 %v2758
    %v2794 = vunpack.c.l.b16 %v2759
    %v2795 = vunpack.c.l.b16 %v2760
    %v2796 = vunpack.c.l.b16 %v2761
    %v2797 = vpack.c.b16 %v2782, %v2781
    %v2798 = vpack.c.b16 %v2784, %v2783
    %v2799 = vpack.c.b16 %v2786, %v2785
    %v2800 = vpack.c.b16 %v2788, %v2787
    %v2801 = vpack.c.b16 %v2790, %v2789
    %v2802 = vpack.c.b16 %v2792, %v2791
    %v2803 = vpack.c.b16 %v2794, %v2793
    %v2804 = vpack.c.b16 %v2796, %v2795
    %2813 = vmatpush.bf16.msra.mxu0 %v2804
    %2814 = vmatpush.bf16.msra.mxu0 %v2803
    %2815 = vmatpush.bf16.msra.mxu0 %v2802
    %2816 = vmatpush.bf16.msra.mxu0 %v2801
    %2817 = vmatpush.bf16.msra.mxu0 %v2800
    %2818 = vmatpush.bf16.msra.mxu0 %v2799
    %2819 = vmatpush.bf16.msra.mxu0 %v2798
    %2820 = vmatpush.bf16.msra.mxu0 %v2797
    %2821 = vmatmul.bf16.gmra.mxu0 %v2762
    %v2822 = vpop.f32.mrf.mxu0
    %v2823 = vadd.f32 %v2764, %v2822
    %v2824 = vpop.f32.mrf.mxu0
    %2825 = vdwg.mxu0
    %v2826 = vmul.f32 %v2823, 0.1
    %v2827 = vmax.f32 %v2823, %v2826
    %v2828 = vadd.f32 %v2827, %v2743
    %v2829 = vld [vmem:[#allocation6 + $0x2b8] sm:$0xf]
    %v2830 = vld [vmem:[#allocation6 + $0x2bc] sm:$0xf]
    %v2831 = vld [vmem:[#allocation6 + $0x2c0] sm:$0xf]
    %v2832 = vld [vmem:[#allocation6 + $0x2c4] sm:$0xf]
    %v2833 = vld [vmem:[#allocation6 + $0x2c8] sm:$0xf]
    %v2834 = vld [vmem:[#allocation6 + $0x2cc] sm:$0xf]
    %v2835 = vld [vmem:[#allocation6 + $0x2d0] sm:$0xf]
    %v2836 = vld [vmem:[#allocation6 + $0x2d4] sm:$0xf]
    %v2837 = vld [vmem:[#allocation6 + $0x2d8] sm:$0xf]
    %v2838 = vld [vmem:[#allocation6 + $0x2dc] sm:$0xf]
    %v2839 = vld [vmem:[#allocation6 + $0x2e0] sm:$0xf]
    %v2840 = vld [vmem:[#allocation6 + $0x2e4] sm:$0xf]
    %v2841 = vld [vmem:[#allocation6 + $0x2e8] sm:$0xf]
    %v2842 = vld [vmem:[#allocation6 + $0x2ec] sm:$0xf]
    %v2843 = vld [vmem:[#allocation6 + $0x2f0] sm:$0xf]
    %v2844 = vld [vmem:[#allocation6 + $0x2f4] sm:$0xf]
    %v2845 = vld [vmem:[#allocation8 + $0x22] sm:$0x1]
    %v2846 = vperm.slane %v2845, 0
    %v2863 = vunpack.c.l.b16 %v2829
    %v2864 = vunpack.c.l.b16 %v2830
    %v2865 = vunpack.c.l.b16 %v2831
    %v2866 = vunpack.c.l.b16 %v2832
    %v2867 = vunpack.c.l.b16 %v2833
    %v2868 = vunpack.c.l.b16 %v2834
    %v2869 = vunpack.c.l.b16 %v2835
    %v2870 = vunpack.c.l.b16 %v2836
    %v2871 = vunpack.c.l.b16 %v2837
    %v2872 = vunpack.c.l.b16 %v2838
    %v2873 = vunpack.c.l.b16 %v2839
    %v2874 = vunpack.c.l.b16 %v2840
    %v2875 = vunpack.c.l.b16 %v2841
    %v2876 = vunpack.c.l.b16 %v2842
    %v2877 = vunpack.c.l.b16 %v2843
    %v2878 = vunpack.c.l.b16 %v2844
    %v2879 = vpack.c.b16 %v2864, %v2863
    %v2880 = vpack.c.b16 %v2866, %v2865
    %v2881 = vpack.c.b16 %v2868, %v2867
    %v2882 = vpack.c.b16 %v2870, %v2869
    %v2883 = vpack.c.b16 %v2872, %v2871
    %v2884 = vpack.c.b16 %v2874, %v2873
    %v2885 = vpack.c.b16 %v2876, %v2875
    %v2886 = vpack.c.b16 %v2878, %v2877
    %2895 = vmatpush.bf16.msra.mxu0 %v2886
    %2896 = vmatpush.bf16.msra.mxu0 %v2885
    %2897 = vmatpush.bf16.msra.mxu0 %v2884
    %2898 = vmatpush.bf16.msra.mxu0 %v2883
    %2899 = vmatpush.bf16.msra.mxu0 %v2882
    %2900 = vmatpush.bf16.msra.mxu0 %v2881
    %2901 = vmatpush.bf16.msra.mxu0 %v2880
    %2902 = vmatpush.bf16.msra.mxu0 %v2879
    %2903 = vmatmul.bf16.gmra.mxu0 %v2762
    %v2904 = vpop.f32.mrf.mxu0
    %v2905 = vadd.f32 %v2846, %v2904
    %v2906 = vpop.f32.mrf.mxu0
    %2907 = vdwg.mxu0
    %v2908 = vld [vmem:[#allocation6 + $0x278] sm:$0xf]
    %v2909 = vld [vmem:[#allocation6 + $0x27c] sm:$0xf]
    %v2910 = vld [vmem:[#allocation6 + $0x280] sm:$0xf]
    %v2911 = vld [vmem:[#allocation6 + $0x284] sm:$0xf]
    %v2912 = vld [vmem:[#allocation6 + $0x288] sm:$0xf]
    %v2913 = vld [vmem:[#allocation6 + $0x28c] sm:$0xf]
    %v2914 = vld [vmem:[#allocation6 + $0x290] sm:$0xf]
    %v2915 = vld [vmem:[#allocation6 + $0x294] sm:$0xf]
    %v2916 = vpack.c.bf16 %v2828, %v2828
    %v2917 = vld [vmem:[#allocation8 + $0x20] sm:$0x1]
    %v2918 = vperm.slane %v2917, 0
    %v2927 = vunpack.c.l.b16 %v2908
    %v2928 = vunpack.c.l.b16 %v2909
    %v2929 = vunpack.c.l.b16 %v2910
    %v2930 = vunpack.c.l.b16 %v2911
    %v2931 = vunpack.c.l.b16 %v2912
    %v2932 = vunpack.c.l.b16 %v2913
    %v2933 = vunpack.c.l.b16 %v2914
    %v2934 = vunpack.c.l.b16 %v2915
    %v2935 = vpack.c.b16 %v2928, %v2927
    %v2936 = vpack.c.b16 %v2930, %v2929
    %v2937 = vpack.c.b16 %v2932, %v2931
    %v2938 = vpack.c.b16 %v2934, %v2933
    %v2944 = vsel %vm917, %v2916, 0
    %2946 = vmatpush.bf16.msra.mxu0 0
    %2947 = vmatpush.bf16.msra.mxu0 0
    %2948 = vmatpush.bf16.msra.mxu0 0
    %2949 = vmatpush.bf16.msra.mxu0 0
    %2950 = vmatpush.bf16.msra.mxu0 %v2938
    %2951 = vmatpush.bf16.msra.mxu0 %v2937
    %2952 = vmatpush.bf16.msra.mxu0 %v2936
    %2953 = vmatpush.bf16.msra.mxu0 %v2935
    %2954 = vmatmul.bf16.gmra.mxu0 %v2944
    %v2955 = vpop.f32.mrf.mxu0
    %v2956 = vadd.f32 %v2918, %v2955
    %v2957 = vpop.f32.mrf.mxu0
    %2958 = vdwg.mxu0
    %v2959 = vmul.f32 %v2956, 0.1
    %v2960 = vmax.f32 %v2956, %v2959
    %v2961 = vadd.f32 %v2960, %v2905
    %v2962 = vld [vmem:[#allocation8 + $0x23] sm:$0x1]
    %v2963 = vperm.slane %v2962, 0
    %v2964 = vmul.f32 %v2961, %v2963
    %v2965 = vsel %vm64, %v2964, 0.0
    %2966 = vadd.xlane.f32.xlu0 %v2965
    %v2967 = vpop.xlane.xlu0 %2966
    %v2968 = vld [vmem:[#allocation8 + $0x24] sm:$0x1]
    %v2969 = vperm.slane %v2968, 0
    %v2970 = vadd.f32 %v2967, %v2969
    %vm2971 = vcmask 1024
    %2972 = vst.msk [vmem:[%s3] sm:$0x3] %vm2971, %v2970
    // Predicated region
    $region26: #{forward.1} parent=1 // pred_check
      _
    $region27: #{forward.1} parent=1 // pred_check_branch
      %2974 = sbr.rel (0) target = $region29
    $region28: #{forward.1} parent=1 // pred_region
      _
    $region29: #{forward.1} parent=1 // pred_fallthru
      _
    // Predicated region
    $region30: #{forward.1} parent=1 // pred_check
      _
    $region31: #{forward.1} parent=1 // pred_check_branch
      %2976 = sbr.rel (0) target = $region33
    $region32: #{forward.1} parent=1 // pred_region
      _
    $region33: #{forward.1} parent=1 // pred_fallthru
      _
    %2977 = vsyncpa [#allocation5], 1
    %2978 = vsyncpa [#allocation7], 1

</llo_original>
